<compile_context>
chip_gen: v6e
topology: v6e:2x2x1
jax: 0.10.0
libtpu: 0.0.40
codegen_flags: <defaults>
</compile_context>

<pallas_src>
import functools

import numpy as np
import jax
import jax.numpy as jnp
from jax.experimental import pallas as pl
from jax.experimental.pallas import tpu as pltpu


# ----------------------------- fixed architecture ---------------------------------
_S = 6                     # spatial width/height (6 -> 5 -> 4 -> 2)
_SS = _S * _S              # grid positions per batch element (36)

_K1, _C1, _K2, _C2, _K3, _C3, _D1, _D2 = 2, 40, 2, 100, 3, 3, 96, 10   # module defaults
_C1P, _C2P = 64, 128       # channel counts padded to lane-aligned widths
_PW1, _PW2, _PW3 = 2 * _C1P, 2 * _C2P, 2 * _C3       # packed widths 128, 256, 6
_PD1, _PD2 = 2 * _D1, 2 * _D2                        # packed widths 192, 20
_EPS = 1e-5

# tap row-offsets on the flattened 6x6 grid (off = di*6 + dj)
_OFF1 = tuple(di * _S + dj for di in range(2) for dj in range(2))      # (0, 1, 6, 7)
_OFF3 = tuple(di * _S + dj for di in range(3) for dj in range(3))      # 0..14

# wmain row layout (lane width 256); all block starts are multiples of 8
_ROW_C1 = 0                                  # conv1 im2col weight: 8 rows,  lanes 0:128
_ROW_C2 = _ROW_C1 + 8                        # conv2: 4 taps * 128 rows,     lanes 0:256
_ROW_FC1 = _ROW_C2 + 4 * _PW1                # fc1 : 4 taps * 8 rows (6 used), lanes 0:192
_ROW_FC2 = _ROW_FC1 + 4 * 8                  # fc2 : 192 rows,               lanes 0:20
_ROW_SMALL = _ROW_FC2 + _PD1                 # 16 rows of biases / BN affine
_WMAIN_ROWS = _ROW_SMALL + 16                # 760
_LANES = 256

# small-row indices inside the SMALL block
_SR_P1, _SR_WD1, _SR_WO1, _SR_B1 = 0, 1, 2, 3
_SR_P2, _SR_WD2, _SR_WO2, _SR_B2 = 4, 5, 6, 7
_SR_P3, _SR_P4, _SR_P5 = 8, 9, 10


def _full_spec(shape):
    nd = len(shape)
    return pl.BlockSpec(shape, lambda *_: (0,) * nd)


# ---------------------------------------------------------------------------
# Fully fused encoder kernel
# ---------------------------------------------------------------------------
def _encoder_kernel(x_ref, wm_ref, w3_ref, out_ref, *, B):
    R0 = B * _SS

    def srow(idx, width):                      # one small-parameter row, (1, width)
        r = _ROW_SMALL + idx
        return wm_ref[r:r + 1, 0:width]

    def rshift(a, off):
        # shifted[r, :] = a[(r + off) % R0, :] ; wrap rows are garbage that is masked
        # out of BN statistics and never read by valid downstream positions.
        if off == 0:
            return a
        return pltpu.roll(a, shift=R0 - off, axis=0)

    def cbn(a, half, mcol, n, wd_i, wo_i, bb_i):
        # Complex (covariance-whitening) BatchNorm on the packed [real | imag] slab.
        width = 2 * half
        mask = x_ref[:, mcol:mcol + 1] > 0.5               # (R0, 1) valid-row mask
        inv_n = 1.0 / float(n)
        mean = jnp.sum(jnp.where(mask, a, 0.0), axis=0, keepdims=True) * inv_n
        xc = jnp.where(mask, a - mean, 0.0)                 # centered, zero on invalid
        xc_sw = pltpu.roll(xc, shift=half, axis=1)          # half swap -> [imag | real]
        var = jnp.sum(xc * xc, axis=0, keepdims=True) * inv_n + _EPS   # [Crr | Cii]
        cri = jnp.sum(xc * xc_sw, axis=0, keepdims=True) * inv_n       # [Cri | Cri]
        var_sw = pltpu.roll(var, shift=half, axis=1)                   # [Cii | Crr]
        det = var * var_sw - cri * cri
        s = jnp.sqrt(det)
        t = var + var_sw + 2.0 * s
        inv_st = jax.lax.rsqrt(det * t)        # 1 / (sqrt(det) * sqrt(Crr + Cii + 2s))
        r_diag = (var_sw + s) * inv_st         # [Rrr | Rii]
        r_off = -cri * inv_st                  # [Rri | Rri]
        r_diag_sw = (var + s) * inv_st         # [Rii | Rrr]
        wd = srow(wd_i, width)                 # [Wrr | Wii]
        wo = srow(wo_i, width)                 # [Wri | Wri]
        bb = srow(bb_i, width)                 # [Br  | Bi ]
        ca = wd * r_diag + wo * r_off
        cb = wd * r_off + wo * r_diag_sw
        return ca * xc + cb * xc_sw + bb

    # ---- conv1 (k=2) as one im2col matmul (K = 4 taps * 2) + bias + complex relu ----
    x = x_ref[:, 0:2]                                         # (R0, 2)  [xr | xi]
    im = jnp.concatenate([rshift(x, o) for o in _OFF1], axis=1)         # (R0, 8)
    a = jnp.dot(im, wm_ref[_ROW_C1:_ROW_C1 + 8, 0:_PW1],
                preferred_element_type=jnp.float32)
    a = jnp.maximum(a + srow(_SR_P1, _PW1), 0.0)              # (R0, 128)

    # ---- bn1 (stats over the B*5*5 valid positions) ----
    a = cbn(a, _C1P, 2, B * (_S - 1) ** 2, _SR_WD1, _SR_WO1, _SR_B1)

    # ---- conv2 (k=2): per-tap rolled slab @ (128, 256) weight ----
    acc = None
    for t, off in enumerate(_OFF1):
        w = wm_ref[_ROW_C2 + _PW1 * t:_ROW_C2 + _PW1 * (t + 1), 0:_PW2]
        y = jnp.dot(rshift(a, off), w, preferred_element_type=jnp.float32)
        acc = y if acc is None else acc + y
    a = jnp.maximum(acc + srow(_SR_P2, _PW2), 0.0)            # (R0, 256)

    # ---- bn2 (stats over the B*4*4 valid positions) ----
    a = cbn(a, _C2P, 3, B * (_S - 2) ** 2, _SR_WD2, _SR_WO2, _SR_B2)

    # ---- conv3 (k=3): per-tap rolled slab @ (256, 6) weight ----
    acc = None
    for t, off in enumerate(_OFF3):
        y = jnp.dot(rshift(a, off), w3_ref[t], preferred_element_type=jnp.float32)
        acc = y if acc is None else acc + y
    a = jnp.maximum(acc + srow(_SR_P3, _PW3), 0.0)            # (R0, 6)

    # ---- select the B base rows (h = w = 0) with one-hot matmuls, fc1 as 2x2 "conv" --
    rid = jax.lax.broadcasted_iota(jnp.int32, (B, R0), 1)
    bid = jax.lax.broadcasted_iota(jnp.int32, (B, R0), 0)
    acc = None
    for t, off in enumerate(_OFF1):                           # fc1 taps = 2x2 map
        sel = (rid == bid * _SS + off).astype(jnp.float32)    # one-hot (B, R0)
        patch = jnp.dot(sel, a, preferred_element_type=jnp.float32)     # (B, 6)
        w = wm_ref[_ROW_FC1 + 8 * t:_ROW_FC1 + 8 * t + _PW3, 0:_PD1]    # (6, 192)
        y = jnp.dot(patch, w, preferred_element_type=jnp.float32)
        acc = y if acc is None else acc + y
    a = jnp.maximum(acc + srow(_SR_P4, _PD1), 0.0)            # (B, 192)

    # ---- fc2 (no relu), single packed output [real d2 | imag d2] ----
    out_ref[...] = (jnp.dot(a, wm_ref[_ROW_FC2:_ROW_FC2 + _PD1, 0:_PD2],
                            preferred_element_type=jnp.float32)
                    + srow(_SR_P5, _PD2))


# ---------------------------------------------------------------------------
# Host-side weight packing (init-time numpy, zero runtime cost)
# ---------------------------------------------------------------------------
def _pack_cplx(wr_t, wi_t, rows_p, cols_p):
    # wr_t, wi_t: (cin, cout) -> (2*rows_p, 2*cols_p) block [[Wr, Wi], [-Wi, Wr]],
    # zero-padded so padded channels stay exactly zero through the network.
    cin, cout = wr_t.shape
    out = np.zeros((2 * rows_p, 2 * cols_p), np.float32)
    out[:cin, :cout] = wr_t
    out[:cin, cols_p:cols_p + cout] = wi_t
    out[rows_p:rows_p + cin, :cout] = -wi_t
    out[rows_p:rows_p + cin, cols_p:cols_p + cout] = wr_t
    return out


def _pack_bias(br, bi, cols_p):
    out = np.zeros((2 * cols_p,), np.float32)
    c = br.shape[0]
    out[:c] = br - bi
    out[cols_p:cols_p + c] = br + bi
    return out


def init_params(key):
    """Packed parameter slabs for the module defaults (k1=2,c1=40,k2=2,c2=100,k3=3,
    c3=3,d1=96,d2=10)."""
    keys = iter(jax.random.split(key, 20))

    def u(shape, sc):
        return np.asarray(jax.random.uniform(next(keys), shape, jnp.float32, -sc, sc))

    wmain = np.zeros((_WMAIN_ROWS, _LANES), np.float32)
    w3 = np.zeros((_K3 * _K3, _PW2, _PW3), np.float32)

    # conv1 (1 -> c1, k=2): single im2col weight, rows [tap0_re, tap0_im, tap1_re, ...]
    sc = (1.0 / (1 * _K1 * _K1)) ** 0.5
    w1r, w1i = u((_C1, 1, _K1, _K1), sc), u((_C1, 1, _K1, _K1), sc)
    b1r, b1i = u((_C1,), sc), u((_C1,), sc)
    for t, (di, dj) in enumerate([(i, j) for i in range(_K1) for j in range(_K1)]):
        blk = _pack_cplx(w1r[:, :, di, dj].T, w1i[:, :, di, dj].T, 1, _C1P)     # (2,128)
        wmain[_ROW_C1 + 2 * t:_ROW_C1 + 2 * t + 2, :_PW1] = blk
    wmain[_ROW_SMALL + _SR_P1, :_PW1] = _pack_bias(b1r, b1i, _C1P)

    # conv2 (c1 -> c2, k=2)
    sc = (1.0 / (_C1 * _K2 * _K2)) ** 0.5
    w2r, w2i = u((_C2, _C1, _K2, _K2), sc), u((_C2, _C1, _K2, _K2), sc)
    b2r, b2i = u((_C2,), sc), u((_C2,), sc)
    for t, (di, dj) in enumerate([(i, j) for i in range(_K2) for j in range(_K2)]):
        blk = _pack_cplx(w2r[:, :, di, dj].T, w2i[:, :, di, dj].T, _C1P, _C2P)  # (128,256)
        wmain[_ROW_C2 + _PW1 * t:_ROW_C2 + _PW1 * (t + 1), :_PW2] = blk
    wmain[_ROW_SMALL + _SR_P2, :_PW2] = _pack_bias(b2r, b2i, _C2P)

    # conv3 (c2 -> c3, k=3): separate tall-skinny slab (natural layout, no lane waste)
    sc = (1.0 / (_C2 * _K3 * _K3)) ** 0.5
    w3r, w3i = u((_C3, _C2, _K3, _K3), sc), u((_C3, _C2, _K3, _K3), sc)
    b3r, b3i = u((_C3,), sc), u((_C3,), sc)
    for t, (di, dj) in enumerate([(i, j) for i in range(_K3) for j in range(_K3)]):
        w3[t] = _pack_cplx(w3r[:, :, di, dj].T, w3i[:, :, di, dj].T, _C2P, _C3)  # (256,6)
    wmain[_ROW_SMALL + _SR_P3, :_PW3] = _pack_bias(b3r, b3i, _C3)

    # fc1 (2*2*c3 -> d1) consumes the channel-major NCHW flatten: re-expressed as a
    # 2x2 "conv" via a free column permutation of the fc1 weight.
    sc = (1.0 / (4 * _C3)) ** 0.5
    w4r, w4i = u((_D1, 4 * _C3), sc), u((_D1, 4 * _C3), sc)
    b4r, b4i = u((_D1,), sc), u((_D1,), sc)
    for t, (di, dj) in enumerate([(i, j) for i in range(2) for j in range(2)]):
        cols = np.arange(_C3) * 4 + di * 2 + dj
        blk = _pack_cplx(w4r[:, cols].T, w4i[:, cols].T, _C3, _D1)              # (6,192)
        wmain[_ROW_FC1 + 8 * t:_ROW_FC1 + 8 * t + _PW3, :_PD1] = blk
    wmain[_ROW_SMALL + _SR_P4, :_PD1] = _pack_bias(b4r, b4i, _D1)

    # fc2 (d1 -> d2)
    sc = (1.0 / _D1) ** 0.5
    w5r, w5i = u((_D2, _D1), sc), u((_D2, _D1), sc)
    b5r, b5i = u((_D2,), sc), u((_D2,), sc)
    wmain[_ROW_FC2:_ROW_FC2 + _PD1, :_PD2] = _pack_cplx(w5r.T, w5i.T, _D1, _D2)  # (192,20)
    wmain[_ROW_SMALL + _SR_P5, :_PD2] = _pack_bias(b5r, b5i, _D2)

    # BN affine init (complexPyTorch): Wrr = Wii = 1/sqrt(2), Wri = 0, bias = 0.
    # Padded channels get 0 so they stay exactly zero.  Woff / bias rows stay zero.
    for sr, c, cp, width in ((_SR_WD1, _C1, _C1P, _PW1), (_SR_WD2, _C2, _C2P, _PW2)):
        row = np.zeros((width,), np.float32)
        row[:c] = 0.70710678
        row[cp:cp + c] = 0.70710678
        wmain[_ROW_SMALL + sr, :width] = row

    return {"wmain": jnp.asarray(wmain), "w3": jnp.asarray(w3)}


def _row_mask_np(B, vhw):
    # rows r = b*36 + h*6 + w ; valid iff h < vhw and w < vhw  (0/1 float column)
    p = np.arange(B * _SS) % _SS
    return ((p // _S < vhw) & (p % _S < vhw)).astype(np.float32)


# ---------------------------------------------------------------------------
# Forward wrapper: one pallas_call, 3 input DMAs, 1 output DMA
# ---------------------------------------------------------------------------
def encoder_f_forward(params, xr, xi):
    B = xr.shape[0]
    assert xr.shape[1:] == (1, _S, _S) and xi.shape == xr.shape
    R0 = B * _SS

    # Input slab (R0, 4): lanes = [xr, xi, bn1 valid-row mask, bn2 valid-row mask].
    x_in = jnp.stack([xr.reshape(R0), xi.reshape(R0),
                      jnp.asarray(_row_mask_np(B, _S - 1)),
                      jnp.asarray(_row_mask_np(B, _S - 2))], axis=1)

    kernel = functools.partial(_encoder_kernel, B=B)
    out = pl.pallas_call(
        kernel,
        grid=(1,),
        in_specs=[_full_spec((R0, 4)),
                  _full_spec(params["wmain"].shape),
                  _full_spec(params["w3"].shape)],
        out_specs=_full_spec((B, _PD2)),
        out_shape=jax.ShapeDtypeStruct((B, _PD2), jnp.float32),
        compiler_params=pltpu.CompilerParams(
            dimension_semantics=("arbitrary",)),
    )(x_in, params["wmain"], params["w3"])
    return out[:, :_D2], out[:, _D2:]


if __name__ == "__main__":
    key = jax.random.PRNGKey(0)
    pkey, kxr, kxi = jax.random.split(key, 3)
    params = init_params(pkey)

    # Input spatial size 6x6 so that 6 -(k=2)-> 5 -(k=2)-> 4 -(k=3)-> 2, matching the
    # hard-coded 2*2*c3 flatten in the PyTorch module.
    B = 2
    xr = jax.random.normal(kxr, (B, 1, _S, _S), jnp.float32)
    xi = jax.random.normal(kxi, (B, 1, _S, _S), jnp.float32)

    fwd = jax.jit(functools.partial(encoder_f_forward, params))
    yr, yi = fwd(xr, xi)
    jax.block_until_ready((yr, yi))
    assert yr.shape == (B, _D2) and yi.shape == (B, _D2)
    assert yr.dtype == jnp.float32 and yi.dtype == jnp.float32
    assert bool(jnp.all(jnp.isfinite(yr))) and bool(jnp.all(jnp.isfinite(yi)))
    print("KERNEL_OK")
</pallas_src>

<mosaic_0001>
module attributes {stable_mosaic.version = 11 : i64} {
  func.func @_encoder_kernel(%arg0: i32, %arg1: memref<72x4xf32, #tpu.memory_space<vmem>>, %arg2: memref<760x256xf32, #tpu.memory_space<vmem>>, %arg3: memref<9x256x6xf32, #tpu.memory_space<vmem>>, %arg4: memref<2x20xf32, #tpu.memory_space<vmem>>) attributes {dimension_semantics = [#tpu.dimension_semantics<arbitrary>], iteration_bounds = array<i64: 1>, scalar_prefetch = 0 : i64, scratch_operands = 0 : i64, tpu.core_type = #tpu.core_type<tc>, window_params = [{pipeline_mode = #tpu.pipeline_mode<synchronous>, transform_indices = @transform_0, window_bounds = array<i64: 72, 4>}, {pipeline_mode = #tpu.pipeline_mode<synchronous>, transform_indices = @transform_1, window_bounds = array<i64: 760, 256>}, {pipeline_mode = #tpu.pipeline_mode<synchronous>, transform_indices = @transform_2, window_bounds = array<i64: 9, 256, 6>}, {pipeline_mode = #tpu.pipeline_mode<synchronous>, transform_indices = @transform_3, window_bounds = array<i64: 2, 20>}]} {
    %c0 = arith.constant 0 : index
    %c0_0 = arith.constant 0 : index
    %0 = vector.load %arg1[%c0, %c0_0] : memref<72x4xf32, #tpu.memory_space<vmem>>, vector<72x2xf32>
    %c71_i32 = arith.constant 71 : i32
    %1 = tpu.dynamic_rotate %0 by %c71_i32 dim 0 : vector<72x2xf32>, i32 -> vector<72x2xf32>
    %c66_i32 = arith.constant 66 : i32
    %2 = tpu.dynamic_rotate %0 by %c66_i32 dim 0 : vector<72x2xf32>, i32 -> vector<72x2xf32>
    %c65_i32 = arith.constant 65 : i32
    %3 = tpu.dynamic_rotate %0 by %c65_i32 dim 0 : vector<72x2xf32>, i32 -> vector<72x2xf32>
    %4 = tpu.concatenate %0, %1, %2, %3 in 1 : vector<72x2xf32>, vector<72x2xf32>, vector<72x2xf32>, vector<72x2xf32> -> vector<72x8xf32>
    %c0_1 = arith.constant 0 : index
    %c0_2 = arith.constant 0 : index
    %5 = vector.load %arg2[%c0_1, %c0_2] : memref<760x256xf32, #tpu.memory_space<vmem>>, vector<8x128xf32>
    %cst = arith.constant dense<0.000000e+00> : vector<72x128xf32>
    %6 = tpu.matmul %4, %5, %cst {dimension_numbers = #tpu.dot_dimension_numbers<[1], [0], [0], [1], [0, 0, 1, 1], [], []>} : vector<72x8xf32>, vector<8x128xf32>, vector<72x128xf32> -> vector<72x128xf32>
    %c744 = arith.constant 744 : index
    %c0_3 = arith.constant 0 : index
    %7 = vector.load %arg2[%c744, %c0_3] : memref<760x256xf32, #tpu.memory_space<vmem>>, vector<1x128xf32>
    %8 = vector.broadcast %7 : vector<1x128xf32> to vector<72x128xf32>
    %9 = arith.addf %6, %8 : vector<72x128xf32>
    %cst_4 = arith.constant 0.000000e+00 : f32
    %10 = vector.broadcast %cst_4 : f32 to vector<72x128xf32>
    %11 = arith.maximumf %9, %10 : vector<72x128xf32>
    %c0_5 = arith.constant 0 : index
    %c2 = arith.constant 2 : index
    %12 = vector.load %arg1[%c0_5, %c2] : memref<72x4xf32, #tpu.memory_space<vmem>>, vector<72x1xf32>
    %cst_6 = arith.constant 5.000000e-01 : f32
    %13 = vector.broadcast %cst_6 : f32 to vector<72x1xf32>
    %14 = arith.cmpf ogt, %12, %13 : vector<72x1xf32>
    %cst_7 = arith.constant 0.000000e+00 : f32
    %15 = vector.shape_cast %14 : vector<72x1xi1> to vector<72x1xi1>
    %16 = vector.broadcast %15 : vector<72x1xi1> to vector<72x128xi1>
    %17 = vector.broadcast %cst_7 : f32 to vector<72x128xf32>
    %18 = arith.select %16, %11, %17 : vector<72x128xi1>, vector<72x128xf32>
    %cst_8 = arith.constant dense<0.000000e+00> : vector<128xf32>
    %19 = vector.multi_reduction <add>, %18, %cst_8 [0] : vector<72x128xf32> to vector<128xf32>
    %20 = vector.shape_cast %19 : vector<128xf32> to vector<1x128xf32>
    %cst_9 = arith.constant 2.000000e-02 : f32
    %21 = vector.broadcast %cst_9 : f32 to vector<1x128xf32>
    %22 = arith.mulf %20, %21 : vector<1x128xf32>
    %23 = vector.broadcast %22 : vector<1x128xf32> to vector<72x128xf32>
    %24 = arith.subf %11, %23 : vector<72x128xf32>
    %cst_10 = arith.constant 0.000000e+00 : f32
    %25 = vector.shape_cast %14 : vector<72x1xi1> to vector<72x1xi1>
    %26 = vector.broadcast %25 : vector<72x1xi1> to vector<72x128xi1>
    %27 = vector.broadcast %cst_10 : f32 to vector<72x128xf32>
    %28 = arith.select %26, %24, %27 : vector<72x128xi1>, vector<72x128xf32>
    %c64_i32 = arith.constant 64 : i32
    %29 = tpu.dynamic_rotate %28 by %c64_i32 dim 1 : vector<72x128xf32>, i32 -> vector<72x128xf32>
    %30 = arith.mulf %28, %28 : vector<72x128xf32>
    %cst_11 = arith.constant dense<0.000000e+00> : vector<128xf32>
    %31 = vector.multi_reduction <add>, %30, %cst_11 [0] : vector<72x128xf32> to vector<128xf32>
    %32 = vector.shape_cast %31 : vector<128xf32> to vector<1x128xf32>
    %cst_12 = arith.constant 2.000000e-02 : f32
    %33 = vector.broadcast %cst_12 : f32 to vector<1x128xf32>
    %34 = arith.mulf %32, %33 : vector<1x128xf32>
    %cst_13 = arith.constant 9.99999974E-6 : f32
    %35 = vector.broadcast %cst_13 : f32 to vector<1x128xf32>
    %36 = arith.addf %34, %35 : vector<1x128xf32>
    %37 = arith.mulf %28, %29 : vector<72x128xf32>
    %cst_14 = arith.constant dense<0.000000e+00> : vector<128xf32>
    %38 = vector.multi_reduction <add>, %37, %cst_14 [0] : vector<72x128xf32> to vector<128xf32>
    %39 = vector.shape_cast %38 : vector<128xf32> to vector<1x128xf32>
    %cst_15 = arith.constant 2.000000e-02 : f32
    %40 = vector.broadcast %cst_15 : f32 to vector<1x128xf32>
    %41 = arith.mulf %39, %40 : vector<1x128xf32>
    %c64_i32_16 = arith.constant 64 : i32
    %42 = tpu.dynamic_rotate %36 by %c64_i32_16 dim 1 : vector<1x128xf32>, i32 -> vector<1x128xf32>
    %43 = arith.mulf %36, %42 : vector<1x128xf32>
    %44 = arith.mulf %41, %41 : vector<1x128xf32>
    %45 = arith.subf %43, %44 : vector<1x128xf32>
    %46 = math.sqrt %45 : vector<1x128xf32>
    %47 = arith.addf %36, %42 : vector<1x128xf32>
    %cst_17 = arith.constant 2.000000e+00 : f32
    %48 = vector.broadcast %cst_17 : f32 to vector<1x128xf32>
    %49 = arith.mulf %48, %46 : vector<1x128xf32>
    %50 = arith.addf %47, %49 : vector<1x128xf32>
    %51 = arith.mulf %45, %50 : vector<1x128xf32>
    %52 = math.rsqrt %51 : vector<1x128xf32>
    %53 = arith.addf %42, %46 : vector<1x128xf32>
    %54 = arith.mulf %53, %52 : vector<1x128xf32>
    %cst_18 = arith.constant 0.000000e+00 : f32
    %55 = vector.broadcast %cst_18 : f32 to vector<1x128xf32>
    %56 = arith.subf %55, %41 : vector<1x128xf32>
    %57 = arith.mulf %56, %52 : vector<1x128xf32>
    %58 = arith.addf %36, %46 : vector<1x128xf32>
    %59 = arith.mulf %58, %52 : vector<1x128xf32>
    %c745 = arith.constant 745 : index
    %c0_19 = arith.constant 0 : index
    %60 = vector.load %arg2[%c745, %c0_19] : memref<760x256xf32, #tpu.memory_space<vmem>>, vector<1x128xf32>
    %c746 = arith.constant 746 : index
    %c0_20 = arith.constant 0 : index
    %61 = vector.load %arg2[%c746, %c0_20] : memref<760x256xf32, #tpu.memory_space<vmem>>, vector<1x128xf32>
    %c747 = arith.constant 747 : index
    %c0_21 = arith.constant 0 : index
    %62 = vector.load %arg2[%c747, %c0_21] : memref<760x256xf32, #tpu.memory_space<vmem>>, vector<1x128xf32>
    %63 = arith.mulf %60, %54 : vector<1x128xf32>
    %64 = arith.mulf %61, %57 : vector<1x128xf32>
    %65 = arith.addf %63, %64 : vector<1x128xf32>
    %66 = arith.mulf %60, %57 : vector<1x128xf32>
    %67 = arith.mulf %61, %59 : vector<1x128xf32>
    %68 = arith.addf %66, %67 : vector<1x128xf32>
    %69 = vector.broadcast %65 : vector<1x128xf32> to vector<72x128xf32>
    %70 = arith.mulf %69, %28 : vector<72x128xf32>
    %71 = vector.broadcast %68 : vector<1x128xf32> to vector<72x128xf32>
    %72 = arith.mulf %71, %29 : vector<72x128xf32>
    %73 = arith.addf %70, %72 : vector<72x128xf32>
    %74 = vector.broadcast %62 : vector<1x128xf32> to vector<72x128xf32>
    %75 = arith.addf %73, %74 : vector<72x128xf32>
    %c8 = arith.constant 8 : index
    %c0_22 = arith.constant 0 : index
    %76 = vector.load %arg2[%c8, %c0_22] : memref<760x256xf32, #tpu.memory_space<vmem>>, vector<128x256xf32>
    %cst_23 = arith.constant dense<0.000000e+00> : vector<72x256xf32>
    %77 = tpu.matmul %75, %76, %cst_23 {dimension_numbers = #tpu.dot_dimension_numbers<[1], [0], [0], [1], [0, 0, 1, 1], [], []>} : vector<72x128xf32>, vector<128x256xf32>, vector<72x256xf32> -> vector<72x256xf32>
    %c136 = arith.constant 136 : index
    %c0_24 = arith.constant 0 : index
    %78 = vector.load %arg2[%c136, %c0_24] : memref<760x256xf32, #tpu.memory_space<vmem>>, vector<128x256xf32>
    %c71_i32_25 = arith.constant 71 : i32
    %79 = tpu.dynamic_rotate %75 by %c71_i32_25 dim 0 : vector<72x128xf32>, i32 -> vector<72x128xf32>
    %cst_26 = arith.constant dense<0.000000e+00> : vector<72x256xf32>
    %80 = tpu.matmul %79, %78, %cst_26 {dimension_numbers = #tpu.dot_dimension_numbers<[1], [0], [0], [1], [0, 0, 1, 1], [], []>} : vector<72x128xf32>, vector<128x256xf32>, vector<72x256xf32> -> vector<72x256xf32>
    %81 = arith.addf %77, %80 : vector<72x256xf32>
    %c264 = arith.constant 264 : index
    %c0_27 = arith.constant 0 : index
    %82 = vector.load %arg2[%c264, %c0_27] : memref<760x256xf32, #tpu.memory_space<vmem>>, vector<128x256xf32>
    %c66_i32_28 = arith.constant 66 : i32
    %83 = tpu.dynamic_rotate %75 by %c66_i32_28 dim 0 : vector<72x128xf32>, i32 -> vector<72x128xf32>
    %cst_29 = arith.constant dense<0.000000e+00> : vector<72x256xf32>
    %84 = tpu.matmul %83, %82, %cst_29 {dimension_numbers = #tpu.dot_dimension_numbers<[1], [0], [0], [1], [0, 0, 1, 1], [], []>} : vector<72x128xf32>, vector<128x256xf32>, vector<72x256xf32> -> vector<72x256xf32>
    %85 = arith.addf %81, %84 : vector<72x256xf32>
    %c392 = arith.constant 392 : index
    %c0_30 = arith.constant 0 : index
    %86 = vector.load %arg2[%c392, %c0_30] : memref<760x256xf32, #tpu.memory_space<vmem>>, vector<128x256xf32>
    %c65_i32_31 = arith.constant 65 : i32
    %87 = tpu.dynamic_rotate %75 by %c65_i32_31 dim 0 : vector<72x128xf32>, i32 -> vector<72x128xf32>
    %cst_32 = arith.constant dense<0.000000e+00> : vector<72x256xf32>
    %88 = tpu.matmul %87, %86, %cst_32 {dimension_numbers = #tpu.dot_dimension_numbers<[1], [0], [0], [1], [0, 0, 1, 1], [], []>} : vector<72x128xf32>, vector<128x256xf32>, vector<72x256xf32> -> vector<72x256xf32>
    %89 = arith.addf %85, %88 : vector<72x256xf32>
    %c748 = arith.constant 748 : index
    %c0_33 = arith.constant 0 : index
    %90 = vector.load %arg2[%c748, %c0_33] : memref<760x256xf32, #tpu.memory_space<vmem>>, vector<1x256xf32>
    %91 = vector.broadcast %90 : vector<1x256xf32> to vector<72x256xf32>
    %92 = arith.addf %89, %91 : vector<72x256xf32>
    %cst_34 = arith.constant 0.000000e+00 : f32
    %93 = vector.broadcast %cst_34 : f32 to vector<72x256xf32>
    %94 = arith.maximumf %92, %93 : vector<72x256xf32>
    %c0_35 = arith.constant 0 : index
    %c3 = arith.constant 3 : index
    %95 = vector.load %arg1[%c0_35, %c3] : memref<72x4xf32, #tpu.memory_space<vmem>>, vector<72x1xf32>
    %cst_36 = arith.constant 5.000000e-01 : f32
    %96 = vector.broadcast %cst_36 : f32 to vector<72x1xf32>
    %97 = arith.cmpf ogt, %95, %96 : vector<72x1xf32>
    %cst_37 = arith.constant 0.000000e+00 : f32
    %98 = vector.shape_cast %97 : vector<72x1xi1> to vector<72x1xi1>
    %99 = vector.broadcast %98 : vector<72x1xi1> to vector<72x256xi1>
    %100 = vector.broadcast %cst_37 : f32 to vector<72x256xf32>
    %101 = arith.select %99, %94, %100 : vector<72x256xi1>, vector<72x256xf32>
    %cst_38 = arith.constant dense<0.000000e+00> : vector<256xf32>
    %102 = vector.multi_reduction <add>, %101, %cst_38 [0] : vector<72x256xf32> to vector<256xf32>
    %103 = vector.shape_cast %102 : vector<256xf32> to vector<1x256xf32>
    %cst_39 = arith.constant 3.125000e-02 : f32
    %104 = vector.broadcast %cst_39 : f32 to vector<1x256xf32>
    %105 = arith.mulf %103, %104 : vector<1x256xf32>
    %106 = vector.broadcast %105 : vector<1x256xf32> to vector<72x256xf32>
    %107 = arith.subf %94, %106 : vector<72x256xf32>
    %cst_40 = arith.constant 0.000000e+00 : f32
    %108 = vector.shape_cast %97 : vector<72x1xi1> to vector<72x1xi1>
    %109 = vector.broadcast %108 : vector<72x1xi1> to vector<72x256xi1>
    %110 = vector.broadcast %cst_40 : f32 to vector<72x256xf32>
    %111 = arith.select %109, %107, %110 : vector<72x256xi1>, vector<72x256xf32>
    %c128_i32 = arith.constant 128 : i32
    %112 = tpu.dynamic_rotate %111 by %c128_i32 dim 1 : vector<72x256xf32>, i32 -> vector<72x256xf32>
    %113 = arith.mulf %111, %111 : vector<72x256xf32>
    %cst_41 = arith.constant dense<0.000000e+00> : vector<256xf32>
    %114 = vector.multi_reduction <add>, %113, %cst_41 [0] : vector<72x256xf32> to vector<256xf32>
    %115 = vector.shape_cast %114 : vector<256xf32> to vector<1x256xf32>
    %cst_42 = arith.constant 3.125000e-02 : f32
    %116 = vector.broadcast %cst_42 : f32 to vector<1x256xf32>
    %117 = arith.mulf %115, %116 : vector<1x256xf32>
    %cst_43 = arith.constant 9.99999974E-6 : f32
    %118 = vector.broadcast %cst_43 : f32 to vector<1x256xf32>
    %119 = arith.addf %117, %118 : vector<1x256xf32>
    %120 = arith.mulf %111, %112 : vector<72x256xf32>
    %cst_44 = arith.constant dense<0.000000e+00> : vector<256xf32>
    %121 = vector.multi_reduction <add>, %120, %cst_44 [0] : vector<72x256xf32> to vector<256xf32>
    %122 = vector.shape_cast %121 : vector<256xf32> to vector<1x256xf32>
    %cst_45 = arith.constant 3.125000e-02 : f32
    %123 = vector.broadcast %cst_45 : f32 to vector<1x256xf32>
    %124 = arith.mulf %122, %123 : vector<1x256xf32>
    %c128_i32_46 = arith.constant 128 : i32
    %125 = tpu.dynamic_rotate %119 by %c128_i32_46 dim 1 : vector<1x256xf32>, i32 -> vector<1x256xf32>
    %126 = arith.mulf %119, %125 : vector<1x256xf32>
    %127 = arith.mulf %124, %124 : vector<1x256xf32>
    %128 = arith.subf %126, %127 : vector<1x256xf32>
    %129 = math.sqrt %128 : vector<1x256xf32>
    %130 = arith.addf %119, %125 : vector<1x256xf32>
    %cst_47 = arith.constant 2.000000e+00 : f32
    %131 = vector.broadcast %cst_47 : f32 to vector<1x256xf32>
    %132 = arith.mulf %131, %129 : vector<1x256xf32>
    %133 = arith.addf %130, %132 : vector<1x256xf32>
    %134 = arith.mulf %128, %133 : vector<1x256xf32>
    %135 = math.rsqrt %134 : vector<1x256xf32>
    %136 = arith.addf %125, %129 : vector<1x256xf32>
    %137 = arith.mulf %136, %135 : vector<1x256xf32>
    %cst_48 = arith.constant 0.000000e+00 : f32
    %138 = vector.broadcast %cst_48 : f32 to vector<1x256xf32>
    %139 = arith.subf %138, %124 : vector<1x256xf32>
    %140 = arith.mulf %139, %135 : vector<1x256xf32>
    %141 = arith.addf %119, %129 : vector<1x256xf32>
    %142 = arith.mulf %141, %135 : vector<1x256xf32>
    %c749 = arith.constant 749 : index
    %c0_49 = arith.constant 0 : index
    %143 = vector.load %arg2[%c749, %c0_49] : memref<760x256xf32, #tpu.memory_space<vmem>>, vector<1x256xf32>
    %c750 = arith.constant 750 : index
    %c0_50 = arith.constant 0 : index
    %144 = vector.load %arg2[%c750, %c0_50] : memref<760x256xf32, #tpu.memory_space<vmem>>, vector<1x256xf32>
    %c751 = arith.constant 751 : index
    %c0_51 = arith.constant 0 : index
    %145 = vector.load %arg2[%c751, %c0_51] : memref<760x256xf32, #tpu.memory_space<vmem>>, vector<1x256xf32>
    %146 = arith.mulf %143, %137 : vector<1x256xf32>
    %147 = arith.mulf %144, %140 : vector<1x256xf32>
    %148 = arith.addf %146, %147 : vector<1x256xf32>
    %149 = arith.mulf %143, %140 : vector<1x256xf32>
    %150 = arith.mulf %144, %142 : vector<1x256xf32>
    %151 = arith.addf %149, %150 : vector<1x256xf32>
    %152 = vector.broadcast %148 : vector<1x256xf32> to vector<72x256xf32>
    %153 = arith.mulf %152, %111 : vector<72x256xf32>
    %154 = vector.broadcast %151 : vector<1x256xf32> to vector<72x256xf32>
    %155 = arith.mulf %154, %112 : vector<72x256xf32>
    %156 = arith.addf %153, %155 : vector<72x256xf32>
    %157 = vector.broadcast %145 : vector<1x256xf32> to vector<72x256xf32>
    %158 = arith.addf %156, %157 : vector<72x256xf32>
    %c0_52 = arith.constant 0 : index
    %c0_53 = arith.constant 0 : index
    %c0_54 = arith.constant 0 : index
    %159 = vector.load %arg3[%c0_52, %c0_53, %c0_54] : memref<9x256x6xf32, #tpu.memory_space<vmem>>, vector<1x256x6xf32>
    %160 = vector.shape_cast %159 : vector<1x256x6xf32> to vector<256x6xf32>
    %cst_55 = arith.constant dense<0.000000e+00> : vector<72x6xf32>
    %161 = tpu.matmul %158, %160, %cst_55 {dimension_numbers = #tpu.dot_dimension_numbers<[1], [0], [0], [1], [0, 0, 1, 1], [], []>} : vector<72x256xf32>, vector<256x6xf32>, vector<72x6xf32> -> vector<72x6xf32>
    %c71_i32_56 = arith.constant 71 : i32
    %162 = tpu.dynamic_rotate %158 by %c71_i32_56 dim 0 : vector<72x256xf32>, i32 -> vector<72x256xf32>
    %c1 = arith.constant 1 : index
    %c0_57 = arith.constant 0 : index
    %c0_58 = arith.constant 0 : index
    %163 = vector.load %arg3[%c1, %c0_57, %c0_58] : memref<9x256x6xf32, #tpu.memory_space<vmem>>, vector<1x256x6xf32>
    %164 = vector.shape_cast %163 : vector<1x256x6xf32> to vector<256x6xf32>
    %cst_59 = arith.constant dense<0.000000e+00> : vector<72x6xf32>
    %165 = tpu.matmul %162, %164, %cst_59 {dimension_numbers = #tpu.dot_dimension_numbers<[1], [0], [0], [1], [0, 0, 1, 1], [], []>} : vector<72x256xf32>, vector<256x6xf32>, vector<72x6xf32> -> vector<72x6xf32>
    %166 = arith.addf %161, %165 : vector<72x6xf32>
    %c70_i32 = arith.constant 70 : i32
    %167 = tpu.dynamic_rotate %158 by %c70_i32 dim 0 : vector<72x256xf32>, i32 -> vector<72x256xf32>
    %c2_60 = arith.constant 2 : index
    %c0_61 = arith.constant 0 : index
    %c0_62 = arith.constant 0 : index
    %168 = vector.load %arg3[%c2_60, %c0_61, %c0_62] : memref<9x256x6xf32, #tpu.memory_space<vmem>>, vector<1x256x6xf32>
    %169 = vector.shape_cast %168 : vector<1x256x6xf32> to vector<256x6xf32>
    %cst_63 = arith.constant dense<0.000000e+00> : vector<72x6xf32>
    %170 = tpu.matmul %167, %169, %cst_63 {dimension_numbers = #tpu.dot_dimension_numbers<[1], [0], [0], [1], [0, 0, 1, 1], [], []>} : vector<72x256xf32>, vector<256x6xf32>, vector<72x6xf32> -> vector<72x6xf32>
    %171 = arith.addf %166, %170 : vector<72x6xf32>
    %c66_i32_64 = arith.constant 66 : i32
    %172 = tpu.dynamic_rotate %158 by %c66_i32_64 dim 0 : vector<72x256xf32>, i32 -> vector<72x256xf32>
    %c3_65 = arith.constant 3 : index
    %c0_66 = arith.constant 0 : index
    %c0_67 = arith.constant 0 : index
    %173 = vector.load %arg3[%c3_65, %c0_66, %c0_67] : memref<9x256x6xf32, #tpu.memory_space<vmem>>, vector<1x256x6xf32>
    %174 = vector.shape_cast %173 : vector<1x256x6xf32> to vector<256x6xf32>
    %cst_68 = arith.constant dense<0.000000e+00> : vector<72x6xf32>
    %175 = tpu.matmul %172, %174, %cst_68 {dimension_numbers = #tpu.dot_dimension_numbers<[1], [0], [0], [1], [0, 0, 1, 1], [], []>} : vector<72x256xf32>, vector<256x6xf32>, vector<72x6xf32> -> vector<72x6xf32>
    %176 = arith.addf %171, %175 : vector<72x6xf32>
    %c65_i32_69 = arith.constant 65 : i32
    %177 = tpu.dynamic_rotate %158 by %c65_i32_69 dim 0 : vector<72x256xf32>, i32 -> vector<72x256xf32>
    %c4 = arith.constant 4 : index
    %c0_70 = arith.constant 0 : index
    %c0_71 = arith.constant 0 : index
    %178 = vector.load %arg3[%c4, %c0_70, %c0_71] : memref<9x256x6xf32, #tpu.memory_space<vmem>>, vector<1x256x6xf32>
    %179 = vector.shape_cast %178 : vector<1x256x6xf32> to vector<256x6xf32>
    %cst_72 = arith.constant dense<0.000000e+00> : vector<72x6xf32>
    %180 = tpu.matmul %177, %179, %cst_72 {dimension_numbers = #tpu.dot_dimension_numbers<[1], [0], [0], [1], [0, 0, 1, 1], [], []>} : vector<72x256xf32>, vector<256x6xf32>, vector<72x6xf32> -> vector<72x6xf32>
    %181 = arith.addf %176, %180 : vector<72x6xf32>
    %c64_i32_73 = arith.constant 64 : i32
    %182 = tpu.dynamic_rotate %158 by %c64_i32_73 dim 0 : vector<72x256xf32>, i32 -> vector<72x256xf32>
    %c5 = arith.constant 5 : index
    %c0_74 = arith.constant 0 : index
    %c0_75 = arith.constant 0 : index
    %183 = vector.load %arg3[%c5, %c0_74, %c0_75] : memref<9x256x6xf32, #tpu.memory_space<vmem>>, vector<1x256x6xf32>
    %184 = vector.shape_cast %183 : vector<1x256x6xf32> to vector<256x6xf32>
    %cst_76 = arith.constant dense<0.000000e+00> : vector<72x6xf32>
    %185 = tpu.matmul %182, %184, %cst_76 {dimension_numbers = #tpu.dot_dimension_numbers<[1], [0], [0], [1], [0, 0, 1, 1], [], []>} : vector<72x256xf32>, vector<256x6xf32>, vector<72x6xf32> -> vector<72x6xf32>
    %186 = arith.addf %181, %185 : vector<72x6xf32>
    %c60_i32 = arith.constant 60 : i32
    %187 = tpu.dynamic_rotate %158 by %c60_i32 dim 0 : vector<72x256xf32>, i32 -> vector<72x256xf32>
    %c6 = arith.constant 6 : index
    %c0_77 = arith.constant 0 : index
    %c0_78 = arith.constant 0 : index
    %188 = vector.load %arg3[%c6, %c0_77, %c0_78] : memref<9x256x6xf32, #tpu.memory_space<vmem>>, vector<1x256x6xf32>
    %189 = vector.shape_cast %188 : vector<1x256x6xf32> to vector<256x6xf32>
    %cst_79 = arith.constant dense<0.000000e+00> : vector<72x6xf32>
    %190 = tpu.matmul %187, %189, %cst_79 {dimension_numbers = #tpu.dot_dimension_numbers<[1], [0], [0], [1], [0, 0, 1, 1], [], []>} : vector<72x256xf32>, vector<256x6xf32>, vector<72x6xf32> -> vector<72x6xf32>
    %191 = arith.addf %186, %190 : vector<72x6xf32>
    %c59_i32 = arith.constant 59 : i32
    %192 = tpu.dynamic_rotate %158 by %c59_i32 dim 0 : vector<72x256xf32>, i32 -> vector<72x256xf32>
    %c7 = arith.constant 7 : index
    %c0_80 = arith.constant 0 : index
    %c0_81 = arith.constant 0 : index
    %193 = vector.load %arg3[%c7, %c0_80, %c0_81] : memref<9x256x6xf32, #tpu.memory_space<vmem>>, vector<1x256x6xf32>
    %194 = vector.shape_cast %193 : vector<1x256x6xf32> to vector<256x6xf32>
    %cst_82 = arith.constant dense<0.000000e+00> : vector<72x6xf32>
    %195 = tpu.matmul %192, %194, %cst_82 {dimension_numbers = #tpu.dot_dimension_numbers<[1], [0], [0], [1], [0, 0, 1, 1], [], []>} : vector<72x256xf32>, vector<256x6xf32>, vector<72x6xf32> -> vector<72x6xf32>
    %196 = arith.addf %191, %195 : vector<72x6xf32>
    %c58_i32 = arith.constant 58 : i32
    %197 = tpu.dynamic_rotate %158 by %c58_i32 dim 0 : vector<72x256xf32>, i32 -> vector<72x256xf32>
    %c8_83 = arith.constant 8 : index
    %c0_84 = arith.constant 0 : index
    %c0_85 = arith.constant 0 : index
    %198 = vector.load %arg3[%c8_83, %c0_84, %c0_85] : memref<9x256x6xf32, #tpu.memory_space<vmem>>, vector<1x256x6xf32>
    %199 = vector.shape_cast %198 : vector<1x256x6xf32> to vector<256x6xf32>
    %cst_86 = arith.constant dense<0.000000e+00> : vector<72x6xf32>
    %200 = tpu.matmul %197, %199, %cst_86 {dimension_numbers = #tpu.dot_dimension_numbers<[1], [0], [0], [1], [0, 0, 1, 1], [], []>} : vector<72x256xf32>, vector<256x6xf32>, vector<72x6xf32> -> vector<72x6xf32>
    %201 = arith.addf %196, %200 : vector<72x6xf32>
    %c752 = arith.constant 752 : index
    %c0_87 = arith.constant 0 : index
    %202 = vector.load %arg2[%c752, %c0_87] : memref<760x256xf32, #tpu.memory_space<vmem>>, vector<1x6xf32>
    %203 = vector.broadcast %202 : vector<1x6xf32> to vector<72x6xf32>
    %204 = arith.addf %201, %203 : vector<72x6xf32>
    %cst_88 = arith.constant 0.000000e+00 : f32
    %205 = vector.broadcast %cst_88 : f32 to vector<72x6xf32>
    %206 = arith.maximumf %204, %205 : vector<72x6xf32>
    %207 = tpu.iota {dimensions = array<i32: 1>} : vector<2x72xi32>
    %208 = tpu.iota {dimensions = array<i32: 0>} : vector<2x72xi32>
    %c36_i32 = arith.constant 36 : i32
    %209 = vector.broadcast %c36_i32 : i32 to vector<2x72xi32>
    %210 = arith.muli %208, %209 : vector<2x72xi32>
    %c0_i32 = arith.constant 0 : i32
    %211 = vector.broadcast %c0_i32 : i32 to vector<2x72xi32>
    %212 = arith.addi %210, %211 : vector<2x72xi32>
    %213 = arith.cmpi eq, %207, %212 : vector<2x72xi32>
    %214 = arith.extui %213 : vector<2x72xi1> to vector<2x72xi32>
    %215 = arith.sitofp %214 : vector<2x72xi32> to vector<2x72xf32>
    %cst_89 = arith.constant dense<0.000000e+00> : vector<2x6xf32>
    %216 = tpu.matmul %215, %206, %cst_89 {dimension_numbers = #tpu.dot_dimension_numbers<[1], [0], [0], [1], [0, 0, 1, 1], [], []>} : vector<2x72xf32>, vector<72x6xf32>, vector<2x6xf32> -> vector<2x6xf32>
    %c520 = arith.constant 520 : index
    %c0_90 = arith.constant 0 : index
    %217 = vector.load %arg2[%c520, %c0_90] : memref<760x256xf32, #tpu.memory_space<vmem>>, vector<6x192xf32>
    %cst_91 = arith.constant dense<0.000000e+00> : vector<2x192xf32>
    %218 = tpu.matmul %216, %217, %cst_91 {dimension_numbers = #tpu.dot_dimension_numbers<[1], [0], [0], [1], [0, 0, 1, 1], [], []>} : vector<2x6xf32>, vector<6x192xf32>, vector<2x192xf32> -> vector<2x192xf32>
    %c36_i32_92 = arith.constant 36 : i32
    %219 = vector.broadcast %c36_i32_92 : i32 to vector<2x72xi32>
    %220 = arith.muli %208, %219 : vector<2x72xi32>
    %c1_i32 = arith.constant 1 : i32
    %221 = vector.broadcast %c1_i32 : i32 to vector<2x72xi32>
    %222 = arith.addi %220, %221 : vector<2x72xi32>
    %223 = arith.cmpi eq, %207, %222 : vector<2x72xi32>
    %224 = arith.extui %223 : vector<2x72xi1> to vector<2x72xi32>
    %225 = arith.sitofp %224 : vector<2x72xi32> to vector<2x72xf32>
    %cst_93 = arith.constant dense<0.000000e+00> : vector<2x6xf32>
    %226 = tpu.matmul %225, %206, %cst_93 {dimension_numbers = #tpu.dot_dimension_numbers<[1], [0], [0], [1], [0, 0, 1, 1], [], []>} : vector<2x72xf32>, vector<72x6xf32>, vector<2x6xf32> -> vector<2x6xf32>
    %c528 = arith.constant 528 : index
    %c0_94 = arith.constant 0 : index
    %227 = vector.load %arg2[%c528, %c0_94] : memref<760x256xf32, #tpu.memory_space<vmem>>, vector<6x192xf32>
    %cst_95 = arith.constant dense<0.000000e+00> : vector<2x192xf32>
    %228 = tpu.matmul %226, %227, %cst_95 {dimension_numbers = #tpu.dot_dimension_numbers<[1], [0], [0], [1], [0, 0, 1, 1], [], []>} : vector<2x6xf32>, vector<6x192xf32>, vector<2x192xf32> -> vector<2x192xf32>
    %229 = arith.addf %218, %228 : vector<2x192xf32>
    %c36_i32_96 = arith.constant 36 : i32
    %230 = vector.broadcast %c36_i32_96 : i32 to vector<2x72xi32>
    %231 = arith.muli %208, %230 : vector<2x72xi32>
    %c6_i32 = arith.constant 6 : i32
    %232 = vector.broadcast %c6_i32 : i32 to vector<2x72xi32>
    %233 = arith.addi %231, %232 : vector<2x72xi32>
    %234 = arith.cmpi eq, %207, %233 : vector<2x72xi32>
    %235 = arith.extui %234 : vector<2x72xi1> to vector<2x72xi32>
    %236 = arith.sitofp %235 : vector<2x72xi32> to vector<2x72xf32>
    %cst_97 = arith.constant dense<0.000000e+00> : vector<2x6xf32>
    %237 = tpu.matmul %236, %206, %cst_97 {dimension_numbers = #tpu.dot_dimension_numbers<[1], [0], [0], [1], [0, 0, 1, 1], [], []>} : vector<2x72xf32>, vector<72x6xf32>, vector<2x6xf32> -> vector<2x6xf32>
    %c536 = arith.constant 536 : index
    %c0_98 = arith.constant 0 : index
    %238 = vector.load %arg2[%c536, %c0_98] : memref<760x256xf32, #tpu.memory_space<vmem>>, vector<6x192xf32>
    %cst_99 = arith.constant dense<0.000000e+00> : vector<2x192xf32>
    %239 = tpu.matmul %237, %238, %cst_99 {dimension_numbers = #tpu.dot_dimension_numbers<[1], [0], [0], [1], [0, 0, 1, 1], [], []>} : vector<2x6xf32>, vector<6x192xf32>, vector<2x192xf32> -> vector<2x192xf32>
    %240 = arith.addf %229, %239 : vector<2x192xf32>
    %c36_i32_100 = arith.constant 36 : i32
    %241 = vector.broadcast %c36_i32_100 : i32 to vector<2x72xi32>
    %242 = arith.muli %208, %241 : vector<2x72xi32>
    %c7_i32 = arith.constant 7 : i32
    %243 = vector.broadcast %c7_i32 : i32 to vector<2x72xi32>
    %244 = arith.addi %242, %243 : vector<2x72xi32>
    %245 = arith.cmpi eq, %207, %244 : vector<2x72xi32>
    %246 = arith.extui %245 : vector<2x72xi1> to vector<2x72xi32>
    %247 = arith.sitofp %246 : vector<2x72xi32> to vector<2x72xf32>
    %cst_101 = arith.constant dense<0.000000e+00> : vector<2x6xf32>
    %248 = tpu.matmul %247, %206, %cst_101 {dimension_numbers = #tpu.dot_dimension_numbers<[1], [0], [0], [1], [0, 0, 1, 1], [], []>} : vector<2x72xf32>, vector<72x6xf32>, vector<2x6xf32> -> vector<2x6xf32>
    %c544 = arith.constant 544 : index
    %c0_102 = arith.constant 0 : index
    %249 = vector.load %arg2[%c544, %c0_102] : memref<760x256xf32, #tpu.memory_space<vmem>>, vector<6x192xf32>
    %cst_103 = arith.constant dense<0.000000e+00> : vector<2x192xf32>
    %250 = tpu.matmul %248, %249, %cst_103 {dimension_numbers = #tpu.dot_dimension_numbers<[1], [0], [0], [1], [0, 0, 1, 1], [], []>} : vector<2x6xf32>, vector<6x192xf32>, vector<2x192xf32> -> vector<2x192xf32>
    %251 = arith.addf %240, %250 : vector<2x192xf32>
    %c753 = arith.constant 753 : index
    %c0_104 = arith.constant 0 : index
    %252 = vector.load %arg2[%c753, %c0_104] : memref<760x256xf32, #tpu.memory_space<vmem>>, vector<1x192xf32>
    %253 = vector.broadcast %252 : vector<1x192xf32> to vector<2x192xf32>
    %254 = arith.addf %251, %253 : vector<2x192xf32>
    %cst_105 = arith.constant 0.000000e+00 : f32
    %255 = vector.broadcast %cst_105 : f32 to vector<2x192xf32>
    %256 = arith.maximumf %254, %255 : vector<2x192xf32>
    %c552 = arith.constant 552 : index
    %c0_106 = arith.constant 0 : index
    %257 = vector.load %arg2[%c552, %c0_106] : memref<760x256xf32, #tpu.memory_space<vmem>>, vector<192x20xf32>
    %cst_107 = arith.constant dense<0.000000e+00> : vector<2x20xf32>
    %258 = tpu.matmul %256, %257, %cst_107 {dimension_numbers = #tpu.dot_dimension_numbers<[1], [0], [0], [1], [0, 0, 1, 1], [], []>} : vector<2x192xf32>, vector<192x20xf32>, vector<2x20xf32> -> vector<2x20xf32>
    %c754 = arith.constant 754 : index
    %c0_108 = arith.constant 0 : index
    %259 = vector.load %arg2[%c754, %c0_108] : memref<760x256xf32, #tpu.memory_space<vmem>>, vector<1x20xf32>
    %260 = vector.broadcast %259 : vector<1x20xf32> to vector<2x20xf32>
    %261 = arith.addf %258, %260 : vector<2x20xf32>
    %c0_109 = arith.constant 0 : index
    %c0_110 = arith.constant 0 : index
    %262 = vector.load %arg4[%c0_109, %c0_110] : memref<2x20xf32, #tpu.memory_space<vmem>>, vector<2x20xf32>
    tpu.vector_store %arg4[%c0_109, %c0_110], %261 {strides = array<i32>} : memref<2x20xf32, #tpu.memory_space<vmem>>, vector<2x20xf32>,
    return
  }
  func.func @transform_0(%arg0: i32) -> (i32, i32) {
    %c0_i32 = arith.constant 0 : i32
    %c0_i32_0 = arith.constant 0 : i32
    %c0_i32_1 = arith.constant 0 : i32
    return %c0_i32, %c0_i32_0 : i32, i32
  }
  func.func @transform_1(%arg0: i32) -> (i32, i32) {
    %c0_i32 = arith.constant 0 : i32
    %c0_i32_0 = arith.constant 0 : i32
    %c0_i32_1 = arith.constant 0 : i32
    return %c0_i32, %c0_i32_0 : i32, i32
  }
  func.func @transform_2(%arg0: i32) -> (i32, i32, i32) {
    %c0_i32 = arith.constant 0 : i32
    %c0_i32_0 = arith.constant 0 : i32
    %c0_i32_1 = arith.constant 0 : i32
    %c0_i32_2 = arith.constant 0 : i32
    return %c0_i32, %c0_i32_0, %c0_i32_1 : i32, i32, i32
  }
  func.func @transform_3(%arg0: i32) -> (i32, i32) {
    %c0_i32 = arith.constant 0 : i32
    %c0_i32_0 = arith.constant 0 : i32
    %c0_i32_1 = arith.constant 0 : i32
    return %c0_i32, %c0_i32_0 : i32, i32
  }
}

</mosaic_0001>

<llo_original>
// kernel: encoder_f_forward.1
$region0: #{encoder_f_forward.1}
  #allocation0 [shape = 'u32[]', space=smem, size = 0x4, offset = 0x4, fixed_abs, tag = 'smem constant byte address 0x4 - core index']
  #allocation1 [shape = 'u32[144,128]{1,0:T(1,128)}', space=vmem, size = 0x12000, scoped, tag = 'internal scratch']
  %s0 = inlined_call_operand.vmem [shape: f32[72,4], index: 0, kind: input, shape index: {}]
  %s1 = inlined_call_operand.hbm [shape: f32[760,256], index: 1, kind: input, shape index: {}]
  %s2 = inlined_call_operand.hbm [shape: f32[9,256,6], index: 2, kind: input, shape index: {}]
  %s3 = inlined_call_operand.vmem [shape: f32[2,20], index: 3, kind: output, shape index: {}]
  %s4 = sld [smem:[#allocation0]]
  $region30: #{encoder_f_forward.1} parent=0
    _
  %s6 = ssub.s32 1, %s4
  %s7 = scalar_select 0, %s6, %s4
  $region1: #{encoder_f_forward.1} parent=0
    #allocation2 [shape = 'u8[778240]{0}', space=vmem, size = 0xbe000, scoped, tag = 'input window, operand 1, single buffered']
    #allocation3 [shape = 's32[1]{0}', space=sflag, size = 0x4, scoped, tag = 'scoped memory for encoder_f_forward.1']
    #allocation4 [shape = 'u8[1179648]{0}', space=vmem, size = 0x120000, scoped, tag = 'input window, operand 2, single buffered']
    #allocation5 [shape = 's32[1]{0}', space=sflag, size = 0x4, scoped, tag = 'scoped memory for encoder_f_forward.1']
    %8 = vsyncpa [#allocation3], 0
    %9 = vsyncpa [#allocation5], 0
    // Predicated region
    $region2: #{encoder_f_forward.1} parent=1 // pred_check
      _
    $region3: #{encoder_f_forward.1} parent=1 // pred_check_branch
      %11 = sbr.rel (0) target = $region5
    $region4: #{encoder_f_forward.1} parent=1 // pred_region
      _
    $region5: #{encoder_f_forward.1} parent=1 // pred_fallthru
      _
    // Predicated region
    $region6: #{encoder_f_forward.1} parent=1 // pred_check
      _
    $region7: #{encoder_f_forward.1} parent=1 // pred_check_branch
      %13 = sbr.rel (0) target = $region9
    $region8: #{encoder_f_forward.1} parent=1 // pred_region
      %s15 = ssub.s32 24320, 24320
      %16 = vsyncadd [#allocation3], %s15
      %s17 = sshll.u32 [#allocation2], 4
      %s18 = int_to_ptr.vmem [resolvable:$true] %s17
      %23 = dma.hbm_to_vmem [thread:$0]  %s1, 24320, %s18, [#allocation3], 256, 256, 16
    $region9: #{encoder_f_forward.1} parent=1 // pred_fallthru
      _
    // Predicated region
    $region10: #{encoder_f_forward.1} parent=1 // pred_check
      _
    $region11: #{encoder_f_forward.1} parent=1 // pred_check_branch
      %25 = sbr.rel (0) target = $region13
    $region12: #{encoder_f_forward.1} parent=1 // pred_region
      %s27 = ssub.s32 36864, 36864
      %28 = vsyncadd [#allocation5], %s27
      %s29 = sshll.u32 [#allocation4], 4
      %s30 = int_to_ptr.vmem [resolvable:$true] %s29
      %35 = dma.hbm_to_vmem [thread:$0]  %s2, 36864, %s30, [#allocation5], 128, 128, 8
    $region13: #{encoder_f_forward.1} parent=1 // pred_fallthru
      _
    // Predicated region
    $region14: #{encoder_f_forward.1} parent=1 // pred_check
      _
    $region15: #{encoder_f_forward.1} parent=1 // pred_check_branch
      %37 = sbr.rel (0) target = $region17
    $region16: #{encoder_f_forward.1} parent=1 // pred_region
      %38 = dma.done [#allocation3], 24320
    $region17: #{encoder_f_forward.1} parent=1 // pred_fallthru
      _
    // Predicated region
    $region18: #{encoder_f_forward.1} parent=1 // pred_check
      _
    $region19: #{encoder_f_forward.1} parent=1 // pred_check_branch
      %40 = sbr.rel (0) target = $region21
    $region20: #{encoder_f_forward.1} parent=1 // pred_region
      %41 = dma.done [#allocation5], 36864
    $region21: #{encoder_f_forward.1} parent=1 // pred_fallthru
      _
    %v42 = vld [vmem:[%s0] sm:$0xff]
    %v43 = vld [vmem:[%s0 + $0x8] sm:$0xff]
    %v44 = vld [vmem:[%s0 + $0x10] sm:$0xff]
    %v45 = vld [vmem:[%s0 + $0x18] sm:$0xff]
    %v46 = vld [vmem:[%s0 + $0x20] sm:$0xff]
    %v47 = vld [vmem:[%s0 + $0x28] sm:$0xff]
    %v48 = vld [vmem:[%s0 + $0x30] sm:$0xff]
    %v49 = vld [vmem:[%s0 + $0x38] sm:$0xff]
    %v50 = vld [vmem:[%s0 + $0x40] sm:$0xff]
    %v51 = vrot.slane %v42, 1
    %v52 = vrot.slane %v43, 1
    %v53 = vrot.slane %v44, 1
    %v54 = vrot.slane %v45, 1
    %v55 = vrot.slane %v46, 1
    %v56 = vrot.slane %v47, 1
    %v57 = vrot.slane %v48, 1
    %v58 = vrot.slane %v49, 1
    %v59 = vrot.slane %v50, 1
    %v60 = vlaneseq
    %v61 = vshrl.u32 %v60, 7
    %vm62 = vcmp.lt.s32.totalorder %v61, 7
    %v63 = vsel %vm62, %v58, %v59
    %v64 = vsel %vm62, %v57, %v58
    %v65 = vsel %vm62, %v56, %v57
    %v66 = vsel %vm62, %v55, %v56
    %v67 = vsel %vm62, %v54, %v55
    %v68 = vsel %vm62, %v53, %v54
    %v69 = vsel %vm62, %v52, %v53
    %v70 = vsel %vm62, %v51, %v52
    %v71 = vsel %vm62, %v59, %v51
    %v72 = vrot.slane %v42, 6
    %v73 = vrot.slane %v43, 6
    %v74 = vrot.slane %v44, 6
    %v75 = vrot.slane %v45, 6
    %v76 = vrot.slane %v46, 6
    %v77 = vrot.slane %v47, 6
    %v78 = vrot.slane %v48, 6
    %v79 = vrot.slane %v49, 6
    %v80 = vrot.slane %v50, 6
    %vm81 = vcmp.lt.s32.totalorder %v61, 2
    %v82 = vsel %vm81, %v79, %v80
    %v83 = vsel %vm81, %v78, %v79
    %v84 = vsel %vm81, %v77, %v78
    %v85 = vsel %vm81, %v76, %v77
    %v86 = vsel %vm81, %v75, %v76
    %v87 = vsel %vm81, %v74, %v75
    %v88 = vsel %vm81, %v73, %v74
    %v89 = vsel %vm81, %v72, %v73
    %v90 = vsel %vm81, %v80, %v72
    %v91 = vrot.slane %v42, 7
    %v92 = vrot.slane %v43, 7
    %v93 = vrot.slane %v44, 7
    %v94 = vrot.slane %v45, 7
    %v95 = vrot.slane %v46, 7
    %v96 = vrot.slane %v47, 7
    %v97 = vrot.slane %v48, 7
    %v98 = vrot.slane %v49, 7
    %v99 = vrot.slane %v50, 7
    %vm100 = vcmp.lt.s32.totalorder %v61, 1
    %v101 = vsel %vm100, %v98, %v99
    %v102 = vsel %vm100, %v97, %v98
    %v103 = vsel %vm100, %v96, %v97
    %v104 = vsel %vm100, %v95, %v96
    %v105 = vsel %vm100, %v94, %v95
    %v106 = vsel %vm100, %v93, %v94
    %v107 = vsel %vm100, %v92, %v93
    %v108 = vsel %vm100, %v91, %v92
    %v109 = vsel %vm100, %v99, %v91
    %119 = vrot.lane.b32.xlu0 %v70, 2
    %v120 = vpop.permute.xlu0 %119
    %121 = vrot.lane.b32.xlu0 %v69, 2
    %v122 = vpop.permute.xlu0 %121
    %123 = vrot.lane.b32.xlu0 %v68, 2
    %v124 = vpop.permute.xlu0 %123
    %125 = vrot.lane.b32.xlu0 %v67, 2
    %v126 = vpop.permute.xlu0 %125
    %127 = vrot.lane.b32.xlu0 %v66, 2
    %v128 = vpop.permute.xlu0 %127
    %129 = vrot.lane.b32.xlu0 %v65, 2
    %v130 = vpop.permute.xlu0 %129
    %131 = vrot.lane.b32.xlu0 %v64, 2
    %v132 = vpop.permute.xlu0 %131
    %133 = vrot.lane.b32.xlu0 %v63, 2
    %v134 = vpop.permute.xlu0 %133
    %135 = vrot.lane.b32.xlu0 %v71, 2
    %v136 = vpop.permute.xlu0 %135
    %155 = vrot.lane.b32.xlu0 %v89, 4
    %v156 = vpop.permute.xlu0 %155
    %157 = vrot.lane.b32.xlu0 %v88, 4
    %v158 = vpop.permute.xlu0 %157
    %159 = vrot.lane.b32.xlu0 %v87, 4
    %v160 = vpop.permute.xlu0 %159
    %161 = vrot.lane.b32.xlu0 %v86, 4
    %v162 = vpop.permute.xlu0 %161
    %163 = vrot.lane.b32.xlu0 %v85, 4
    %v164 = vpop.permute.xlu0 %163
    %165 = vrot.lane.b32.xlu0 %v84, 4
    %v166 = vpop.permute.xlu0 %165
    %167 = vrot.lane.b32.xlu0 %v83, 4
    %v168 = vpop.permute.xlu0 %167
    %169 = vrot.lane.b32.xlu0 %v82, 4
    %v170 = vpop.permute.xlu0 %169
    %171 = vrot.lane.b32.xlu0 %v90, 4
    %v172 = vpop.permute.xlu0 %171
    %191 = vrot.lane.b32.xlu0 %v108, 6
    %v192 = vpop.permute.xlu0 %191
    %193 = vrot.lane.b32.xlu0 %v107, 6
    %v194 = vpop.permute.xlu0 %193
    %195 = vrot.lane.b32.xlu0 %v106, 6
    %v196 = vpop.permute.xlu0 %195
    %197 = vrot.lane.b32.xlu0 %v105, 6
    %v198 = vpop.permute.xlu0 %197
    %199 = vrot.lane.b32.xlu0 %v104, 6
    %v200 = vpop.permute.xlu0 %199
    %201 = vrot.lane.b32.xlu0 %v103, 6
    %v202 = vpop.permute.xlu0 %201
    %203 = vrot.lane.b32.xlu0 %v102, 6
    %v204 = vpop.permute.xlu0 %203
    %205 = vrot.lane.b32.xlu0 %v101, 6
    %v206 = vpop.permute.xlu0 %205
    %207 = vrot.lane.b32.xlu0 %v109, 6
    %v208 = vpop.permute.xlu0 %207
    %vm218 = vcmask 15360
    %v219 = vsel %vm218, %v42, %v120
    %v220 = vsel %vm218, %v43, %v122
    %v221 = vsel %vm218, %v44, %v124
    %v222 = vsel %vm218, %v45, %v126
    %v223 = vsel %vm218, %v46, %v128
    %v224 = vsel %vm218, %v47, %v130
    %v225 = vsel %vm218, %v48, %v132
    %v226 = vsel %vm218, %v49, %v134
    %v227 = vsel %vm218, %v50, %v136
    %vm228 = vcmask 31744
    %v229 = vsel %vm228, %v219, %v156
    %v230 = vsel %vm228, %v220, %v158
    %v231 = vsel %vm228, %v221, %v160
    %v232 = vsel %vm228, %v222, %v162
    %v233 = vsel %vm228, %v223, %v164
    %v234 = vsel %vm228, %v224, %v166
    %v235 = vsel %vm228, %v225, %v168
    %v236 = vsel %vm228, %v226, %v170
    %v237 = vsel %vm228, %v227, %v172
    %vm238 = vcmask 48128
    %v239 = vsel %vm238, %v229, %v192
    %v240 = vsel %vm238, %v230, %v194
    %v241 = vsel %vm238, %v231, %v196
    %v242 = vsel %vm238, %v232, %v198
    %v243 = vsel %vm238, %v233, %v200
    %v244 = vsel %vm238, %v234, %v202
    %v245 = vsel %vm238, %v235, %v204
    %v246 = vsel %vm238, %v236, %v206
    %v247 = vsel %vm238, %v237, %v208
    %v248 = vld [vmem:[#allocation2] sm:$0xff]
    %v249 = vld [vmem:[#allocation2 + $0x5d0] ss:$0 sm:$0xff]
    %vm250 = vcmask 64512
    %v252 = vsel %vm250, %v239, 0
    %v255 = vsel %vm250, %v240, 0
    %v258 = vsel %vm250, %v241, 0
    %v261 = vsel %vm250, %v242, 0
    %v264 = vsel %vm250, %v243, 0
    %v267 = vsel %vm250, %v244, 0
    %v270 = vsel %vm250, %v245, 0
    %v273 = vsel %vm250, %v246, 0
    %v276 = vsel %vm250, %v247, 0
    %278 = vmatprep.subr.mxu0 0.0
    %279 = vmatpush1.msra.mxu0 0.0
    %280 = vmatprep.subr.mxu0 0.0
    %281 = vmatpush1.msra.mxu0 0.0
    %282 = vmatprep.subr.mxu0 0.0
    %283 = vmatpush1.msra.mxu0 0.0
    %284 = vmatprep.subr.mxu0 0.0
    %285 = vmatpush1.msra.mxu0 0.0
    %286 = vmatprep.subr.mxu0 0.0
    %287 = vmatpush1.msra.mxu0 0.0
    %288 = vmatprep.subr.mxu0 0.0
    %289 = vmatpush1.msra.mxu0 0.0
    %290 = vmatprep.subr.mxu0 0.0
    %291 = vmatpush1.msra.mxu0 0.0
    %292 = vmatprep.subr.mxu0 0.0
    %293 = vmatpush1.msra.mxu0 0.0
    %294 = vmatprep.subr.mxu0 0.0
    %295 = vmatpush1.msra.mxu0 0.0
    %296 = vmatprep.subr.mxu0 0.0
    %297 = vmatpush1.msra.mxu0 0.0
    %298 = vmatprep.subr.mxu0 0.0
    %299 = vmatpush1.msra.mxu0 0.0
    %300 = vmatprep.subr.mxu0 0.0
    %301 = vmatpush1.msra.mxu0 0.0
    %302 = vmatprep.subr.mxu0 0.0
    %303 = vmatpush1.msra.mxu0 0.0
    %304 = vmatprep.subr.mxu0 0.0
    %305 = vmatpush1.msra.mxu0 0.0
    %306 = vmatprep.subr.mxu0 0.0
    %307 = vmatpush1.msra.mxu0 0.0
    %308 = vmatprep.subr.mxu0 0.0
    %309 = vmatpush1.msra.mxu0 %v248
    %310 = vmatprep.subr.mxu0 0.0
    %311 = vmatpush2.msra.mxu0 0.0
    %312 = vmatprep.subr.mxu0 0.0
    %313 = vmatpush2.msra.mxu0 0.0
    %314 = vmatprep.subr.mxu0 0.0
    %315 = vmatpush2.msra.mxu0 0.0
    %316 = vmatprep.subr.mxu0 0.0
    %317 = vmatpush2.msra.mxu0 0.0
    %318 = vmatprep.subr.mxu0 0.0
    %319 = vmatpush2.msra.mxu0 0.0
    %320 = vmatprep.subr.mxu0 0.0
    %321 = vmatpush2.msra.mxu0 0.0
    %322 = vmatprep.subr.mxu0 0.0
    %323 = vmatpush2.msra.mxu0 0.0
    %324 = vmatprep.subr.mxu0 0.0
    %325 = vmatpush2.msra.mxu0 0.0
    %326 = vmatprep.subr.mxu0 0.0
    %327 = vmatpush2.msra.mxu0 0.0
    %328 = vmatprep.subr.mxu0 0.0
    %329 = vmatpush2.msra.mxu0 0.0
    %330 = vmatprep.subr.mxu0 0.0
    %331 = vmatpush2.msra.mxu0 0.0
    %332 = vmatprep.subr.mxu0 0.0
    %333 = vmatpush2.msra.mxu0 0.0
    %334 = vmatprep.subr.mxu0 0.0
    %335 = vmatpush2.msra.mxu0 0.0
    %336 = vmatprep.subr.mxu0 0.0
    %337 = vmatpush2.msra.mxu0 0.0
    %338 = vmatprep.subr.mxu0 0.0
    %339 = vmatpush2.msra.mxu0 0.0
    %340 = vmatprep.subr.mxu0 0.0
    %341 = vmatpush2.msra.mxu0 0.0
    %342 = vmatprep.mubr.f32.mxu0 0.0
    %343 = vmatmul.mubr.f32.gmra.mxu0 %v252
    %v344 = vpop.f32.mrf.mxu0
    %v345 = vadd.f32 %v249, %v344
    %v346 = vpop.f32.mrf.mxu0
    %347 = vmatprep.mubr.f32.mxu0 0.0
    %348 = vmatmul.mubr.f32.gmra.mxu0 %v255
    %v349 = vpop.f32.mrf.mxu0
    %v350 = vadd.f32 %v249, %v349
    %v351 = vpop.f32.mrf.mxu0
    %352 = vmatprep.mubr.f32.mxu0 0.0
    %353 = vmatmul.mubr.f32.gmra.mxu0 %v258
    %v354 = vpop.f32.mrf.mxu0
    %v355 = vadd.f32 %v249, %v354
    %v356 = vpop.f32.mrf.mxu0
    %357 = vmatprep.mubr.f32.mxu0 0.0
    %358 = vmatmul.mubr.f32.gmra.mxu0 %v261
    %v359 = vpop.f32.mrf.mxu0
    %v360 = vadd.f32 %v249, %v359
    %v361 = vpop.f32.mrf.mxu0
    %362 = vmatprep.mubr.f32.mxu0 0.0
    %363 = vmatmul.mubr.f32.gmra.mxu0 %v264
    %v364 = vpop.f32.mrf.mxu0
    %v365 = vadd.f32 %v249, %v364
    %v366 = vpop.f32.mrf.mxu0
    %367 = vmatprep.mubr.f32.mxu0 0.0
    %368 = vmatmul.mubr.f32.gmra.mxu0 %v267
    %v369 = vpop.f32.mrf.mxu0
    %v370 = vadd.f32 %v249, %v369
    %v371 = vpop.f32.mrf.mxu0
    %372 = vmatprep.mubr.f32.mxu0 0.0
    %373 = vmatmul.mubr.f32.gmra.mxu0 %v270
    %v374 = vpop.f32.mrf.mxu0
    %v375 = vadd.f32 %v249, %v374
    %v376 = vpop.f32.mrf.mxu0
    %377 = vmatprep.mubr.f32.mxu0 0.0
    %378 = vmatmul.mubr.f32.gmra.mxu0 %v273
    %v379 = vpop.f32.mrf.mxu0
    %v380 = vadd.f32 %v249, %v379
    %v381 = vpop.f32.mrf.mxu0
    %382 = vmatprep.mubr.f32.mxu0 0.0
    %383 = vmatmul.mubr.f32.gmra.mxu0 %v276
    %v384 = vpop.f32.mrf.mxu0
    %v385 = vadd.f32 %v249, %v384
    %v386 = vpop.f32.mrf.mxu0
    %387 = vdwg.mxu0
    %v388 = vmax.f32 %v345, 0.0
    %v389 = vmax.f32 %v350, 0.0
    %v390 = vmax.f32 %v355, 0.0
    %v391 = vmax.f32 %v360, 0.0
    %v392 = vmax.f32 %v365, 0.0
    %v393 = vmax.f32 %v370, 0.0
    %v394 = vmax.f32 %v375, 0.0
    %v395 = vmax.f32 %v380, 0.0
    %v396 = vmax.f32 %v385, 0.0
    %vm397 = vcmp.gt.f32.partialorder %v42, 0.5
    %vm398 = vcmp.gt.f32.partialorder %v43, 0.5
    %vm399 = vcmp.gt.f32.partialorder %v44, 0.5
    %vm400 = vcmp.gt.f32.partialorder %v45, 0.5
    %vm401 = vcmp.gt.f32.partialorder %v46, 0.5
    %vm402 = vcmp.gt.f32.partialorder %v47, 0.5
    %vm403 = vcmp.gt.f32.partialorder %v48, 0.5
    %vm404 = vcmp.gt.f32.partialorder %v49, 0.5
    %vm405 = vcmp.gt.f32.partialorder %v50, 0.5
    %v406 = vsel %vm397, 1, 0
    %v407 = vsel %vm398, 1, 0
    %v408 = vsel %vm399, 1, 0
    %v409 = vsel %vm400, 1, 0
    %v410 = vsel %vm401, 1, 0
    %v411 = vsel %vm402, 1, 0
    %v412 = vsel %vm403, 1, 0
    %v413 = vsel %vm404, 1, 0
    %v414 = vsel %vm405, 1, 0
    %415 = vset.pattern.permute.xlu0 2
    %416 = vperm.xlu0 %415, %v406
    %v417 = vpop.permute.xlu0 %416
    %418 = vset.pattern.permute.xlu0 2
    %419 = vperm.xlu0 %418, %v407
    %v420 = vpop.permute.xlu0 %419
    %421 = vset.pattern.permute.xlu0 2
    %422 = vperm.xlu0 %421, %v408
    %v423 = vpop.permute.xlu0 %422
    %424 = vset.pattern.permute.xlu0 2
    %425 = vperm.xlu0 %424, %v409
    %v426 = vpop.permute.xlu0 %425
    %427 = vset.pattern.permute.xlu0 2
    %428 = vperm.xlu0 %427, %v410
    %v429 = vpop.permute.xlu0 %428
    %430 = vset.pattern.permute.xlu0 2
    %431 = vperm.xlu0 %430, %v411
    %v432 = vpop.permute.xlu0 %431
    %433 = vset.pattern.permute.xlu0 2
    %434 = vperm.xlu0 %433, %v412
    %v435 = vpop.permute.xlu0 %434
    %436 = vset.pattern.permute.xlu0 2
    %437 = vperm.xlu0 %436, %v413
    %v438 = vpop.permute.xlu0 %437
    %439 = vset.pattern.permute.xlu0 2
    %440 = vperm.xlu0 %439, %v414
    %v441 = vpop.permute.xlu0 %440
    %vm442 = vcmp.eq.s32.totalorder %v417, 1
    %vm443 = vcmp.eq.s32.totalorder %v420, 1
    %vm444 = vcmp.eq.s32.totalorder %v423, 1
    %vm445 = vcmp.eq.s32.totalorder %v426, 1
    %vm446 = vcmp.eq.s32.totalorder %v429, 1
    %vm447 = vcmp.eq.s32.totalorder %v432, 1
    %vm448 = vcmp.eq.s32.totalorder %v435, 1
    %vm449 = vcmp.eq.s32.totalorder %v438, 1
    %vm450 = vcmp.eq.s32.totalorder %v441, 1
    %v451 = vsel %vm442, %v388, 0.0
    %v452 = vsel %vm443, %v389, 0.0
    %v453 = vsel %vm444, %v390, 0.0
    %v454 = vsel %vm445, %v391, 0.0
    %v455 = vsel %vm446, %v392, 0.0
    %v456 = vsel %vm447, %v393, 0.0
    %v457 = vsel %vm448, %v394, 0.0
    %v458 = vsel %vm449, %v395, 0.0
    %v459 = vsel %vm450, %v396, 0.0
    %v460 = vadd.f32 %v451, %v452
    %v461 = vadd.f32 %v460, %v453
    %v462 = vadd.f32 %v461, %v454
    %v463 = vadd.f32 %v462, %v455
    %v464 = vadd.f32 %v463, %v456
    %v465 = vadd.f32 %v464, %v457
    %v466 = vadd.f32 %v465, %v458
    %v467 = vadd.f32 %v466, %v459
    %v468 = vrot.slane %v467, 4
    %v469 = vadd.f32 %v467, %v468
    %v470 = vrot.slane %v469, 2
    %v471 = vadd.f32 %v469, %v470
    %v472 = vrot.slane %v471, 1
    %v473 = vadd.f32 %v471, %v472
    %v474 = vmul.f32 %v473, 0.02
    %v475 = vsub.f32 %v388, %v474
    %v476 = vsub.f32 %v389, %v474
    %v477 = vsub.f32 %v390, %v474
    %v478 = vsub.f32 %v391, %v474
    %v479 = vsub.f32 %v392, %v474
    %v480 = vsub.f32 %v393, %v474
    %v481 = vsub.f32 %v394, %v474
    %v482 = vsub.f32 %v395, %v474
    %v483 = vsub.f32 %v396, %v474
    %v484 = vsel %vm442, %v475, 0.0
    %v485 = vsel %vm443, %v476, 0.0
    %v486 = vsel %vm444, %v477, 0.0
    %v487 = vsel %vm445, %v478, 0.0
    %v488 = vsel %vm446, %v479, 0.0
    %v489 = vsel %vm447, %v480, 0.0
    %v490 = vsel %vm448, %v481, 0.0
    %v491 = vsel %vm449, %v482, 0.0
    %v492 = vsel %vm450, %v483, 0.0
    %493 = vrot.lane.b32.xlu0 %v484, 64
    %v494 = vpop.permute.xlu0 %493
    %495 = vrot.lane.b32.xlu0 %v485, 64
    %v496 = vpop.permute.xlu0 %495
    %497 = vrot.lane.b32.xlu0 %v486, 64
    %v498 = vpop.permute.xlu0 %497
    %499 = vrot.lane.b32.xlu0 %v487, 64
    %v500 = vpop.permute.xlu0 %499
    %501 = vrot.lane.b32.xlu0 %v488, 64
    %v502 = vpop.permute.xlu0 %501
    %503 = vrot.lane.b32.xlu0 %v489, 64
    %v504 = vpop.permute.xlu0 %503
    %505 = vrot.lane.b32.xlu0 %v490, 64
    %v506 = vpop.permute.xlu0 %505
    %507 = vrot.lane.b32.xlu0 %v491, 64
    %v508 = vpop.permute.xlu0 %507
    %509 = vrot.lane.b32.xlu0 %v492, 64
    %v510 = vpop.permute.xlu0 %509
    %v511 = vmul.f32 %v484, %v484
    %v512 = vmul.f32 %v485, %v485
    %v513 = vmul.f32 %v486, %v486
    %v514 = vmul.f32 %v487, %v487
    %v515 = vmul.f32 %v488, %v488
    %v516 = vmul.f32 %v489, %v489
    %v517 = vmul.f32 %v490, %v490
    %v518 = vmul.f32 %v491, %v491
    %v519 = vmul.f32 %v492, %v492
    %v520 = vadd.f32 %v511, %v512
    %v521 = vadd.f32 %v520, %v513
    %v522 = vadd.f32 %v521, %v514
    %v523 = vadd.f32 %v522, %v515
    %v524 = vadd.f32 %v523, %v516
    %v525 = vadd.f32 %v524, %v517
    %v526 = vadd.f32 %v525, %v518
    %v527 = vadd.f32 %v526, %v519
    %v528 = vrot.slane %v527, 4
    %v529 = vadd.f32 %v527, %v528
    %v530 = vrot.slane %v529, 2
    %v531 = vadd.f32 %v529, %v530
    %v532 = vrot.slane %v531, 1
    %v533 = vadd.f32 %v531, %v532
    %v534 = vmul.f32 %v533, 0.02
    %v535 = vadd.f32 %v534, 1e-05
    %v536 = vmul.f32 %v484, %v494
    %v537 = vmul.f32 %v485, %v496
    %v538 = vmul.f32 %v486, %v498
    %v539 = vmul.f32 %v487, %v500
    %v540 = vmul.f32 %v488, %v502
    %v541 = vmul.f32 %v489, %v504
    %v542 = vmul.f32 %v490, %v506
    %v543 = vmul.f32 %v491, %v508
    %v544 = vmul.f32 %v492, %v510
    %v545 = vadd.f32 %v536, %v537
    %v546 = vadd.f32 %v545, %v538
    %v547 = vadd.f32 %v546, %v539
    %v548 = vadd.f32 %v547, %v540
    %v549 = vadd.f32 %v548, %v541
    %v550 = vadd.f32 %v549, %v542
    %v551 = vadd.f32 %v550, %v543
    %v552 = vadd.f32 %v551, %v544
    %v553 = vrot.slane %v552, 4
    %v554 = vadd.f32 %v552, %v553
    %v555 = vrot.slane %v554, 2
    %v556 = vadd.f32 %v554, %v555
    %v557 = vrot.slane %v556, 1
    %v558 = vadd.f32 %v556, %v557
    %v559 = vmul.f32 %v558, 0.02
    %560 = vrot.lane.b32.xlu0 %v535, 64
    %v561 = vpop.permute.xlu0 %560
    %v562 = vmul.f32 %v535, %v561
    %v563 = vmul.f32 %v559, %v559
    %v564 = vsub.f32 %v562, %v563
    %v565 = vrsqrt.pop %v564
    %v566 = vmul.f32 %v564, %v565
    %vm567 = vcmp.eq.f32.partialorder %v564, inf
    %v568 = vsel %vm567, %v564, %v566
    %vm569 = vcmp.eq.f32.partialorder %v564, 0.0
    %v570 = vand.u32 %v564, 2147483648
    %v571 = vsel %vm569, %v570, %v568
    %v572 = vadd.f32 %v535, %v561
    %v573 = vmul.f32 %v571, 2.0
    %v574 = vadd.f32 %v572, %v573
    %v575 = vmul.f32 %v564, %v574
    %v576 = vrsqrt.pop %v575
    %v577 = vadd.f32 %v561, %v571
    %v578 = vmul.f32 %v577, %v576
    %v579 = vsub.f32 0.0, %v559
    %v580 = vmul.f32 %v579, %v576
    %v581 = vadd.f32 %v535, %v571
    %v582 = vmul.f32 %v581, %v576
    %v583 = vld [vmem:[#allocation2 + $0x5d1] ss:$0 sm:$0xff]
    %v584 = vld [vmem:[#allocation2 + $0x5d2] ss:$0 sm:$0xff]
    %v585 = vld [vmem:[#allocation2 + $0x5d3] ss:$0 sm:$0xff]
    %v586 = vmul.f32 %v583, %v578
    %v587 = vmul.f32 %v584, %v580
    %v588 = vadd.f32 %v586, %v587
    %v589 = vmul.f32 %v583, %v580
    %v590 = vmul.f32 %v584, %v582
    %v591 = vadd.f32 %v589, %v590
    %v592 = vlaneseq
    %v593 = vshrl.u32 %v592, 7
    %v594 = vsub.s32 0, %v593
    %v595 = vrot.slane %v588, %v594
    %v596 = vmul.f32 %v595, %v484
    %v597 = vmul.f32 %v595, %v485
    %v598 = vmul.f32 %v595, %v486
    %v599 = vmul.f32 %v595, %v487
    %v600 = vmul.f32 %v595, %v488
    %v601 = vmul.f32 %v595, %v489
    %v602 = vmul.f32 %v595, %v490
    %v603 = vmul.f32 %v595, %v491
    %v604 = vmul.f32 %v595, %v492
    %v605 = vlaneseq
    %v606 = vshrl.u32 %v605, 7
    %v607 = vsub.s32 0, %v606
    %v608 = vrot.slane %v591, %v607
    %v609 = vmul.f32 %v608, %v494
    %v610 = vmul.f32 %v608, %v496
    %v611 = vmul.f32 %v608, %v498
    %v612 = vmul.f32 %v608, %v500
    %v613 = vmul.f32 %v608, %v502
    %v614 = vmul.f32 %v608, %v504
    %v615 = vmul.f32 %v608, %v506
    %v616 = vmul.f32 %v608, %v508
    %v617 = vmul.f32 %v608, %v510
    %v618 = vadd.f32 %v596, %v609
    %v619 = vadd.f32 %v597, %v610
    %v620 = vadd.f32 %v598, %v611
    %v621 = vadd.f32 %v599, %v612
    %v622 = vadd.f32 %v600, %v613
    %v623 = vadd.f32 %v601, %v614
    %v624 = vadd.f32 %v602, %v615
    %v625 = vadd.f32 %v603, %v616
    %v626 = vadd.f32 %v604, %v617
    %v627 = vadd.f32 %v618, %v585
    %v628 = vadd.f32 %v619, %v585
    %v629 = vadd.f32 %v620, %v585
    %v630 = vadd.f32 %v621, %v585
    %v631 = vadd.f32 %v622, %v585
    %v632 = vadd.f32 %v623, %v585
    %v633 = vadd.f32 %v624, %v585
    %v634 = vadd.f32 %v625, %v585
    %v635 = vadd.f32 %v626, %v585
    %v636 = vld [vmem:[#allocation2 + $0x10] sm:$0xff]
    %v637 = vld [vmem:[#allocation2 + $0x18] sm:$0xff]
    %v638 = vld [vmem:[#allocation2 + $0x20] sm:$0xff]
    %v639 = vld [vmem:[#allocation2 + $0x28] sm:$0xff]
    %v640 = vld [vmem:[#allocation2 + $0x30] sm:$0xff]
    %v641 = vld [vmem:[#allocation2 + $0x38] sm:$0xff]
    %v642 = vld [vmem:[#allocation2 + $0x40] sm:$0xff]
    %v643 = vld [vmem:[#allocation2 + $0x48] sm:$0xff]
    %v644 = vld [vmem:[#allocation2 + $0x50] sm:$0xff]
    %v645 = vld [vmem:[#allocation2 + $0x58] sm:$0xff]
    %v646 = vld [vmem:[#allocation2 + $0x60] sm:$0xff]
    %v647 = vld [vmem:[#allocation2 + $0x68] sm:$0xff]
    %v648 = vld [vmem:[#allocation2 + $0x70] sm:$0xff]
    %v649 = vld [vmem:[#allocation2 + $0x78] sm:$0xff]
    %v650 = vld [vmem:[#allocation2 + $0x80] sm:$0xff]
    %v651 = vld [vmem:[#allocation2 + $0x88] sm:$0xff]
    %v652 = vld [vmem:[#allocation2 + $0x90] sm:$0xff]
    %v653 = vld [vmem:[#allocation2 + $0x98] sm:$0xff]
    %v654 = vld [vmem:[#allocation2 + $0xa0] sm:$0xff]
    %v655 = vld [vmem:[#allocation2 + $0xa8] sm:$0xff]
    %v656 = vld [vmem:[#allocation2 + $0xb0] sm:$0xff]
    %v657 = vld [vmem:[#allocation2 + $0xb8] sm:$0xff]
    %v658 = vld [vmem:[#allocation2 + $0xc0] sm:$0xff]
    %v659 = vld [vmem:[#allocation2 + $0xc8] sm:$0xff]
    %v660 = vld [vmem:[#allocation2 + $0xd0] sm:$0xff]
    %v661 = vld [vmem:[#allocation2 + $0xd8] sm:$0xff]
    %v662 = vld [vmem:[#allocation2 + $0xe0] sm:$0xff]
    %v663 = vld [vmem:[#allocation2 + $0xe8] sm:$0xff]
    %v664 = vld [vmem:[#allocation2 + $0xf0] sm:$0xff]
    %v665 = vld [vmem:[#allocation2 + $0xf8] sm:$0xff]
    %v666 = vld [vmem:[#allocation2 + $0x100] sm:$0xff]
    %v667 = vld [vmem:[#allocation2 + $0x108] sm:$0xff]
    %v668 = vld [vmem:[#allocation2 + $0x110] sm:$0xff]
    %v669 = vld [vmem:[#allocation2 + $0x118] sm:$0xff]
    %v670 = vld [vmem:[#allocation2 + $0x120] sm:$0xff]
    %v671 = vld [vmem:[#allocation2 + $0x128] sm:$0xff]
    %v672 = vld [vmem:[#allocation2 + $0x130] sm:$0xff]
    %v673 = vld [vmem:[#allocation2 + $0x138] sm:$0xff]
    %v674 = vld [vmem:[#allocation2 + $0x140] sm:$0xff]
    %v675 = vld [vmem:[#allocation2 + $0x148] sm:$0xff]
    %v676 = vld [vmem:[#allocation2 + $0x150] sm:$0xff]
    %v677 = vld [vmem:[#allocation2 + $0x158] sm:$0xff]
    %v678 = vld [vmem:[#allocation2 + $0x160] sm:$0xff]
    %v679 = vld [vmem:[#allocation2 + $0x168] sm:$0xff]
    %v680 = vld [vmem:[#allocation2 + $0x170] sm:$0xff]
    %v681 = vld [vmem:[#allocation2 + $0x178] sm:$0xff]
    %v682 = vld [vmem:[#allocation2 + $0x180] sm:$0xff]
    %v683 = vld [vmem:[#allocation2 + $0x188] sm:$0xff]
    %v684 = vld [vmem:[#allocation2 + $0x190] sm:$0xff]
    %v685 = vld [vmem:[#allocation2 + $0x198] sm:$0xff]
    %v686 = vld [vmem:[#allocation2 + $0x1a0] sm:$0xff]
    %v687 = vld [vmem:[#allocation2 + $0x1a8] sm:$0xff]
    %v688 = vld [vmem:[#allocation2 + $0x1b0] sm:$0xff]
    %v689 = vld [vmem:[#allocation2 + $0x1b8] sm:$0xff]
    %v690 = vld [vmem:[#allocation2 + $0x1c0] sm:$0xff]
    %v691 = vld [vmem:[#allocation2 + $0x1c8] sm:$0xff]
    %v692 = vld [vmem:[#allocation2 + $0x1d0] sm:$0xff]
    %v693 = vld [vmem:[#allocation2 + $0x1d8] sm:$0xff]
    %v694 = vld [vmem:[#allocation2 + $0x1e0] sm:$0xff]
    %v695 = vld [vmem:[#allocation2 + $0x1e8] sm:$0xff]
    %v696 = vld [vmem:[#allocation2 + $0x1f0] sm:$0xff]
    %v697 = vld [vmem:[#allocation2 + $0x1f8] sm:$0xff]
    %v698 = vld [vmem:[#allocation2 + $0x200] sm:$0xff]
    %v699 = vld [vmem:[#allocation2 + $0x208] sm:$0xff]
    %v700 = vrot.slane %v627, 1
    %v701 = vrot.slane %v628, 1
    %v702 = vrot.slane %v629, 1
    %v703 = vrot.slane %v630, 1
    %v704 = vrot.slane %v631, 1
    %v705 = vrot.slane %v632, 1
    %v706 = vrot.slane %v633, 1
    %v707 = vrot.slane %v634, 1
    %v708 = vrot.slane %v635, 1
    %v709 = vsel %vm62, %v707, %v708
    %v710 = vsel %vm62, %v706, %v707
    %v711 = vsel %vm62, %v705, %v706
    %v712 = vsel %vm62, %v704, %v705
    %v713 = vsel %vm62, %v703, %v704
    %v714 = vsel %vm62, %v702, %v703
    %v715 = vsel %vm62, %v701, %v702
    %v716 = vsel %vm62, %v700, %v701
    %v717 = vsel %vm62, %v708, %v700
    %718 = vmatprep.subr.mxu0 %v699
    %719 = vmatpush1.msra.mxu0 %v698
    %720 = vmatprep.subr.mxu0 %v697
    %721 = vmatpush1.msra.mxu0 %v696
    %722 = vmatprep.subr.mxu0 %v695
    %723 = vmatpush1.msra.mxu0 %v694
    %724 = vmatprep.subr.mxu0 %v693
    %725 = vmatpush1.msra.mxu0 %v692
    %726 = vmatprep.subr.mxu0 %v691
    %727 = vmatpush1.msra.mxu0 %v690
    %728 = vmatprep.subr.mxu0 %v689
    %729 = vmatpush1.msra.mxu0 %v688
    %730 = vmatprep.subr.mxu0 %v687
    %731 = vmatpush1.msra.mxu0 %v686
    %732 = vmatprep.subr.mxu0 %v685
    %733 = vmatpush1.msra.mxu0 %v684
    %734 = vmatprep.subr.mxu0 %v683
    %735 = vmatpush1.msra.mxu0 %v682
    %736 = vmatprep.subr.mxu0 %v681
    %737 = vmatpush1.msra.mxu0 %v680
    %738 = vmatprep.subr.mxu0 %v679
    %739 = vmatpush1.msra.mxu0 %v678
    %740 = vmatprep.subr.mxu0 %v677
    %741 = vmatpush1.msra.mxu0 %v676
    %742 = vmatprep.subr.mxu0 %v675
    %743 = vmatpush1.msra.mxu0 %v674
    %744 = vmatprep.subr.mxu0 %v673
    %745 = vmatpush1.msra.mxu0 %v672
    %746 = vmatprep.subr.mxu0 %v671
    %747 = vmatpush1.msra.mxu0 %v670
    %748 = vmatprep.subr.mxu0 %v669
    %749 = vmatpush1.msra.mxu0 %v668
    %750 = vmatprep.subr.mxu0 0.0
    %751 = vmatpush2.msra.mxu0 0.0
    %752 = vmatprep.subr.mxu0 0.0
    %753 = vmatpush2.msra.mxu0 0.0
    %754 = vmatprep.subr.mxu0 0.0
    %755 = vmatpush2.msra.mxu0 0.0
    %756 = vmatprep.subr.mxu0 0.0
    %757 = vmatpush2.msra.mxu0 0.0
    %758 = vmatprep.subr.mxu0 0.0
    %759 = vmatpush2.msra.mxu0 0.0
    %760 = vmatprep.subr.mxu0 0.0
    %761 = vmatpush2.msra.mxu0 0.0
    %762 = vmatprep.subr.mxu0 0.0
    %763 = vmatpush2.msra.mxu0 0.0
    %764 = vmatprep.subr.mxu0 0.0
    %765 = vmatpush2.msra.mxu0 0.0
    %766 = vmatprep.subr.mxu0 0.0
    %767 = vmatpush2.msra.mxu0 0.0
    %768 = vmatprep.subr.mxu0 0.0
    %769 = vmatpush2.msra.mxu0 0.0
    %770 = vmatprep.subr.mxu0 0.0
    %771 = vmatpush2.msra.mxu0 0.0
    %772 = vmatprep.subr.mxu0 0.0
    %773 = vmatpush2.msra.mxu0 0.0
    %774 = vmatprep.subr.mxu0 0.0
    %775 = vmatpush2.msra.mxu0 0.0
    %776 = vmatprep.subr.mxu0 0.0
    %777 = vmatpush2.msra.mxu0 0.0
    %778 = vmatprep.subr.mxu0 0.0
    %779 = vmatpush2.msra.mxu0 0.0
    %780 = vmatprep.subr.mxu0 0.0
    %781 = vmatpush2.msra.mxu0 0.0
    %782 = vmatprep.mubr.f32.mxu0 0.0
    %783 = vmatmul.mubr.f32.gmra.mxu0 %v716
    %v784 = vpop.f32.mrf.mxu0
    %v785 = vadd.f32 0.0, %v784
    %v786 = vpop.f32.mrf.mxu0
    %v787 = vadd.f32 0.0, %v786
    %788 = vmatprep.mubr.f32.mxu0 0.0
    %789 = vmatmul.mubr.f32.gmra.mxu0 %v715
    %v790 = vpop.f32.mrf.mxu0
    %v791 = vadd.f32 0.0, %v790
    %v792 = vpop.f32.mrf.mxu0
    %v793 = vadd.f32 0.0, %v792
    %794 = vmatprep.mubr.f32.mxu0 0.0
    %795 = vmatmul.mubr.f32.gmra.mxu0 %v714
    %v796 = vpop.f32.mrf.mxu0
    %v797 = vadd.f32 0.0, %v796
    %v798 = vpop.f32.mrf.mxu0
    %v799 = vadd.f32 0.0, %v798
    %800 = vmatprep.mubr.f32.mxu0 0.0
    %801 = vmatmul.mubr.f32.gmra.mxu0 %v713
    %v802 = vpop.f32.mrf.mxu0
    %v803 = vadd.f32 0.0, %v802
    %v804 = vpop.f32.mrf.mxu0
    %v805 = vadd.f32 0.0, %v804
    %806 = vmatprep.mubr.f32.mxu0 0.0
    %807 = vmatmul.mubr.f32.gmra.mxu0 %v712
    %v808 = vpop.f32.mrf.mxu0
    %v809 = vadd.f32 0.0, %v808
    %v810 = vpop.f32.mrf.mxu0
    %v811 = vadd.f32 0.0, %v810
    %812 = vmatprep.mubr.f32.mxu0 0.0
    %813 = vmatmul.mubr.f32.gmra.mxu0 %v711
    %v814 = vpop.f32.mrf.mxu0
    %v815 = vadd.f32 0.0, %v814
    %v816 = vpop.f32.mrf.mxu0
    %v817 = vadd.f32 0.0, %v816
    %818 = vmatprep.mubr.f32.mxu0 0.0
    %819 = vmatmul.mubr.f32.gmra.mxu0 %v710
    %v820 = vpop.f32.mrf.mxu0
    %v821 = vadd.f32 0.0, %v820
    %v822 = vpop.f32.mrf.mxu0
    %v823 = vadd.f32 0.0, %v822
    %824 = vmatprep.mubr.f32.mxu0 0.0
    %825 = vmatmul.mubr.f32.gmra.mxu0 %v709
    %v826 = vpop.f32.mrf.mxu0
    %v827 = vadd.f32 0.0, %v826
    %v828 = vpop.f32.mrf.mxu0
    %v829 = vadd.f32 0.0, %v828
    %830 = vmatprep.mubr.f32.mxu0 0.0
    %831 = vmatmul.mubr.f32.gmra.mxu0 %v717
    %v832 = vpop.f32.mrf.mxu0
    %v833 = vadd.f32 0.0, %v832
    %v834 = vpop.f32.mrf.mxu0
    %v835 = vadd.f32 0.0, %v834
    %836 = vdwg.mxu0
    %837 = vmatprep.subr.mxu0 %v667
    %838 = vmatpush1.msra.mxu0 %v666
    %839 = vmatprep.subr.mxu0 %v665
    %840 = vmatpush1.msra.mxu0 %v664
    %841 = vmatprep.subr.mxu0 %v663
    %842 = vmatpush1.msra.mxu0 %v662
    %843 = vmatprep.subr.mxu0 %v661
    %844 = vmatpush1.msra.mxu0 %v660
    %845 = vmatprep.subr.mxu0 %v659
    %846 = vmatpush1.msra.mxu0 %v658
    %847 = vmatprep.subr.mxu0 %v657
    %848 = vmatpush1.msra.mxu0 %v656
    %849 = vmatprep.subr.mxu0 %v655
    %850 = vmatpush1.msra.mxu0 %v654
    %851 = vmatprep.subr.mxu0 %v653
    %852 = vmatpush1.msra.mxu0 %v652
    %853 = vmatprep.subr.mxu0 %v651
    %854 = vmatpush1.msra.mxu0 %v650
    %855 = vmatprep.subr.mxu0 %v649
    %856 = vmatpush1.msra.mxu0 %v648
    %857 = vmatprep.subr.mxu0 %v647
    %858 = vmatpush1.msra.mxu0 %v646
    %859 = vmatprep.subr.mxu0 %v645
    %860 = vmatpush1.msra.mxu0 %v644
    %861 = vmatprep.subr.mxu0 %v643
    %862 = vmatpush1.msra.mxu0 %v642
    %863 = vmatprep.subr.mxu0 %v641
    %864 = vmatpush1.msra.mxu0 %v640
    %865 = vmatprep.subr.mxu0 %v639
    %866 = vmatpush1.msra.mxu0 %v638
    %867 = vmatprep.subr.mxu0 %v637
    %868 = vmatpush1.msra.mxu0 %v636
    %869 = vmatprep.subr.mxu0 0.0
    %870 = vmatpush2.msra.mxu0 0.0
    %871 = vmatprep.subr.mxu0 0.0
    %872 = vmatpush2.msra.mxu0 0.0
    %873 = vmatprep.subr.mxu0 0.0
    %874 = vmatpush2.msra.mxu0 0.0
    %875 = vmatprep.subr.mxu0 0.0
    %876 = vmatpush2.msra.mxu0 0.0
    %877 = vmatprep.subr.mxu0 0.0
    %878 = vmatpush2.msra.mxu0 0.0
    %879 = vmatprep.subr.mxu0 0.0
    %880 = vmatpush2.msra.mxu0 0.0
    %881 = vmatprep.subr.mxu0 0.0
    %882 = vmatpush2.msra.mxu0 0.0
    %883 = vmatprep.subr.mxu0 0.0
    %884 = vmatpush2.msra.mxu0 0.0
    %885 = vmatprep.subr.mxu0 0.0
    %886 = vmatpush2.msra.mxu0 0.0
    %887 = vmatprep.subr.mxu0 0.0
    %888 = vmatpush2.msra.mxu0 0.0
    %889 = vmatprep.subr.mxu0 0.0
    %890 = vmatpush2.msra.mxu0 0.0
    %891 = vmatprep.subr.mxu0 0.0
    %892 = vmatpush2.msra.mxu0 0.0
    %893 = vmatprep.subr.mxu0 0.0
    %894 = vmatpush2.msra.mxu0 0.0
    %895 = vmatprep.subr.mxu0 0.0
    %896 = vmatpush2.msra.mxu0 0.0
    %897 = vmatprep.subr.mxu0 0.0
    %898 = vmatpush2.msra.mxu0 0.0
    %899 = vmatprep.subr.mxu0 0.0
    %900 = vmatpush2.msra.mxu0 0.0
    %901 = vmatprep.mubr.f32.mxu0 0.0
    %902 = vmatmul.mubr.f32.gmra.mxu0 %v627
    %v903 = vpop.f32.mrf.mxu0
    %v904 = vadd.f32 %v785, %v903
    %v905 = vpop.f32.mrf.mxu0
    %v906 = vadd.f32 %v787, %v905
    %907 = vmatprep.mubr.f32.mxu0 0.0
    %908 = vmatmul.mubr.f32.gmra.mxu0 %v628
    %v909 = vpop.f32.mrf.mxu0
    %v910 = vadd.f32 %v791, %v909
    %v911 = vpop.f32.mrf.mxu0
    %v912 = vadd.f32 %v793, %v911
    %913 = vmatprep.mubr.f32.mxu0 0.0
    %914 = vmatmul.mubr.f32.gmra.mxu0 %v629
    %v915 = vpop.f32.mrf.mxu0
    %v916 = vadd.f32 %v797, %v915
    %v917 = vpop.f32.mrf.mxu0
    %v918 = vadd.f32 %v799, %v917
    %919 = vmatprep.mubr.f32.mxu0 0.0
    %920 = vmatmul.mubr.f32.gmra.mxu0 %v630
    %v921 = vpop.f32.mrf.mxu0
    %v922 = vadd.f32 %v803, %v921
    %v923 = vpop.f32.mrf.mxu0
    %v924 = vadd.f32 %v805, %v923
    %925 = vmatprep.mubr.f32.mxu0 0.0
    %926 = vmatmul.mubr.f32.gmra.mxu0 %v631
    %v927 = vpop.f32.mrf.mxu0
    %v928 = vadd.f32 %v809, %v927
    %v929 = vpop.f32.mrf.mxu0
    %v930 = vadd.f32 %v811, %v929
    %931 = vmatprep.mubr.f32.mxu0 0.0
    %932 = vmatmul.mubr.f32.gmra.mxu0 %v632
    %v933 = vpop.f32.mrf.mxu0
    %v934 = vadd.f32 %v815, %v933
    %v935 = vpop.f32.mrf.mxu0
    %v936 = vadd.f32 %v817, %v935
    %937 = vmatprep.mubr.f32.mxu0 0.0
    %938 = vmatmul.mubr.f32.gmra.mxu0 %v633
    %v939 = vpop.f32.mrf.mxu0
    %v940 = vadd.f32 %v821, %v939
    %v941 = vpop.f32.mrf.mxu0
    %v942 = vadd.f32 %v823, %v941
    %943 = vmatprep.mubr.f32.mxu0 0.0
    %944 = vmatmul.mubr.f32.gmra.mxu0 %v634
    %v945 = vpop.f32.mrf.mxu0
    %v946 = vadd.f32 %v827, %v945
    %v947 = vpop.f32.mrf.mxu0
    %v948 = vadd.f32 %v829, %v947
    %949 = vmatprep.mubr.f32.mxu0 0.0
    %950 = vmatmul.mubr.f32.gmra.mxu0 %v635
    %v951 = vpop.f32.mrf.mxu0
    %v952 = vadd.f32 %v833, %v951
    %v953 = vpop.f32.mrf.mxu0
    %v954 = vadd.f32 %v835, %v953
    %955 = vdwg.mxu0
    %v956 = vld [vmem:[#allocation2 + $0x210] sm:$0xff]
    %v957 = vld [vmem:[#allocation2 + $0x218] sm:$0xff]
    %v958 = vld [vmem:[#allocation2 + $0x220] sm:$0xff]
    %v959 = vld [vmem:[#allocation2 + $0x228] sm:$0xff]
    %v960 = vld [vmem:[#allocation2 + $0x230] sm:$0xff]
    %v961 = vld [vmem:[#allocation2 + $0x238] sm:$0xff]
    %v962 = vld [vmem:[#allocation2 + $0x240] sm:$0xff]
    %v963 = vld [vmem:[#allocation2 + $0x248] sm:$0xff]
    %v964 = vld [vmem:[#allocation2 + $0x250] sm:$0xff]
    %v965 = vld [vmem:[#allocation2 + $0x258] sm:$0xff]
    %v966 = vld [vmem:[#allocation2 + $0x260] sm:$0xff]
    %v967 = vld [vmem:[#allocation2 + $0x268] sm:$0xff]
    %v968 = vld [vmem:[#allocation2 + $0x270] sm:$0xff]
    %v969 = vld [vmem:[#allocation2 + $0x278] sm:$0xff]
    %v970 = vld [vmem:[#allocation2 + $0x280] sm:$0xff]
    %v971 = vld [vmem:[#allocation2 + $0x288] sm:$0xff]
    %v972 = vld [vmem:[#allocation2 + $0x290] sm:$0xff]
    %v973 = vld [vmem:[#allocation2 + $0x298] sm:$0xff]
    %v974 = vld [vmem:[#allocation2 + $0x2a0] sm:$0xff]
    %v975 = vld [vmem:[#allocation2 + $0x2a8] sm:$0xff]
    %v976 = vld [vmem:[#allocation2 + $0x2b0] sm:$0xff]
    %v977 = vld [vmem:[#allocation2 + $0x2b8] sm:$0xff]
    %v978 = vld [vmem:[#allocation2 + $0x2c0] sm:$0xff]
    %v979 = vld [vmem:[#allocation2 + $0x2c8] sm:$0xff]
    %v980 = vld [vmem:[#allocation2 + $0x2d0] sm:$0xff]
    %v981 = vld [vmem:[#allocation2 + $0x2d8] sm:$0xff]
    %v982 = vld [vmem:[#allocation2 + $0x2e0] sm:$0xff]
    %v983 = vld [vmem:[#allocation2 + $0x2e8] sm:$0xff]
    %v984 = vld [vmem:[#allocation2 + $0x2f0] sm:$0xff]
    %v985 = vld [vmem:[#allocation2 + $0x2f8] sm:$0xff]
    %v986 = vld [vmem:[#allocation2 + $0x300] sm:$0xff]
    %v987 = vld [vmem:[#allocation2 + $0x308] sm:$0xff]
    %v988 = vrot.slane %v627, 6
    %v989 = vrot.slane %v628, 6
    %v990 = vrot.slane %v629, 6
    %v991 = vrot.slane %v630, 6
    %v992 = vrot.slane %v631, 6
    %v993 = vrot.slane %v632, 6
    %v994 = vrot.slane %v633, 6
    %v995 = vrot.slane %v634, 6
    %v996 = vrot.slane %v635, 6
    %v997 = vsel %vm81, %v995, %v996
    %v998 = vsel %vm81, %v994, %v995
    %v999 = vsel %vm81, %v993, %v994
    %v1000 = vsel %vm81, %v992, %v993
    %v1001 = vsel %vm81, %v991, %v992
    %v1002 = vsel %vm81, %v990, %v991
    %v1003 = vsel %vm81, %v989, %v990
    %v1004 = vsel %vm81, %v988, %v989
    %v1005 = vsel %vm81, %v996, %v988
    %1006 = vmatprep.subr.mxu0 %v987
    %1007 = vmatpush1.msra.mxu0 %v986
    %1008 = vmatprep.subr.mxu0 %v985
    %1009 = vmatpush1.msra.mxu0 %v984
    %1010 = vmatprep.subr.mxu0 %v983
    %1011 = vmatpush1.msra.mxu0 %v982
    %1012 = vmatprep.subr.mxu0 %v981
    %1013 = vmatpush1.msra.mxu0 %v980
    %1014 = vmatprep.subr.mxu0 %v979
    %1015 = vmatpush1.msra.mxu0 %v978
    %1016 = vmatprep.subr.mxu0 %v977
    %1017 = vmatpush1.msra.mxu0 %v976
    %1018 = vmatprep.subr.mxu0 %v975
    %1019 = vmatpush1.msra.mxu0 %v974
    %1020 = vmatprep.subr.mxu0 %v973
    %1021 = vmatpush1.msra.mxu0 %v972
    %1022 = vmatprep.subr.mxu0 %v971
    %1023 = vmatpush1.msra.mxu0 %v970
    %1024 = vmatprep.subr.mxu0 %v969
    %1025 = vmatpush1.msra.mxu0 %v968
    %1026 = vmatprep.subr.mxu0 %v967
    %1027 = vmatpush1.msra.mxu0 %v966
    %1028 = vmatprep.subr.mxu0 %v965
    %1029 = vmatpush1.msra.mxu0 %v964
    %1030 = vmatprep.subr.mxu0 %v963
    %1031 = vmatpush1.msra.mxu0 %v962
    %1032 = vmatprep.subr.mxu0 %v961
    %1033 = vmatpush1.msra.mxu0 %v960
    %1034 = vmatprep.subr.mxu0 %v959
    %1035 = vmatpush1.msra.mxu0 %v958
    %1036 = vmatprep.subr.mxu0 %v957
    %1037 = vmatpush1.msra.mxu0 %v956
    %1038 = vmatprep.subr.mxu0 0.0
    %1039 = vmatpush2.msra.mxu0 0.0
    %1040 = vmatprep.subr.mxu0 0.0
    %1041 = vmatpush2.msra.mxu0 0.0
    %1042 = vmatprep.subr.mxu0 0.0
    %1043 = vmatpush2.msra.mxu0 0.0
    %1044 = vmatprep.subr.mxu0 0.0
    %1045 = vmatpush2.msra.mxu0 0.0
    %1046 = vmatprep.subr.mxu0 0.0
    %1047 = vmatpush2.msra.mxu0 0.0
    %1048 = vmatprep.subr.mxu0 0.0
    %1049 = vmatpush2.msra.mxu0 0.0
    %1050 = vmatprep.subr.mxu0 0.0
    %1051 = vmatpush2.msra.mxu0 0.0
    %1052 = vmatprep.subr.mxu0 0.0
    %1053 = vmatpush2.msra.mxu0 0.0
    %1054 = vmatprep.subr.mxu0 0.0
    %1055 = vmatpush2.msra.mxu0 0.0
    %1056 = vmatprep.subr.mxu0 0.0
    %1057 = vmatpush2.msra.mxu0 0.0
    %1058 = vmatprep.subr.mxu0 0.0
    %1059 = vmatpush2.msra.mxu0 0.0
    %1060 = vmatprep.subr.mxu0 0.0
    %1061 = vmatpush2.msra.mxu0 0.0
    %1062 = vmatprep.subr.mxu0 0.0
    %1063 = vmatpush2.msra.mxu0 0.0
    %1064 = vmatprep.subr.mxu0 0.0
    %1065 = vmatpush2.msra.mxu0 0.0
    %1066 = vmatprep.subr.mxu0 0.0
    %1067 = vmatpush2.msra.mxu0 0.0
    %1068 = vmatprep.subr.mxu0 0.0
    %1069 = vmatpush2.msra.mxu0 0.0
    %1070 = vmatprep.mubr.f32.mxu0 0.0
    %1071 = vmatmul.mubr.f32.gmra.mxu0 %v1004
    %v1072 = vpop.f32.mrf.mxu0
    %v1073 = vadd.f32 0.0, %v1072
    %v1074 = vpop.f32.mrf.mxu0
    %v1075 = vadd.f32 0.0, %v1074
    %1076 = vmatprep.mubr.f32.mxu0 0.0
    %1077 = vmatmul.mubr.f32.gmra.mxu0 %v1003
    %v1078 = vpop.f32.mrf.mxu0
    %v1079 = vadd.f32 0.0, %v1078
    %v1080 = vpop.f32.mrf.mxu0
    %v1081 = vadd.f32 0.0, %v1080
    %1082 = vmatprep.mubr.f32.mxu0 0.0
    %1083 = vmatmul.mubr.f32.gmra.mxu0 %v1002
    %v1084 = vpop.f32.mrf.mxu0
    %v1085 = vadd.f32 0.0, %v1084
    %v1086 = vpop.f32.mrf.mxu0
    %v1087 = vadd.f32 0.0, %v1086
    %1088 = vmatprep.mubr.f32.mxu0 0.0
    %1089 = vmatmul.mubr.f32.gmra.mxu0 %v1001
    %v1090 = vpop.f32.mrf.mxu0
    %v1091 = vadd.f32 0.0, %v1090
    %v1092 = vpop.f32.mrf.mxu0
    %v1093 = vadd.f32 0.0, %v1092
    %1094 = vmatprep.mubr.f32.mxu0 0.0
    %1095 = vmatmul.mubr.f32.gmra.mxu0 %v1000
    %v1096 = vpop.f32.mrf.mxu0
    %v1097 = vadd.f32 0.0, %v1096
    %v1098 = vpop.f32.mrf.mxu0
    %v1099 = vadd.f32 0.0, %v1098
    %1100 = vmatprep.mubr.f32.mxu0 0.0
    %1101 = vmatmul.mubr.f32.gmra.mxu0 %v999
    %v1102 = vpop.f32.mrf.mxu0
    %v1103 = vadd.f32 0.0, %v1102
    %v1104 = vpop.f32.mrf.mxu0
    %v1105 = vadd.f32 0.0, %v1104
    %1106 = vmatprep.mubr.f32.mxu0 0.0
    %1107 = vmatmul.mubr.f32.gmra.mxu0 %v998
    %v1108 = vpop.f32.mrf.mxu0
    %v1109 = vadd.f32 0.0, %v1108
    %v1110 = vpop.f32.mrf.mxu0
    %v1111 = vadd.f32 0.0, %v1110
    %1112 = vmatprep.mubr.f32.mxu0 0.0
    %1113 = vmatmul.mubr.f32.gmra.mxu0 %v997
    %v1114 = vpop.f32.mrf.mxu0
    %v1115 = vadd.f32 0.0, %v1114
    %v1116 = vpop.f32.mrf.mxu0
    %v1117 = vadd.f32 0.0, %v1116
    %1118 = vmatprep.mubr.f32.mxu0 0.0
    %1119 = vmatmul.mubr.f32.gmra.mxu0 %v1005
    %v1120 = vpop.f32.mrf.mxu0
    %v1121 = vadd.f32 0.0, %v1120
    %v1122 = vpop.f32.mrf.mxu0
    %v1123 = vadd.f32 0.0, %v1122
    %1124 = vdwg.mxu0
    %v1125 = vadd.f32 %v904, %v1073
    %v1126 = vadd.f32 %v906, %v1075
    %v1127 = vadd.f32 %v910, %v1079
    %v1128 = vadd.f32 %v912, %v1081
    %v1129 = vadd.f32 %v916, %v1085
    %v1130 = vadd.f32 %v918, %v1087
    %v1131 = vadd.f32 %v922, %v1091
    %v1132 = vadd.f32 %v924, %v1093
    %v1133 = vadd.f32 %v928, %v1097
    %v1134 = vadd.f32 %v930, %v1099
    %v1135 = vadd.f32 %v934, %v1103
    %v1136 = vadd.f32 %v936, %v1105
    %v1137 = vadd.f32 %v940, %v1109
    %v1138 = vadd.f32 %v942, %v1111
    %v1139 = vadd.f32 %v946, %v1115
    %v1140 = vadd.f32 %v948, %v1117
    %v1141 = vadd.f32 %v952, %v1121
    %v1142 = vadd.f32 %v954, %v1123
    %v1143 = vld [vmem:[#allocation2 + $0x310] sm:$0xff]
    %v1144 = vld [vmem:[#allocation2 + $0x318] sm:$0xff]
    %v1145 = vld [vmem:[#allocation2 + $0x320] sm:$0xff]
    %v1146 = vld [vmem:[#allocation2 + $0x328] sm:$0xff]
    %v1147 = vld [vmem:[#allocation2 + $0x330] sm:$0xff]
    %v1148 = vld [vmem:[#allocation2 + $0x338] sm:$0xff]
    %v1149 = vld [vmem:[#allocation2 + $0x340] sm:$0xff]
    %v1150 = vld [vmem:[#allocation2 + $0x348] sm:$0xff]
    %v1151 = vld [vmem:[#allocation2 + $0x350] sm:$0xff]
    %v1152 = vld [vmem:[#allocation2 + $0x358] sm:$0xff]
    %v1153 = vld [vmem:[#allocation2 + $0x360] sm:$0xff]
    %v1154 = vld [vmem:[#allocation2 + $0x368] sm:$0xff]
    %v1155 = vld [vmem:[#allocation2 + $0x370] sm:$0xff]
    %v1156 = vld [vmem:[#allocation2 + $0x378] sm:$0xff]
    %v1157 = vld [vmem:[#allocation2 + $0x380] sm:$0xff]
    %v1158 = vld [vmem:[#allocation2 + $0x388] sm:$0xff]
    %v1159 = vld [vmem:[#allocation2 + $0x390] sm:$0xff]
    %v1160 = vld [vmem:[#allocation2 + $0x398] sm:$0xff]
    %v1161 = vld [vmem:[#allocation2 + $0x3a0] sm:$0xff]
    %v1162 = vld [vmem:[#allocation2 + $0x3a8] sm:$0xff]
    %v1163 = vld [vmem:[#allocation2 + $0x3b0] sm:$0xff]
    %v1164 = vld [vmem:[#allocation2 + $0x3b8] sm:$0xff]
    %v1165 = vld [vmem:[#allocation2 + $0x3c0] sm:$0xff]
    %v1166 = vld [vmem:[#allocation2 + $0x3c8] sm:$0xff]
    %v1167 = vld [vmem:[#allocation2 + $0x3d0] sm:$0xff]
    %v1168 = vld [vmem:[#allocation2 + $0x3d8] sm:$0xff]
    %v1169 = vld [vmem:[#allocation2 + $0x3e0] sm:$0xff]
    %v1170 = vld [vmem:[#allocation2 + $0x3e8] sm:$0xff]
    %v1171 = vld [vmem:[#allocation2 + $0x3f0] sm:$0xff]
    %v1172 = vld [vmem:[#allocation2 + $0x3f8] sm:$0xff]
    %v1173 = vld [vmem:[#allocation2 + $0x400] sm:$0xff]
    %v1174 = vld [vmem:[#allocation2 + $0x408] sm:$0xff]
    %v1175 = vrot.slane %v627, 7
    %v1176 = vrot.slane %v628, 7
    %v1177 = vrot.slane %v629, 7
    %v1178 = vrot.slane %v630, 7
    %v1179 = vrot.slane %v631, 7
    %v1180 = vrot.slane %v632, 7
    %v1181 = vrot.slane %v633, 7
    %v1182 = vrot.slane %v634, 7
    %v1183 = vrot.slane %v635, 7
    %v1184 = vsel %vm100, %v1182, %v1183
    %v1185 = vsel %vm100, %v1181, %v1182
    %v1186 = vsel %vm100, %v1180, %v1181
    %v1187 = vsel %vm100, %v1179, %v1180
    %v1188 = vsel %vm100, %v1178, %v1179
    %v1189 = vsel %vm100, %v1177, %v1178
    %v1190 = vsel %vm100, %v1176, %v1177
    %v1191 = vsel %vm100, %v1175, %v1176
    %v1192 = vsel %vm100, %v1183, %v1175
    %1193 = vmatprep.subr.mxu0 %v1174
    %1194 = vmatpush1.msra.mxu0 %v1173
    %1195 = vmatprep.subr.mxu0 %v1172
    %1196 = vmatpush1.msra.mxu0 %v1171
    %1197 = vmatprep.subr.mxu0 %v1170
    %1198 = vmatpush1.msra.mxu0 %v1169
    %1199 = vmatprep.subr.mxu0 %v1168
    %1200 = vmatpush1.msra.mxu0 %v1167
    %1201 = vmatprep.subr.mxu0 %v1166
    %1202 = vmatpush1.msra.mxu0 %v1165
    %1203 = vmatprep.subr.mxu0 %v1164
    %1204 = vmatpush1.msra.mxu0 %v1163
    %1205 = vmatprep.subr.mxu0 %v1162
    %1206 = vmatpush1.msra.mxu0 %v1161
    %1207 = vmatprep.subr.mxu0 %v1160
    %1208 = vmatpush1.msra.mxu0 %v1159
    %1209 = vmatprep.subr.mxu0 %v1158
    %1210 = vmatpush1.msra.mxu0 %v1157
    %1211 = vmatprep.subr.mxu0 %v1156
    %1212 = vmatpush1.msra.mxu0 %v1155
    %1213 = vmatprep.subr.mxu0 %v1154
    %1214 = vmatpush1.msra.mxu0 %v1153
    %1215 = vmatprep.subr.mxu0 %v1152
    %1216 = vmatpush1.msra.mxu0 %v1151
    %1217 = vmatprep.subr.mxu0 %v1150
    %1218 = vmatpush1.msra.mxu0 %v1149
    %1219 = vmatprep.subr.mxu0 %v1148
    %1220 = vmatpush1.msra.mxu0 %v1147
    %1221 = vmatprep.subr.mxu0 %v1146
    %1222 = vmatpush1.msra.mxu0 %v1145
    %1223 = vmatprep.subr.mxu0 %v1144
    %1224 = vmatpush1.msra.mxu0 %v1143
    %1225 = vmatprep.subr.mxu0 0.0
    %1226 = vmatpush2.msra.mxu0 0.0
    %1227 = vmatprep.subr.mxu0 0.0
    %1228 = vmatpush2.msra.mxu0 0.0
    %1229 = vmatprep.subr.mxu0 0.0
    %1230 = vmatpush2.msra.mxu0 0.0
    %1231 = vmatprep.subr.mxu0 0.0
    %1232 = vmatpush2.msra.mxu0 0.0
    %1233 = vmatprep.subr.mxu0 0.0
    %1234 = vmatpush2.msra.mxu0 0.0
    %1235 = vmatprep.subr.mxu0 0.0
    %1236 = vmatpush2.msra.mxu0 0.0
    %1237 = vmatprep.subr.mxu0 0.0
    %1238 = vmatpush2.msra.mxu0 0.0
    %1239 = vmatprep.subr.mxu0 0.0
    %1240 = vmatpush2.msra.mxu0 0.0
    %1241 = vmatprep.subr.mxu0 0.0
    %1242 = vmatpush2.msra.mxu0 0.0
    %1243 = vmatprep.subr.mxu0 0.0
    %1244 = vmatpush2.msra.mxu0 0.0
    %1245 = vmatprep.subr.mxu0 0.0
    %1246 = vmatpush2.msra.mxu0 0.0
    %1247 = vmatprep.subr.mxu0 0.0
    %1248 = vmatpush2.msra.mxu0 0.0
    %1249 = vmatprep.subr.mxu0 0.0
    %1250 = vmatpush2.msra.mxu0 0.0
    %1251 = vmatprep.subr.mxu0 0.0
    %1252 = vmatpush2.msra.mxu0 0.0
    %1253 = vmatprep.subr.mxu0 0.0
    %1254 = vmatpush2.msra.mxu0 0.0
    %1255 = vmatprep.subr.mxu0 0.0
    %1256 = vmatpush2.msra.mxu0 0.0
    %1257 = vmatprep.mubr.f32.mxu0 0.0
    %1258 = vmatmul.mubr.f32.gmra.mxu0 %v1191
    %v1259 = vpop.f32.mrf.mxu0
    %v1260 = vadd.f32 0.0, %v1259
    %v1261 = vpop.f32.mrf.mxu0
    %v1262 = vadd.f32 0.0, %v1261
    %1263 = vmatprep.mubr.f32.mxu0 0.0
    %1264 = vmatmul.mubr.f32.gmra.mxu0 %v1190
    %v1265 = vpop.f32.mrf.mxu0
    %v1266 = vadd.f32 0.0, %v1265
    %v1267 = vpop.f32.mrf.mxu0
    %v1268 = vadd.f32 0.0, %v1267
    %1269 = vmatprep.mubr.f32.mxu0 0.0
    %1270 = vmatmul.mubr.f32.gmra.mxu0 %v1189
    %v1271 = vpop.f32.mrf.mxu0
    %v1272 = vadd.f32 0.0, %v1271
    %v1273 = vpop.f32.mrf.mxu0
    %v1274 = vadd.f32 0.0, %v1273
    %1275 = vmatprep.mubr.f32.mxu0 0.0
    %1276 = vmatmul.mubr.f32.gmra.mxu0 %v1188
    %v1277 = vpop.f32.mrf.mxu0
    %v1278 = vadd.f32 0.0, %v1277
    %v1279 = vpop.f32.mrf.mxu0
    %v1280 = vadd.f32 0.0, %v1279
    %1281 = vmatprep.mubr.f32.mxu0 0.0
    %1282 = vmatmul.mubr.f32.gmra.mxu0 %v1187
    %v1283 = vpop.f32.mrf.mxu0
    %v1284 = vadd.f32 0.0, %v1283
    %v1285 = vpop.f32.mrf.mxu0
    %v1286 = vadd.f32 0.0, %v1285
    %1287 = vmatprep.mubr.f32.mxu0 0.0
    %1288 = vmatmul.mubr.f32.gmra.mxu0 %v1186
    %v1289 = vpop.f32.mrf.mxu0
    %v1290 = vadd.f32 0.0, %v1289
    %v1291 = vpop.f32.mrf.mxu0
    %v1292 = vadd.f32 0.0, %v1291
    %1293 = vmatprep.mubr.f32.mxu0 0.0
    %1294 = vmatmul.mubr.f32.gmra.mxu0 %v1185
    %v1295 = vpop.f32.mrf.mxu0
    %v1296 = vadd.f32 0.0, %v1295
    %v1297 = vpop.f32.mrf.mxu0
    %v1298 = vadd.f32 0.0, %v1297
    %1299 = vmatprep.mubr.f32.mxu0 0.0
    %1300 = vmatmul.mubr.f32.gmra.mxu0 %v1184
    %v1301 = vpop.f32.mrf.mxu0
    %v1302 = vadd.f32 0.0, %v1301
    %v1303 = vpop.f32.mrf.mxu0
    %v1304 = vadd.f32 0.0, %v1303
    %1305 = vmatprep.mubr.f32.mxu0 0.0
    %1306 = vmatmul.mubr.f32.gmra.mxu0 %v1192
    %v1307 = vpop.f32.mrf.mxu0
    %v1308 = vadd.f32 0.0, %v1307
    %v1309 = vpop.f32.mrf.mxu0
    %v1310 = vadd.f32 0.0, %v1309
    %1311 = vdwg.mxu0
    %v1312 = vadd.f32 %v1125, %v1260
    %v1313 = vadd.f32 %v1126, %v1262
    %v1314 = vadd.f32 %v1127, %v1266
    %v1315 = vadd.f32 %v1128, %v1268
    %v1316 = vadd.f32 %v1129, %v1272
    %v1317 = vadd.f32 %v1130, %v1274
    %v1318 = vadd.f32 %v1131, %v1278
    %v1319 = vadd.f32 %v1132, %v1280
    %v1320 = vadd.f32 %v1133, %v1284
    %v1321 = vadd.f32 %v1134, %v1286
    %v1322 = vadd.f32 %v1135, %v1290
    %v1323 = vadd.f32 %v1136, %v1292
    %v1324 = vadd.f32 %v1137, %v1296
    %v1325 = vadd.f32 %v1138, %v1298
    %v1326 = vadd.f32 %v1139, %v1302
    %v1327 = vadd.f32 %v1140, %v1304
    %v1328 = vadd.f32 %v1141, %v1308
    %v1329 = vadd.f32 %v1142, %v1310
    %s1330 = scalar_lea.vmem [#allocation2], 1492
    %v1331 = vld [vmem:[%s1330] ss:$8 sm:$0x3]
    %v1333 = vlaneseq
    %v1334 = vshrl.u32 %v1333, 7
    %v1335 = vsub.s32 0, %v1334
    %v1336 = vrot.slane %v1331, %v1335
    %v1337 = vlaneseq
    %v1338 = vshrl.u32 %v1337, 7
    %v1339 = vsub.s32 1, %v1338
    %v1340 = vrot.slane %v1331, %v1339
    %v1343 = vadd.f32 %v1312, %v1336
    %v1344 = vadd.f32 %v1313, %v1340
    %v1345 = vadd.f32 %v1314, %v1336
    %v1346 = vadd.f32 %v1315, %v1340
    %v1347 = vadd.f32 %v1316, %v1336
    %v1348 = vadd.f32 %v1317, %v1340
    %v1349 = vadd.f32 %v1318, %v1336
    %v1350 = vadd.f32 %v1319, %v1340
    %v1351 = vadd.f32 %v1320, %v1336
    %v1352 = vadd.f32 %v1321, %v1340
    %v1353 = vadd.f32 %v1322, %v1336
    %v1354 = vadd.f32 %v1323, %v1340
    %v1355 = vadd.f32 %v1324, %v1336
    %v1356 = vadd.f32 %v1325, %v1340
    %v1357 = vadd.f32 %v1326, %v1336
    %v1358 = vadd.f32 %v1327, %v1340
    %v1359 = vadd.f32 %v1328, %v1336
    %v1360 = vadd.f32 %v1329, %v1340
    %v1361 = vmax.f32 %v1343, 0.0
    %v1362 = vmax.f32 %v1344, 0.0
    %v1363 = vmax.f32 %v1345, 0.0
    %v1364 = vmax.f32 %v1346, 0.0
    %v1365 = vmax.f32 %v1347, 0.0
    %v1366 = vmax.f32 %v1348, 0.0
    %v1367 = vmax.f32 %v1349, 0.0
    %v1368 = vmax.f32 %v1350, 0.0
    %v1369 = vmax.f32 %v1351, 0.0
    %v1370 = vmax.f32 %v1352, 0.0
    %v1371 = vmax.f32 %v1353, 0.0
    %v1372 = vmax.f32 %v1354, 0.0
    %v1373 = vmax.f32 %v1355, 0.0
    %v1374 = vmax.f32 %v1356, 0.0
    %v1375 = vmax.f32 %v1357, 0.0
    %v1376 = vmax.f32 %v1358, 0.0
    %v1377 = vmax.f32 %v1359, 0.0
    %v1378 = vmax.f32 %v1360, 0.0
    %1379 = vset.pattern.permute.xlu0 3
    %1380 = vperm.xlu0 %1379, %v406
    %v1381 = vpop.permute.xlu0 %1380
    %1382 = vset.pattern.permute.xlu0 3
    %1383 = vperm.xlu0 %1382, %v407
    %v1384 = vpop.permute.xlu0 %1383
    %1385 = vset.pattern.permute.xlu0 3
    %1386 = vperm.xlu0 %1385, %v408
    %v1387 = vpop.permute.xlu0 %1386
    %1388 = vset.pattern.permute.xlu0 3
    %1389 = vperm.xlu0 %1388, %v409
    %v1390 = vpop.permute.xlu0 %1389
    %1391 = vset.pattern.permute.xlu0 3
    %1392 = vperm.xlu0 %1391, %v410
    %v1393 = vpop.permute.xlu0 %1392
    %1394 = vset.pattern.permute.xlu0 3
    %1395 = vperm.xlu0 %1394, %v411
    %v1396 = vpop.permute.xlu0 %1395
    %1397 = vset.pattern.permute.xlu0 3
    %1398 = vperm.xlu0 %1397, %v412
    %v1399 = vpop.permute.xlu0 %1398
    %1400 = vset.pattern.permute.xlu0 3
    %1401 = vperm.xlu0 %1400, %v413
    %v1402 = vpop.permute.xlu0 %1401
    %1403 = vset.pattern.permute.xlu0 3
    %1404 = vperm.xlu0 %1403, %v414
    %v1405 = vpop.permute.xlu0 %1404
    %vm1406 = vcmp.eq.s32.totalorder %v1381, 1
    %vm1407 = vcmp.eq.s32.totalorder %v1384, 1
    %vm1408 = vcmp.eq.s32.totalorder %v1387, 1
    %vm1409 = vcmp.eq.s32.totalorder %v1390, 1
    %vm1410 = vcmp.eq.s32.totalorder %v1393, 1
    %vm1411 = vcmp.eq.s32.totalorder %v1396, 1
    %vm1412 = vcmp.eq.s32.totalorder %v1399, 1
    %vm1413 = vcmp.eq.s32.totalorder %v1402, 1
    %vm1414 = vcmp.eq.s32.totalorder %v1405, 1
    %v1415 = vsel %vm1406, %v1361, 0.0
    %v1416 = vsel %vm1406, %v1362, 0.0
    %v1417 = vsel %vm1407, %v1363, 0.0
    %v1418 = vsel %vm1407, %v1364, 0.0
    %v1419 = vsel %vm1408, %v1365, 0.0
    %v1420 = vsel %vm1408, %v1366, 0.0
    %v1421 = vsel %vm1409, %v1367, 0.0
    %v1422 = vsel %vm1409, %v1368, 0.0
    %v1423 = vsel %vm1410, %v1369, 0.0
    %v1424 = vsel %vm1410, %v1370, 0.0
    %v1425 = vsel %vm1411, %v1371, 0.0
    %v1426 = vsel %vm1411, %v1372, 0.0
    %v1427 = vsel %vm1412, %v1373, 0.0
    %v1428 = vsel %vm1412, %v1374, 0.0
    %v1429 = vsel %vm1413, %v1375, 0.0
    %v1430 = vsel %vm1413, %v1376, 0.0
    %v1431 = vsel %vm1414, %v1377, 0.0
    %v1432 = vsel %vm1414, %v1378, 0.0
    %v1433 = vadd.f32 %v1415, %v1417
    %v1434 = vadd.f32 %v1433, %v1419
    %v1435 = vadd.f32 %v1434, %v1421
    %v1436 = vadd.f32 %v1435, %v1423
    %v1437 = vadd.f32 %v1436, %v1425
    %v1438 = vadd.f32 %v1437, %v1427
    %v1439 = vadd.f32 %v1438, %v1429
    %v1440 = vadd.f32 %v1439, %v1431
    %v1441 = vrot.slane %v1440, 4
    %v1442 = vadd.f32 %v1440, %v1441
    %v1443 = vrot.slane %v1442, 2
    %v1444 = vadd.f32 %v1442, %v1443
    %v1445 = vrot.slane %v1444, 1
    %v1446 = vadd.f32 %v1444, %v1445
    %v1447 = vadd.f32 %v1416, %v1418
    %v1448 = vadd.f32 %v1447, %v1420
    %v1449 = vadd.f32 %v1448, %v1422
    %v1450 = vadd.f32 %v1449, %v1424
    %v1451 = vadd.f32 %v1450, %v1426
    %v1452 = vadd.f32 %v1451, %v1428
    %v1453 = vadd.f32 %v1452, %v1430
    %v1454 = vadd.f32 %v1453, %v1432
    %v1455 = vrot.slane %v1454, 4
    %v1456 = vadd.f32 %v1454, %v1455
    %v1457 = vrot.slane %v1456, 2
    %v1458 = vadd.f32 %v1456, %v1457
    %v1459 = vrot.slane %v1458, 1
    %v1460 = vadd.f32 %v1458, %v1459
    %v1461 = vmul.f32 %v1446, 0.03125
    %v1462 = vmul.f32 %v1460, 0.03125
    %v1463 = vsub.f32 %v1361, %v1461
    %v1464 = vsub.f32 %v1362, %v1462
    %v1465 = vsub.f32 %v1363, %v1461
    %v1466 = vsub.f32 %v1364, %v1462
    %v1467 = vsub.f32 %v1365, %v1461
    %v1468 = vsub.f32 %v1366, %v1462
    %v1469 = vsub.f32 %v1367, %v1461
    %v1470 = vsub.f32 %v1368, %v1462
    %v1471 = vsub.f32 %v1369, %v1461
    %v1472 = vsub.f32 %v1370, %v1462
    %v1473 = vsub.f32 %v1371, %v1461
    %v1474 = vsub.f32 %v1372, %v1462
    %v1475 = vsub.f32 %v1373, %v1461
    %v1476 = vsub.f32 %v1374, %v1462
    %v1477 = vsub.f32 %v1375, %v1461
    %v1478 = vsub.f32 %v1376, %v1462
    %v1479 = vsub.f32 %v1377, %v1461
    %v1480 = vsub.f32 %v1378, %v1462
    %v1481 = vsel %vm1406, %v1463, 0.0
    %v1482 = vsel %vm1406, %v1464, 0.0
    %v1483 = vsel %vm1407, %v1465, 0.0
    %v1484 = vsel %vm1407, %v1466, 0.0
    %v1485 = vsel %vm1408, %v1467, 0.0
    %v1486 = vsel %vm1408, %v1468, 0.0
    %v1487 = vsel %vm1409, %v1469, 0.0
    %v1488 = vsel %vm1409, %v1470, 0.0
    %v1489 = vsel %vm1410, %v1471, 0.0
    %v1490 = vsel %vm1410, %v1472, 0.0
    %v1491 = vsel %vm1411, %v1473, 0.0
    %v1492 = vsel %vm1411, %v1474, 0.0
    %v1493 = vsel %vm1412, %v1475, 0.0
    %v1494 = vsel %vm1412, %v1476, 0.0
    %v1495 = vsel %vm1413, %v1477, 0.0
    %v1496 = vsel %vm1413, %v1478, 0.0
    %v1497 = vsel %vm1414, %v1479, 0.0
    %v1498 = vsel %vm1414, %v1480, 0.0
    %v1499 = vmul.f32 %v1481, %v1481
    %v1500 = vmul.f32 %v1482, %v1482
    %v1501 = vmul.f32 %v1483, %v1483
    %v1502 = vmul.f32 %v1484, %v1484
    %v1503 = vmul.f32 %v1485, %v1485
    %v1504 = vmul.f32 %v1486, %v1486
    %v1505 = vmul.f32 %v1487, %v1487
    %v1506 = vmul.f32 %v1488, %v1488
    %v1507 = vmul.f32 %v1489, %v1489
    %v1508 = vmul.f32 %v1490, %v1490
    %v1509 = vmul.f32 %v1491, %v1491
    %v1510 = vmul.f32 %v1492, %v1492
    %v1511 = vmul.f32 %v1493, %v1493
    %v1512 = vmul.f32 %v1494, %v1494
    %v1513 = vmul.f32 %v1495, %v1495
    %v1514 = vmul.f32 %v1496, %v1496
    %v1515 = vmul.f32 %v1497, %v1497
    %v1516 = vmul.f32 %v1498, %v1498
    %v1517 = vadd.f32 %v1499, %v1501
    %v1518 = vadd.f32 %v1517, %v1503
    %v1519 = vadd.f32 %v1518, %v1505
    %v1520 = vadd.f32 %v1519, %v1507
    %v1521 = vadd.f32 %v1520, %v1509
    %v1522 = vadd.f32 %v1521, %v1511
    %v1523 = vadd.f32 %v1522, %v1513
    %v1524 = vadd.f32 %v1523, %v1515
    %v1525 = vrot.slane %v1524, 4
    %v1526 = vadd.f32 %v1524, %v1525
    %v1527 = vrot.slane %v1526, 2
    %v1528 = vadd.f32 %v1526, %v1527
    %v1529 = vrot.slane %v1528, 1
    %v1530 = vadd.f32 %v1528, %v1529
    %v1531 = vadd.f32 %v1500, %v1502
    %v1532 = vadd.f32 %v1531, %v1504
    %v1533 = vadd.f32 %v1532, %v1506
    %v1534 = vadd.f32 %v1533, %v1508
    %v1535 = vadd.f32 %v1534, %v1510
    %v1536 = vadd.f32 %v1535, %v1512
    %v1537 = vadd.f32 %v1536, %v1514
    %v1538 = vadd.f32 %v1537, %v1516
    %v1539 = vrot.slane %v1538, 4
    %v1540 = vadd.f32 %v1538, %v1539
    %v1541 = vrot.slane %v1540, 2
    %v1542 = vadd.f32 %v1540, %v1541
    %v1543 = vrot.slane %v1542, 1
    %v1544 = vadd.f32 %v1542, %v1543
    %v1545 = vmul.f32 %v1530, 0.03125
    %v1546 = vmul.f32 %v1544, 0.03125
    %v1547 = vadd.f32 %v1545, 1e-05
    %v1548 = vadd.f32 %v1546, 1e-05
    %v1549 = vmul.f32 %v1481, %v1482
    %v1550 = vmul.f32 %v1483, %v1484
    %v1551 = vmul.f32 %v1485, %v1486
    %v1552 = vmul.f32 %v1487, %v1488
    %v1553 = vmul.f32 %v1489, %v1490
    %v1554 = vmul.f32 %v1491, %v1492
    %v1555 = vmul.f32 %v1493, %v1494
    %v1556 = vmul.f32 %v1495, %v1496
    %v1557 = vmul.f32 %v1497, %v1498
    %v1558 = vadd.f32 %v1549, %v1550
    %v1559 = vadd.f32 %v1558, %v1551
    %v1560 = vadd.f32 %v1559, %v1552
    %v1561 = vadd.f32 %v1560, %v1553
    %v1562 = vadd.f32 %v1561, %v1554
    %v1563 = vadd.f32 %v1562, %v1555
    %v1564 = vadd.f32 %v1563, %v1556
    %v1565 = vadd.f32 %v1564, %v1557
    %v1566 = vrot.slane %v1565, 4
    %v1567 = vadd.f32 %v1565, %v1566
    %v1568 = vrot.slane %v1567, 2
    %v1569 = vadd.f32 %v1567, %v1568
    %v1570 = vrot.slane %v1569, 1
    %v1571 = vadd.f32 %v1569, %v1570
    %v1572 = vmul.f32 %v1571, 0.03125
    %v1573 = vmul.f32 %v1547, %v1548
    %v1574 = vmul.f32 %v1572, %v1572
    %v1575 = vsub.f32 %v1573, %v1574
    %v1576 = vrsqrt.pop %v1575
    %v1577 = vmul.f32 %v1575, %v1576
    %vm1578 = vcmp.eq.f32.partialorder %v1575, inf
    %v1579 = vsel %vm1578, %v1575, %v1577
    %vm1580 = vcmp.eq.f32.partialorder %v1575, 0.0
    %v1581 = vand.u32 %v1575, 2147483648
    %v1582 = vsel %vm1580, %v1581, %v1579
    %v1583 = vadd.f32 %v1547, %v1548
    %v1584 = vmul.f32 %v1582, 2.0
    %v1585 = vadd.f32 %v1583, %v1584
    %v1586 = vmul.f32 %v1575, %v1585
    %v1587 = vrsqrt.pop %v1586
    %v1588 = vadd.f32 %v1548, %v1582
    %v1589 = vadd.f32 %v1547, %v1582
    %v1590 = vmul.f32 %v1588, %v1587
    %v1591 = vmul.f32 %v1589, %v1587
    %v1592 = vsub.f32 0.0, %v1572
    %v1593 = vmul.f32 %v1592, %v1587
    %s1594 = scalar_lea.vmem [#allocation2], 1493
    %v1595 = vld [vmem:[%s1594] ss:$8 sm:$0x3]
    %s1596 = scalar_lea.vmem [#allocation2], 1494
    %v1597 = vld [vmem:[%s1596] ss:$8 sm:$0x3]
    %s1598 = scalar_lea.vmem [#allocation2], 1495
    %v1599 = vld [vmem:[%s1598] ss:$8 sm:$0x3]
    %v1602 = vcombine.low %v1590, %v1591
    %v1604 = vunpack.c.l.s4 1966171168
    %v1605 = vunpack.c.0.s8 %v1604
    %v1606 = vlaneseq
    %v1607 = vshrl.u32 %v1606, 7
    %v1608 = vsub.s32 %v1605, %v1607
    %v1609 = vrot.slane %v1602, %v1608
    %v1611 = vunpack.c.l.s4 1966171168
    %v1612 = vunpack.c.0.s8 %v1611
    %v1613 = vlaneseq
    %v1614 = vshrl.u32 %v1613, 7
    %v1615 = vsub.s32 %v1612, %v1614
    %v1616 = vrot.slane %v1609, %v1615
    %v1618 = vmul.f32 %v1595, %v1616
    %v1620 = vcombine.low %v1593, %v1593
    %v1622 = vunpack.c.l.s4 1966171168
    %v1623 = vunpack.c.0.s8 %v1622
    %v1624 = vlaneseq
    %v1625 = vshrl.u32 %v1624, 7
    %v1626 = vsub.s32 %v1623, %v1625
    %v1627 = vrot.slane %v1620, %v1626
    %v1629 = vunpack.c.l.s4 1966171168
    %v1630 = vunpack.c.0.s8 %v1629
    %v1631 = vlaneseq
    %v1632 = vshrl.u32 %v1631, 7
    %v1633 = vsub.s32 %v1630, %v1632
    %v1634 = vrot.slane %v1627, %v1633
    %v1636 = vmul.f32 %v1597, %v1634
    %v1637 = vadd.f32 %v1618, %v1636
    %v1638 = vmul.f32 %v1595, %v1634
    %v1639 = vcombine.low %v1591, %v1590
    %v1641 = vunpack.c.l.s4 1966171168
    %v1642 = vunpack.c.0.s8 %v1641
    %v1643 = vlaneseq
    %v1644 = vshrl.u32 %v1643, 7
    %v1645 = vsub.s32 %v1642, %v1644
    %v1646 = vrot.slane %v1639, %v1645
    %v1648 = vunpack.c.l.s4 1966171168
    %v1649 = vunpack.c.0.s8 %v1648
    %v1650 = vlaneseq
    %v1651 = vshrl.u32 %v1650, 7
    %v1652 = vsub.s32 %v1649, %v1651
    %v1653 = vrot.slane %v1646, %v1652
    %v1655 = vmul.f32 %v1597, %v1653
    %v1656 = vadd.f32 %v1638, %v1655
    %v1658 = vlaneseq
    %v1659 = vshrl.u32 %v1658, 7
    %v1660 = vsub.s32 0, %v1659
    %v1661 = vrot.slane %v1637, %v1660
    %v1662 = vlaneseq
    %v1663 = vshrl.u32 %v1662, 7
    %v1664 = vsub.s32 1, %v1663
    %v1665 = vrot.slane %v1637, %v1664
    %v1668 = vmul.f32 %v1661, %v1481
    %v1669 = vmul.f32 %v1665, %v1482
    %v1670 = vmul.f32 %v1661, %v1483
    %v1671 = vmul.f32 %v1665, %v1484
    %v1672 = vmul.f32 %v1661, %v1485
    %v1673 = vmul.f32 %v1665, %v1486
    %v1674 = vmul.f32 %v1661, %v1487
    %v1675 = vmul.f32 %v1665, %v1488
    %v1676 = vmul.f32 %v1661, %v1489
    %v1677 = vmul.f32 %v1665, %v1490
    %v1678 = vmul.f32 %v1661, %v1491
    %v1679 = vmul.f32 %v1665, %v1492
    %v1680 = vmul.f32 %v1661, %v1493
    %v1681 = vmul.f32 %v1665, %v1494
    %v1682 = vmul.f32 %v1661, %v1495
    %v1683 = vmul.f32 %v1665, %v1496
    %v1684 = vmul.f32 %v1661, %v1497
    %v1685 = vmul.f32 %v1665, %v1498
    %v1687 = vlaneseq
    %v1688 = vshrl.u32 %v1687, 7
    %v1689 = vsub.s32 0, %v1688
    %v1690 = vrot.slane %v1656, %v1689
    %v1691 = vlaneseq
    %v1692 = vshrl.u32 %v1691, 7
    %v1693 = vsub.s32 1, %v1692
    %v1694 = vrot.slane %v1656, %v1693
    %v1697 = vmul.f32 %v1690, %v1482
    %v1698 = vmul.f32 %v1694, %v1481
    %v1699 = vmul.f32 %v1690, %v1484
    %v1700 = vmul.f32 %v1694, %v1483
    %v1701 = vmul.f32 %v1690, %v1486
    %v1702 = vmul.f32 %v1694, %v1485
    %v1703 = vmul.f32 %v1690, %v1488
    %v1704 = vmul.f32 %v1694, %v1487
    %v1705 = vmul.f32 %v1690, %v1490
    %v1706 = vmul.f32 %v1694, %v1489
    %v1707 = vmul.f32 %v1690, %v1492
    %v1708 = vmul.f32 %v1694, %v1491
    %v1709 = vmul.f32 %v1690, %v1494
    %v1710 = vmul.f32 %v1694, %v1493
    %v1711 = vmul.f32 %v1690, %v1496
    %v1712 = vmul.f32 %v1694, %v1495
    %v1713 = vmul.f32 %v1690, %v1498
    %v1714 = vmul.f32 %v1694, %v1497
    %v1715 = vadd.f32 %v1668, %v1697
    %v1716 = vadd.f32 %v1669, %v1698
    %v1717 = vadd.f32 %v1670, %v1699
    %v1718 = vadd.f32 %v1671, %v1700
    %v1719 = vadd.f32 %v1672, %v1701
    %v1720 = vadd.f32 %v1673, %v1702
    %v1721 = vadd.f32 %v1674, %v1703
    %v1722 = vadd.f32 %v1675, %v1704
    %v1723 = vadd.f32 %v1676, %v1705
    %v1724 = vadd.f32 %v1677, %v1706
    %v1725 = vadd.f32 %v1678, %v1707
    %v1726 = vadd.f32 %v1679, %v1708
    %v1727 = vadd.f32 %v1680, %v1709
    %v1728 = vadd.f32 %v1681, %v1710
    %v1729 = vadd.f32 %v1682, %v1711
    %v1730 = vadd.f32 %v1683, %v1712
    %v1731 = vadd.f32 %v1684, %v1713
    %v1732 = vadd.f32 %v1685, %v1714
    %v1734 = vlaneseq
    %v1735 = vshrl.u32 %v1734, 7
    %v1736 = vsub.s32 0, %v1735
    %v1737 = vrot.slane %v1599, %v1736
    %v1738 = vlaneseq
    %v1739 = vshrl.u32 %v1738, 7
    %v1740 = vsub.s32 1, %v1739
    %v1741 = vrot.slane %v1599, %v1740
    %v1744 = vadd.f32 %v1715, %v1737
    %v1745 = vadd.f32 %v1716, %v1741
    %v1746 = vadd.f32 %v1717, %v1737
    %v1747 = vadd.f32 %v1718, %v1741
    %v1748 = vadd.f32 %v1719, %v1737
    %v1749 = vadd.f32 %v1720, %v1741
    %v1750 = vadd.f32 %v1721, %v1737
    %v1751 = vadd.f32 %v1722, %v1741
    %v1752 = vadd.f32 %v1723, %v1737
    %v1753 = vadd.f32 %v1724, %v1741
    %v1754 = vadd.f32 %v1725, %v1737
    %v1755 = vadd.f32 %v1726, %v1741
    %v1756 = vadd.f32 %v1727, %v1737
    %v1757 = vadd.f32 %v1728, %v1741
    %v1758 = vadd.f32 %v1729, %v1737
    %v1759 = vadd.f32 %v1730, %v1741
    %v1760 = vadd.f32 %v1731, %v1737
    %v1761 = vadd.f32 %v1732, %v1741
    %v1762 = vld [vmem:[#allocation4] sm:$0xff]
    %v1763 = vld [vmem:[#allocation4 + $0x8] sm:$0xff]
    %v1764 = vld [vmem:[#allocation4 + $0x10] sm:$0xff]
    %v1765 = vld [vmem:[#allocation4 + $0x18] sm:$0xff]
    %v1766 = vld [vmem:[#allocation4 + $0x20] sm:$0xff]
    %v1767 = vld [vmem:[#allocation4 + $0x28] sm:$0xff]
    %v1768 = vld [vmem:[#allocation4 + $0x30] sm:$0xff]
    %v1769 = vld [vmem:[#allocation4 + $0x38] sm:$0xff]
    %v1770 = vld [vmem:[#allocation4 + $0x40] sm:$0xff]
    %v1771 = vld [vmem:[#allocation4 + $0x48] sm:$0xff]
    %v1772 = vld [vmem:[#allocation4 + $0x50] sm:$0xff]
    %v1773 = vld [vmem:[#allocation4 + $0x58] sm:$0xff]
    %v1774 = vld [vmem:[#allocation4 + $0x60] sm:$0xff]
    %v1775 = vld [vmem:[#allocation4 + $0x68] sm:$0xff]
    %v1776 = vld [vmem:[#allocation4 + $0x70] sm:$0xff]
    %v1777 = vld [vmem:[#allocation4 + $0x78] sm:$0xff]
    %v1778 = vld [vmem:[#allocation4 + $0x80] sm:$0xff]
    %v1779 = vld [vmem:[#allocation4 + $0x88] sm:$0xff]
    %v1780 = vld [vmem:[#allocation4 + $0x90] sm:$0xff]
    %v1781 = vld [vmem:[#allocation4 + $0x98] sm:$0xff]
    %v1782 = vld [vmem:[#allocation4 + $0xa0] sm:$0xff]
    %v1783 = vld [vmem:[#allocation4 + $0xa8] sm:$0xff]
    %v1784 = vld [vmem:[#allocation4 + $0xb0] sm:$0xff]
    %v1785 = vld [vmem:[#allocation4 + $0xb8] sm:$0xff]
    %v1786 = vld [vmem:[#allocation4 + $0xc0] sm:$0xff]
    %v1787 = vld [vmem:[#allocation4 + $0xc8] sm:$0xff]
    %v1788 = vld [vmem:[#allocation4 + $0xd0] sm:$0xff]
    %v1789 = vld [vmem:[#allocation4 + $0xd8] sm:$0xff]
    %v1790 = vld [vmem:[#allocation4 + $0xe0] sm:$0xff]
    %v1791 = vld [vmem:[#allocation4 + $0xe8] sm:$0xff]
    %v1792 = vld [vmem:[#allocation4 + $0xf0] sm:$0xff]
    %v1793 = vld [vmem:[#allocation4 + $0xf8] sm:$0xff]
    %v1794 = vrot.slane %v1744, 1
    %v1795 = vrot.slane %v1745, 1
    %v1796 = vrot.slane %v1746, 1
    %v1797 = vrot.slane %v1747, 1
    %v1798 = vrot.slane %v1748, 1
    %v1799 = vrot.slane %v1749, 1
    %v1800 = vrot.slane %v1750, 1
    %v1801 = vrot.slane %v1751, 1
    %v1802 = vrot.slane %v1752, 1
    %v1803 = vrot.slane %v1753, 1
    %v1804 = vrot.slane %v1754, 1
    %v1805 = vrot.slane %v1755, 1
    %v1806 = vrot.slane %v1756, 1
    %v1807 = vrot.slane %v1757, 1
    %v1808 = vrot.slane %v1758, 1
    %v1809 = vrot.slane %v1759, 1
    %v1810 = vrot.slane %v1760, 1
    %v1811 = vrot.slane %v1761, 1
    %v1812 = vsel %vm62, %v1808, %v1810
    %v1813 = vsel %vm62, %v1809, %v1811
    %v1814 = vsel %vm62, %v1806, %v1808
    %v1815 = vsel %vm62, %v1807, %v1809
    %v1816 = vsel %vm62, %v1804, %v1806
    %v1817 = vsel %vm62, %v1805, %v1807
    %v1818 = vsel %vm62, %v1802, %v1804
    %v1819 = vsel %vm62, %v1803, %v1805
    %v1820 = vsel %vm62, %v1800, %v1802
    %v1821 = vsel %vm62, %v1801, %v1803
    %v1822 = vsel %vm62, %v1798, %v1800
    %v1823 = vsel %vm62, %v1799, %v1801
    %v1824 = vsel %vm62, %v1796, %v1798
    %v1825 = vsel %vm62, %v1797, %v1799
    %v1826 = vsel %vm62, %v1794, %v1796
    %v1827 = vsel %vm62, %v1795, %v1797
    %v1828 = vsel %vm62, %v1810, %v1794
    %v1829 = vsel %vm62, %v1811, %v1795
    %s1830 = scalar_lea.vmem [#allocation4], 256
    %v1831 = vld [vmem:[%s1830] sm:$0xff]
    %v1832 = vld [vmem:[%s1830 + $0x8] sm:$0xff]
    %v1833 = vld [vmem:[%s1830 + $0x10] sm:$0xff]
    %v1834 = vld [vmem:[%s1830 + $0x18] sm:$0xff]
    %v1835 = vld [vmem:[%s1830 + $0x20] sm:$0xff]
    %v1836 = vld [vmem:[%s1830 + $0x28] sm:$0xff]
    %v1837 = vld [vmem:[%s1830 + $0x30] sm:$0xff]
    %v1838 = vld [vmem:[%s1830 + $0x38] sm:$0xff]
    %v1839 = vld [vmem:[%s1830 + $0x40] sm:$0xff]
    %v1840 = vld [vmem:[%s1830 + $0x48] sm:$0xff]
    %v1841 = vld [vmem:[%s1830 + $0x50] sm:$0xff]
    %v1842 = vld [vmem:[%s1830 + $0x58] sm:$0xff]
    %v1843 = vld [vmem:[%s1830 + $0x60] sm:$0xff]
    %v1844 = vld [vmem:[%s1830 + $0x68] sm:$0xff]
    %v1845 = vld [vmem:[%s1830 + $0x70] sm:$0xff]
    %v1846 = vld [vmem:[%s1830 + $0x78] sm:$0xff]
    %v1847 = vld [vmem:[%s1830 + $0x80] sm:$0xff]
    %v1848 = vld [vmem:[%s1830 + $0x88] sm:$0xff]
    %v1849 = vld [vmem:[%s1830 + $0x90] sm:$0xff]
    %v1850 = vld [vmem:[%s1830 + $0x98] sm:$0xff]
    %v1851 = vld [vmem:[%s1830 + $0xa0] sm:$0xff]
    %v1852 = vld [vmem:[%s1830 + $0xa8] sm:$0xff]
    %v1853 = vld [vmem:[%s1830 + $0xb0] sm:$0xff]
    %v1854 = vld [vmem:[%s1830 + $0xb8] sm:$0xff]
    %v1855 = vld [vmem:[%s1830 + $0xc0] sm:$0xff]
    %v1856 = vld [vmem:[%s1830 + $0xc8] sm:$0xff]
    %v1857 = vld [vmem:[%s1830 + $0xd0] sm:$0xff]
    %v1858 = vld [vmem:[%s1830 + $0xd8] sm:$0xff]
    %v1859 = vld [vmem:[%s1830 + $0xe0] sm:$0xff]
    %v1860 = vld [vmem:[%s1830 + $0xe8] sm:$0xff]
    %v1861 = vld [vmem:[%s1830 + $0xf0] sm:$0xff]
    %v1862 = vld [vmem:[%s1830 + $0xf8] sm:$0xff]
    %1863 = vmatprep.subr.mxu0 0.0
    %1864 = vmatpush1.msra.mxu0 %v1846
    %1865 = vmatprep.subr.mxu0 0.0
    %1866 = vmatpush1.msra.mxu0 %v1845
    %1867 = vmatprep.subr.mxu0 0.0
    %1868 = vmatpush1.msra.mxu0 %v1844
    %1869 = vmatprep.subr.mxu0 0.0
    %1870 = vmatpush1.msra.mxu0 %v1843
    %1871 = vmatprep.subr.mxu0 0.0
    %1872 = vmatpush1.msra.mxu0 %v1842
    %1873 = vmatprep.subr.mxu0 0.0
    %1874 = vmatpush1.msra.mxu0 %v1841
    %1875 = vmatprep.subr.mxu0 0.0
    %1876 = vmatpush1.msra.mxu0 %v1840
    %1877 = vmatprep.subr.mxu0 0.0
    %1878 = vmatpush1.msra.mxu0 %v1839
    %1879 = vmatprep.subr.mxu0 0.0
    %1880 = vmatpush1.msra.mxu0 %v1838
    %1881 = vmatprep.subr.mxu0 0.0
    %1882 = vmatpush1.msra.mxu0 %v1837
    %1883 = vmatprep.subr.mxu0 0.0
    %1884 = vmatpush1.msra.mxu0 %v1836
    %1885 = vmatprep.subr.mxu0 0.0
    %1886 = vmatpush1.msra.mxu0 %v1835
    %1887 = vmatprep.subr.mxu0 0.0
    %1888 = vmatpush1.msra.mxu0 %v1834
    %1889 = vmatprep.subr.mxu0 0.0
    %1890 = vmatpush1.msra.mxu0 %v1833
    %1891 = vmatprep.subr.mxu0 0.0
    %1892 = vmatpush1.msra.mxu0 %v1832
    %1893 = vmatprep.subr.mxu0 0.0
    %1894 = vmatpush1.msra.mxu0 %v1831
    %1895 = vmatprep.subr.mxu0 0.0
    %1896 = vmatpush2.msra.mxu0 %v1862
    %1897 = vmatprep.subr.mxu0 0.0
    %1898 = vmatpush2.msra.mxu0 %v1861
    %1899 = vmatprep.subr.mxu0 0.0
    %1900 = vmatpush2.msra.mxu0 %v1860
    %1901 = vmatprep.subr.mxu0 0.0
    %1902 = vmatpush2.msra.mxu0 %v1859
    %1903 = vmatprep.subr.mxu0 0.0
    %1904 = vmatpush2.msra.mxu0 %v1858
    %1905 = vmatprep.subr.mxu0 0.0
    %1906 = vmatpush2.msra.mxu0 %v1857
    %1907 = vmatprep.subr.mxu0 0.0
    %1908 = vmatpush2.msra.mxu0 %v1856
    %1909 = vmatprep.subr.mxu0 0.0
    %1910 = vmatpush2.msra.mxu0 %v1855
    %1911 = vmatprep.subr.mxu0 0.0
    %1912 = vmatpush2.msra.mxu0 %v1854
    %1913 = vmatprep.subr.mxu0 0.0
    %1914 = vmatpush2.msra.mxu0 %v1853
    %1915 = vmatprep.subr.mxu0 0.0
    %1916 = vmatpush2.msra.mxu0 %v1852
    %1917 = vmatprep.subr.mxu0 0.0
    %1918 = vmatpush2.msra.mxu0 %v1851
    %1919 = vmatprep.subr.mxu0 0.0
    %1920 = vmatpush2.msra.mxu0 %v1850
    %1921 = vmatprep.subr.mxu0 0.0
    %1922 = vmatpush2.msra.mxu0 %v1849
    %1923 = vmatprep.subr.mxu0 0.0
    %1924 = vmatpush2.msra.mxu0 %v1848
    %1925 = vmatprep.subr.mxu0 0.0
    %1926 = vmatpush2.msra.mxu0 %v1847
    %1927 = vmatprep.mubr.f32.mxu0 %v1827
    %1928 = vmatmul.mubr.f32.gmra.mxu0 %v1826
    %v1929 = vpop.f32.mrf.mxu0
    %v1930 = vadd.f32 0.0, %v1929
    %v1931 = vpop.f32.mrf.mxu0
    %1932 = vmatprep.mubr.f32.mxu0 %v1825
    %1933 = vmatmul.mubr.f32.gmra.mxu0 %v1824
    %v1934 = vpop.f32.mrf.mxu0
    %v1935 = vadd.f32 0.0, %v1934
    %v1936 = vpop.f32.mrf.mxu0
    %1937 = vmatprep.mubr.f32.mxu0 %v1823
    %1938 = vmatmul.mubr.f32.gmra.mxu0 %v1822
    %v1939 = vpop.f32.mrf.mxu0
    %v1940 = vadd.f32 0.0, %v1939
    %v1941 = vpop.f32.mrf.mxu0
    %1942 = vmatprep.mubr.f32.mxu0 %v1821
    %1943 = vmatmul.mubr.f32.gmra.mxu0 %v1820
    %v1944 = vpop.f32.mrf.mxu0
    %v1945 = vadd.f32 0.0, %v1944
    %v1946 = vpop.f32.mrf.mxu0
    %1947 = vmatprep.mubr.f32.mxu0 %v1819
    %1948 = vmatmul.mubr.f32.gmra.mxu0 %v1818
    %v1949 = vpop.f32.mrf.mxu0
    %v1950 = vadd.f32 0.0, %v1949
    %v1951 = vpop.f32.mrf.mxu0
    %1952 = vmatprep.mubr.f32.mxu0 %v1817
    %1953 = vmatmul.mubr.f32.gmra.mxu0 %v1816
    %v1954 = vpop.f32.mrf.mxu0
    %v1955 = vadd.f32 0.0, %v1954
    %v1956 = vpop.f32.mrf.mxu0
    %1957 = vmatprep.mubr.f32.mxu0 %v1815
    %1958 = vmatmul.mubr.f32.gmra.mxu0 %v1814
    %v1959 = vpop.f32.mrf.mxu0
    %v1960 = vadd.f32 0.0, %v1959
    %v1961 = vpop.f32.mrf.mxu0
    %1962 = vmatprep.mubr.f32.mxu0 %v1813
    %1963 = vmatmul.mubr.f32.gmra.mxu0 %v1812
    %v1964 = vpop.f32.mrf.mxu0
    %v1965 = vadd.f32 0.0, %v1964
    %v1966 = vpop.f32.mrf.mxu0
    %1967 = vmatprep.mubr.f32.mxu0 %v1829
    %1968 = vmatmul.mubr.f32.gmra.mxu0 %v1828
    %v1969 = vpop.f32.mrf.mxu0
    %v1970 = vadd.f32 0.0, %v1969
    %v1971 = vpop.f32.mrf.mxu0
    %1972 = vdwg.mxu0
    %1973 = vmatprep.subr.mxu0 0.0
    %1974 = vmatpush1.msra.mxu0 %v1777
    %1975 = vmatprep.subr.mxu0 0.0
    %1976 = vmatpush1.msra.mxu0 %v1776
    %1977 = vmatprep.subr.mxu0 0.0
    %1978 = vmatpush1.msra.mxu0 %v1775
    %1979 = vmatprep.subr.mxu0 0.0
    %1980 = vmatpush1.msra.mxu0 %v1774
    %1981 = vmatprep.subr.mxu0 0.0
    %1982 = vmatpush1.msra.mxu0 %v1773
    %1983 = vmatprep.subr.mxu0 0.0
    %1984 = vmatpush1.msra.mxu0 %v1772
    %1985 = vmatprep.subr.mxu0 0.0
    %1986 = vmatpush1.msra.mxu0 %v1771
    %1987 = vmatprep.subr.mxu0 0.0
    %1988 = vmatpush1.msra.mxu0 %v1770
    %1989 = vmatprep.subr.mxu0 0.0
    %1990 = vmatpush1.msra.mxu0 %v1769
    %1991 = vmatprep.subr.mxu0 0.0
    %1992 = vmatpush1.msra.mxu0 %v1768
    %1993 = vmatprep.subr.mxu0 0.0
    %1994 = vmatpush1.msra.mxu0 %v1767
    %1995 = vmatprep.subr.mxu0 0.0
    %1996 = vmatpush1.msra.mxu0 %v1766
    %1997 = vmatprep.subr.mxu0 0.0
    %1998 = vmatpush1.msra.mxu0 %v1765
    %1999 = vmatprep.subr.mxu0 0.0
    %2000 = vmatpush1.msra.mxu0 %v1764
    %2001 = vmatprep.subr.mxu0 0.0
    %2002 = vmatpush1.msra.mxu0 %v1763
    %2003 = vmatprep.subr.mxu0 0.0
    %2004 = vmatpush1.msra.mxu0 %v1762
    %2005 = vmatprep.subr.mxu0 0.0
    %2006 = vmatpush2.msra.mxu0 %v1793
    %2007 = vmatprep.subr.mxu0 0.0
    %2008 = vmatpush2.msra.mxu0 %v1792
    %2009 = vmatprep.subr.mxu0 0.0
    %2010 = vmatpush2.msra.mxu0 %v1791
    %2011 = vmatprep.subr.mxu0 0.0
    %2012 = vmatpush2.msra.mxu0 %v1790
    %2013 = vmatprep.subr.mxu0 0.0
    %2014 = vmatpush2.msra.mxu0 %v1789
    %2015 = vmatprep.subr.mxu0 0.0
    %2016 = vmatpush2.msra.mxu0 %v1788
    %2017 = vmatprep.subr.mxu0 0.0
    %2018 = vmatpush2.msra.mxu0 %v1787
    %2019 = vmatprep.subr.mxu0 0.0
    %2020 = vmatpush2.msra.mxu0 %v1786
    %2021 = vmatprep.subr.mxu0 0.0
    %2022 = vmatpush2.msra.mxu0 %v1785
    %2023 = vmatprep.subr.mxu0 0.0
    %2024 = vmatpush2.msra.mxu0 %v1784
    %2025 = vmatprep.subr.mxu0 0.0
    %2026 = vmatpush2.msra.mxu0 %v1783
    %2027 = vmatprep.subr.mxu0 0.0
    %2028 = vmatpush2.msra.mxu0 %v1782
    %2029 = vmatprep.subr.mxu0 0.0
    %2030 = vmatpush2.msra.mxu0 %v1781
    %2031 = vmatprep.subr.mxu0 0.0
    %2032 = vmatpush2.msra.mxu0 %v1780
    %2033 = vmatprep.subr.mxu0 0.0
    %2034 = vmatpush2.msra.mxu0 %v1779
    %2035 = vmatprep.subr.mxu0 0.0
    %2036 = vmatpush2.msra.mxu0 %v1778
    %2037 = vmatprep.mubr.f32.mxu0 %v1745
    %2038 = vmatmul.mubr.f32.gmra.mxu0 %v1744
    %v2039 = vpop.f32.mrf.mxu0
    %v2040 = vadd.f32 %v1930, %v2039
    %v2041 = vpop.f32.mrf.mxu0
    %2042 = vmatprep.mubr.f32.mxu0 %v1747
    %2043 = vmatmul.mubr.f32.gmra.mxu0 %v1746
    %v2044 = vpop.f32.mrf.mxu0
    %v2045 = vadd.f32 %v1935, %v2044
    %v2046 = vpop.f32.mrf.mxu0
    %2047 = vmatprep.mubr.f32.mxu0 %v1749
    %2048 = vmatmul.mubr.f32.gmra.mxu0 %v1748
    %v2049 = vpop.f32.mrf.mxu0
    %v2050 = vadd.f32 %v1940, %v2049
    %v2051 = vpop.f32.mrf.mxu0
    %2052 = vmatprep.mubr.f32.mxu0 %v1751
    %2053 = vmatmul.mubr.f32.gmra.mxu0 %v1750
    %v2054 = vpop.f32.mrf.mxu0
    %v2055 = vadd.f32 %v1945, %v2054
    %v2056 = vpop.f32.mrf.mxu0
    %2057 = vmatprep.mubr.f32.mxu0 %v1753
    %2058 = vmatmul.mubr.f32.gmra.mxu0 %v1752
    %v2059 = vpop.f32.mrf.mxu0
    %v2060 = vadd.f32 %v1950, %v2059
    %v2061 = vpop.f32.mrf.mxu0
    %2062 = vmatprep.mubr.f32.mxu0 %v1755
    %2063 = vmatmul.mubr.f32.gmra.mxu0 %v1754
    %v2064 = vpop.f32.mrf.mxu0
    %v2065 = vadd.f32 %v1955, %v2064
    %v2066 = vpop.f32.mrf.mxu0
    %2067 = vmatprep.mubr.f32.mxu0 %v1757
    %2068 = vmatmul.mubr.f32.gmra.mxu0 %v1756
    %v2069 = vpop.f32.mrf.mxu0
    %v2070 = vadd.f32 %v1960, %v2069
    %v2071 = vpop.f32.mrf.mxu0
    %2072 = vmatprep.mubr.f32.mxu0 %v1759
    %2073 = vmatmul.mubr.f32.gmra.mxu0 %v1758
    %v2074 = vpop.f32.mrf.mxu0
    %v2075 = vadd.f32 %v1965, %v2074
    %v2076 = vpop.f32.mrf.mxu0
    %2077 = vmatprep.mubr.f32.mxu0 %v1761
    %2078 = vmatmul.mubr.f32.gmra.mxu0 %v1760
    %v2079 = vpop.f32.mrf.mxu0
    %v2080 = vadd.f32 %v1970, %v2079
    %v2081 = vpop.f32.mrf.mxu0
    %2082 = vdwg.mxu0
    %v2083 = vrot.slane %v1744, 2
    %v2084 = vrot.slane %v1745, 2
    %v2085 = vrot.slane %v1746, 2
    %v2086 = vrot.slane %v1747, 2
    %v2087 = vrot.slane %v1748, 2
    %v2088 = vrot.slane %v1749, 2
    %v2089 = vrot.slane %v1750, 2
    %v2090 = vrot.slane %v1751, 2
    %v2091 = vrot.slane %v1752, 2
    %v2092 = vrot.slane %v1753, 2
    %v2093 = vrot.slane %v1754, 2
    %v2094 = vrot.slane %v1755, 2
    %v2095 = vrot.slane %v1756, 2
    %v2096 = vrot.slane %v1757, 2
    %v2097 = vrot.slane %v1758, 2
    %v2098 = vrot.slane %v1759, 2
    %v2099 = vrot.slane %v1760, 2
    %v2100 = vrot.slane %v1761, 2
    %vm2101 = vcmp.lt.s32.totalorder %v61, 6
    %v2102 = vsel %vm2101, %v2097, %v2099
    %v2103 = vsel %vm2101, %v2098, %v2100
    %v2104 = vsel %vm2101, %v2095, %v2097
    %v2105 = vsel %vm2101, %v2096, %v2098
    %v2106 = vsel %vm2101, %v2093, %v2095
    %v2107 = vsel %vm2101, %v2094, %v2096
    %v2108 = vsel %vm2101, %v2091, %v2093
    %v2109 = vsel %vm2101, %v2092, %v2094
    %v2110 = vsel %vm2101, %v2089, %v2091
    %v2111 = vsel %vm2101, %v2090, %v2092
    %v2112 = vsel %vm2101, %v2087, %v2089
    %v2113 = vsel %vm2101, %v2088, %v2090
    %v2114 = vsel %vm2101, %v2085, %v2087
    %v2115 = vsel %vm2101, %v2086, %v2088
    %v2116 = vsel %vm2101, %v2083, %v2085
    %v2117 = vsel %vm2101, %v2084, %v2086
    %v2118 = vsel %vm2101, %v2099, %v2083
    %v2119 = vsel %vm2101, %v2100, %v2084
    %s2120 = scalar_lea.vmem [#allocation4], 512
    %v2121 = vld [vmem:[%s2120] sm:$0xff]
    %v2122 = vld [vmem:[%s2120 + $0x8] sm:$0xff]
    %v2123 = vld [vmem:[%s2120 + $0x10] sm:$0xff]
    %v2124 = vld [vmem:[%s2120 + $0x18] sm:$0xff]
    %v2125 = vld [vmem:[%s2120 + $0x20] sm:$0xff]
    %v2126 = vld [vmem:[%s2120 + $0x28] sm:$0xff]
    %v2127 = vld [vmem:[%s2120 + $0x30] sm:$0xff]
    %v2128 = vld [vmem:[%s2120 + $0x38] sm:$0xff]
    %v2129 = vld [vmem:[%s2120 + $0x40] sm:$0xff]
    %v2130 = vld [vmem:[%s2120 + $0x48] sm:$0xff]
    %v2131 = vld [vmem:[%s2120 + $0x50] sm:$0xff]
    %v2132 = vld [vmem:[%s2120 + $0x58] sm:$0xff]
    %v2133 = vld [vmem:[%s2120 + $0x60] sm:$0xff]
    %v2134 = vld [vmem:[%s2120 + $0x68] sm:$0xff]
    %v2135 = vld [vmem:[%s2120 + $0x70] sm:$0xff]
    %v2136 = vld [vmem:[%s2120 + $0x78] sm:$0xff]
    %v2137 = vld [vmem:[%s2120 + $0x80] sm:$0xff]
    %v2138 = vld [vmem:[%s2120 + $0x88] sm:$0xff]
    %v2139 = vld [vmem:[%s2120 + $0x90] sm:$0xff]
    %v2140 = vld [vmem:[%s2120 + $0x98] sm:$0xff]
    %v2141 = vld [vmem:[%s2120 + $0xa0] sm:$0xff]
    %v2142 = vld [vmem:[%s2120 + $0xa8] sm:$0xff]
    %v2143 = vld [vmem:[%s2120 + $0xb0] sm:$0xff]
    %v2144 = vld [vmem:[%s2120 + $0xb8] sm:$0xff]
    %v2145 = vld [vmem:[%s2120 + $0xc0] sm:$0xff]
    %v2146 = vld [vmem:[%s2120 + $0xc8] sm:$0xff]
    %v2147 = vld [vmem:[%s2120 + $0xd0] sm:$0xff]
    %v2148 = vld [vmem:[%s2120 + $0xd8] sm:$0xff]
    %v2149 = vld [vmem:[%s2120 + $0xe0] sm:$0xff]
    %v2150 = vld [vmem:[%s2120 + $0xe8] sm:$0xff]
    %v2151 = vld [vmem:[%s2120 + $0xf0] sm:$0xff]
    %v2152 = vld [vmem:[%s2120 + $0xf8] sm:$0xff]
    %2153 = vmatprep.subr.mxu0 0.0
    %2154 = vmatpush1.msra.mxu0 %v2136
    %2155 = vmatprep.subr.mxu0 0.0
    %2156 = vmatpush1.msra.mxu0 %v2135
    %2157 = vmatprep.subr.mxu0 0.0
    %2158 = vmatpush1.msra.mxu0 %v2134
    %2159 = vmatprep.subr.mxu0 0.0
    %2160 = vmatpush1.msra.mxu0 %v2133
    %2161 = vmatprep.subr.mxu0 0.0
    %2162 = vmatpush1.msra.mxu0 %v2132
    %2163 = vmatprep.subr.mxu0 0.0
    %2164 = vmatpush1.msra.mxu0 %v2131
    %2165 = vmatprep.subr.mxu0 0.0
    %2166 = vmatpush1.msra.mxu0 %v2130
    %2167 = vmatprep.subr.mxu0 0.0
    %2168 = vmatpush1.msra.mxu0 %v2129
    %2169 = vmatprep.subr.mxu0 0.0
    %2170 = vmatpush1.msra.mxu0 %v2128
    %2171 = vmatprep.subr.mxu0 0.0
    %2172 = vmatpush1.msra.mxu0 %v2127
    %2173 = vmatprep.subr.mxu0 0.0
    %2174 = vmatpush1.msra.mxu0 %v2126
    %2175 = vmatprep.subr.mxu0 0.0
    %2176 = vmatpush1.msra.mxu0 %v2125
    %2177 = vmatprep.subr.mxu0 0.0
    %2178 = vmatpush1.msra.mxu0 %v2124
    %2179 = vmatprep.subr.mxu0 0.0
    %2180 = vmatpush1.msra.mxu0 %v2123
    %2181 = vmatprep.subr.mxu0 0.0
    %2182 = vmatpush1.msra.mxu0 %v2122
    %2183 = vmatprep.subr.mxu0 0.0
    %2184 = vmatpush1.msra.mxu0 %v2121
    %2185 = vmatprep.subr.mxu0 0.0
    %2186 = vmatpush2.msra.mxu0 %v2152
    %2187 = vmatprep.subr.mxu0 0.0
    %2188 = vmatpush2.msra.mxu0 %v2151
    %2189 = vmatprep.subr.mxu0 0.0
    %2190 = vmatpush2.msra.mxu0 %v2150
    %2191 = vmatprep.subr.mxu0 0.0
    %2192 = vmatpush2.msra.mxu0 %v2149
    %2193 = vmatprep.subr.mxu0 0.0
    %2194 = vmatpush2.msra.mxu0 %v2148
    %2195 = vmatprep.subr.mxu0 0.0
    %2196 = vmatpush2.msra.mxu0 %v2147
    %2197 = vmatprep.subr.mxu0 0.0
    %2198 = vmatpush2.msra.mxu0 %v2146
    %2199 = vmatprep.subr.mxu0 0.0
    %2200 = vmatpush2.msra.mxu0 %v2145
    %2201 = vmatprep.subr.mxu0 0.0
    %2202 = vmatpush2.msra.mxu0 %v2144
    %2203 = vmatprep.subr.mxu0 0.0
    %2204 = vmatpush2.msra.mxu0 %v2143
    %2205 = vmatprep.subr.mxu0 0.0
    %2206 = vmatpush2.msra.mxu0 %v2142
    %2207 = vmatprep.subr.mxu0 0.0
    %2208 = vmatpush2.msra.mxu0 %v2141
    %2209 = vmatprep.subr.mxu0 0.0
    %2210 = vmatpush2.msra.mxu0 %v2140
    %2211 = vmatprep.subr.mxu0 0.0
    %2212 = vmatpush2.msra.mxu0 %v2139
    %2213 = vmatprep.subr.mxu0 0.0
    %2214 = vmatpush2.msra.mxu0 %v2138
    %2215 = vmatprep.subr.mxu0 0.0
    %2216 = vmatpush2.msra.mxu0 %v2137
    %2217 = vmatprep.mubr.f32.mxu0 %v2117
    %2218 = vmatmul.mubr.f32.gmra.mxu0 %v2116
    %v2219 = vpop.f32.mrf.mxu0
    %v2220 = vadd.f32 0.0, %v2219
    %v2221 = vpop.f32.mrf.mxu0
    %2222 = vmatprep.mubr.f32.mxu0 %v2115
    %2223 = vmatmul.mubr.f32.gmra.mxu0 %v2114
    %v2224 = vpop.f32.mrf.mxu0
    %v2225 = vadd.f32 0.0, %v2224
    %v2226 = vpop.f32.mrf.mxu0
    %2227 = vmatprep.mubr.f32.mxu0 %v2113
    %2228 = vmatmul.mubr.f32.gmra.mxu0 %v2112
    %v2229 = vpop.f32.mrf.mxu0
    %v2230 = vadd.f32 0.0, %v2229
    %v2231 = vpop.f32.mrf.mxu0
    %2232 = vmatprep.mubr.f32.mxu0 %v2111
    %2233 = vmatmul.mubr.f32.gmra.mxu0 %v2110
    %v2234 = vpop.f32.mrf.mxu0
    %v2235 = vadd.f32 0.0, %v2234
    %v2236 = vpop.f32.mrf.mxu0
    %2237 = vmatprep.mubr.f32.mxu0 %v2109
    %2238 = vmatmul.mubr.f32.gmra.mxu0 %v2108
    %v2239 = vpop.f32.mrf.mxu0
    %v2240 = vadd.f32 0.0, %v2239
    %v2241 = vpop.f32.mrf.mxu0
    %2242 = vmatprep.mubr.f32.mxu0 %v2107
    %2243 = vmatmul.mubr.f32.gmra.mxu0 %v2106
    %v2244 = vpop.f32.mrf.mxu0
    %v2245 = vadd.f32 0.0, %v2244
    %v2246 = vpop.f32.mrf.mxu0
    %2247 = vmatprep.mubr.f32.mxu0 %v2105
    %2248 = vmatmul.mubr.f32.gmra.mxu0 %v2104
    %v2249 = vpop.f32.mrf.mxu0
    %v2250 = vadd.f32 0.0, %v2249
    %v2251 = vpop.f32.mrf.mxu0
    %2252 = vmatprep.mubr.f32.mxu0 %v2103
    %2253 = vmatmul.mubr.f32.gmra.mxu0 %v2102
    %v2254 = vpop.f32.mrf.mxu0
    %v2255 = vadd.f32 0.0, %v2254
    %v2256 = vpop.f32.mrf.mxu0
    %2257 = vmatprep.mubr.f32.mxu0 %v2119
    %2258 = vmatmul.mubr.f32.gmra.mxu0 %v2118
    %v2259 = vpop.f32.mrf.mxu0
    %v2260 = vadd.f32 0.0, %v2259
    %v2261 = vpop.f32.mrf.mxu0
    %2262 = vdwg.mxu0
    %v2263 = vadd.f32 %v2040, %v2220
    %v2264 = vadd.f32 %v2045, %v2225
    %v2265 = vadd.f32 %v2050, %v2230
    %v2266 = vadd.f32 %v2055, %v2235
    %v2267 = vadd.f32 %v2060, %v2240
    %v2268 = vadd.f32 %v2065, %v2245
    %v2269 = vadd.f32 %v2070, %v2250
    %v2270 = vadd.f32 %v2075, %v2255
    %v2271 = vadd.f32 %v2080, %v2260
    %v2272 = vrot.slane %v1744, 6
    %v2273 = vrot.slane %v1745, 6
    %v2274 = vrot.slane %v1746, 6
    %v2275 = vrot.slane %v1747, 6
    %v2276 = vrot.slane %v1748, 6
    %v2277 = vrot.slane %v1749, 6
    %v2278 = vrot.slane %v1750, 6
    %v2279 = vrot.slane %v1751, 6
    %v2280 = vrot.slane %v1752, 6
    %v2281 = vrot.slane %v1753, 6
    %v2282 = vrot.slane %v1754, 6
    %v2283 = vrot.slane %v1755, 6
    %v2284 = vrot.slane %v1756, 6
    %v2285 = vrot.slane %v1757, 6
    %v2286 = vrot.slane %v1758, 6
    %v2287 = vrot.slane %v1759, 6
    %v2288 = vrot.slane %v1760, 6
    %v2289 = vrot.slane %v1761, 6
    %v2290 = vsel %vm81, %v2286, %v2288
    %v2291 = vsel %vm81, %v2287, %v2289
    %v2292 = vsel %vm81, %v2284, %v2286
    %v2293 = vsel %vm81, %v2285, %v2287
    %v2294 = vsel %vm81, %v2282, %v2284
    %v2295 = vsel %vm81, %v2283, %v2285
    %v2296 = vsel %vm81, %v2280, %v2282
    %v2297 = vsel %vm81, %v2281, %v2283
    %v2298 = vsel %vm81, %v2278, %v2280
    %v2299 = vsel %vm81, %v2279, %v2281
    %v2300 = vsel %vm81, %v2276, %v2278
    %v2301 = vsel %vm81, %v2277, %v2279
    %v2302 = vsel %vm81, %v2274, %v2276
    %v2303 = vsel %vm81, %v2275, %v2277
    %v2304 = vsel %vm81, %v2272, %v2274
    %v2305 = vsel %vm81, %v2273, %v2275
    %v2306 = vsel %vm81, %v2288, %v2272
    %v2307 = vsel %vm81, %v2289, %v2273
    %s2308 = scalar_lea.vmem [#allocation4], 768
    %v2309 = vld [vmem:[%s2308] sm:$0xff]
    %v2310 = vld [vmem:[%s2308 + $0x8] sm:$0xff]
    %v2311 = vld [vmem:[%s2308 + $0x10] sm:$0xff]
    %v2312 = vld [vmem:[%s2308 + $0x18] sm:$0xff]
    %v2313 = vld [vmem:[%s2308 + $0x20] sm:$0xff]
    %v2314 = vld [vmem:[%s2308 + $0x28] sm:$0xff]
    %v2315 = vld [vmem:[%s2308 + $0x30] sm:$0xff]
    %v2316 = vld [vmem:[%s2308 + $0x38] sm:$0xff]
    %v2317 = vld [vmem:[%s2308 + $0x40] sm:$0xff]
    %v2318 = vld [vmem:[%s2308 + $0x48] sm:$0xff]
    %v2319 = vld [vmem:[%s2308 + $0x50] sm:$0xff]
    %v2320 = vld [vmem:[%s2308 + $0x58] sm:$0xff]
    %v2321 = vld [vmem:[%s2308 + $0x60] sm:$0xff]
    %v2322 = vld [vmem:[%s2308 + $0x68] sm:$0xff]
    %v2323 = vld [vmem:[%s2308 + $0x70] sm:$0xff]
    %v2324 = vld [vmem:[%s2308 + $0x78] sm:$0xff]
    %v2325 = vld [vmem:[%s2308 + $0x80] sm:$0xff]
    %v2326 = vld [vmem:[%s2308 + $0x88] sm:$0xff]
    %v2327 = vld [vmem:[%s2308 + $0x90] sm:$0xff]
    %v2328 = vld [vmem:[%s2308 + $0x98] sm:$0xff]
    %v2329 = vld [vmem:[%s2308 + $0xa0] sm:$0xff]
    %v2330 = vld [vmem:[%s2308 + $0xa8] sm:$0xff]
    %v2331 = vld [vmem:[%s2308 + $0xb0] sm:$0xff]
    %v2332 = vld [vmem:[%s2308 + $0xb8] sm:$0xff]
    %v2333 = vld [vmem:[%s2308 + $0xc0] sm:$0xff]
    %v2334 = vld [vmem:[%s2308 + $0xc8] sm:$0xff]
    %v2335 = vld [vmem:[%s2308 + $0xd0] sm:$0xff]
    %v2336 = vld [vmem:[%s2308 + $0xd8] sm:$0xff]
    %v2337 = vld [vmem:[%s2308 + $0xe0] sm:$0xff]
    %v2338 = vld [vmem:[%s2308 + $0xe8] sm:$0xff]
    %v2339 = vld [vmem:[%s2308 + $0xf0] sm:$0xff]
    %v2340 = vld [vmem:[%s2308 + $0xf8] sm:$0xff]
    %2341 = vmatprep.subr.mxu0 0.0
    %2342 = vmatpush1.msra.mxu0 %v2324
    %2343 = vmatprep.subr.mxu0 0.0
    %2344 = vmatpush1.msra.mxu0 %v2323
    %2345 = vmatprep.subr.mxu0 0.0
    %2346 = vmatpush1.msra.mxu0 %v2322
    %2347 = vmatprep.subr.mxu0 0.0
    %2348 = vmatpush1.msra.mxu0 %v2321
    %2349 = vmatprep.subr.mxu0 0.0
    %2350 = vmatpush1.msra.mxu0 %v2320
    %2351 = vmatprep.subr.mxu0 0.0
    %2352 = vmatpush1.msra.mxu0 %v2319
    %2353 = vmatprep.subr.mxu0 0.0
    %2354 = vmatpush1.msra.mxu0 %v2318
    %2355 = vmatprep.subr.mxu0 0.0
    %2356 = vmatpush1.msra.mxu0 %v2317
    %2357 = vmatprep.subr.mxu0 0.0
    %2358 = vmatpush1.msra.mxu0 %v2316
    %2359 = vmatprep.subr.mxu0 0.0
    %2360 = vmatpush1.msra.mxu0 %v2315
    %2361 = vmatprep.subr.mxu0 0.0
    %2362 = vmatpush1.msra.mxu0 %v2314
    %2363 = vmatprep.subr.mxu0 0.0
    %2364 = vmatpush1.msra.mxu0 %v2313
    %2365 = vmatprep.subr.mxu0 0.0
    %2366 = vmatpush1.msra.mxu0 %v2312
    %2367 = vmatprep.subr.mxu0 0.0
    %2368 = vmatpush1.msra.mxu0 %v2311
    %2369 = vmatprep.subr.mxu0 0.0
    %2370 = vmatpush1.msra.mxu0 %v2310
    %2371 = vmatprep.subr.mxu0 0.0
    %2372 = vmatpush1.msra.mxu0 %v2309
    %2373 = vmatprep.subr.mxu0 0.0
    %2374 = vmatpush2.msra.mxu0 %v2340
    %2375 = vmatprep.subr.mxu0 0.0
    %2376 = vmatpush2.msra.mxu0 %v2339
    %2377 = vmatprep.subr.mxu0 0.0
    %2378 = vmatpush2.msra.mxu0 %v2338
    %2379 = vmatprep.subr.mxu0 0.0
    %2380 = vmatpush2.msra.mxu0 %v2337
    %2381 = vmatprep.subr.mxu0 0.0
    %2382 = vmatpush2.msra.mxu0 %v2336
    %2383 = vmatprep.subr.mxu0 0.0
    %2384 = vmatpush2.msra.mxu0 %v2335
    %2385 = vmatprep.subr.mxu0 0.0
    %2386 = vmatpush2.msra.mxu0 %v2334
    %2387 = vmatprep.subr.mxu0 0.0
    %2388 = vmatpush2.msra.mxu0 %v2333
    %2389 = vmatprep.subr.mxu0 0.0
    %2390 = vmatpush2.msra.mxu0 %v2332
    %2391 = vmatprep.subr.mxu0 0.0
    %2392 = vmatpush2.msra.mxu0 %v2331
    %2393 = vmatprep.subr.mxu0 0.0
    %2394 = vmatpush2.msra.mxu0 %v2330
    %2395 = vmatprep.subr.mxu0 0.0
    %2396 = vmatpush2.msra.mxu0 %v2329
    %2397 = vmatprep.subr.mxu0 0.0
    %2398 = vmatpush2.msra.mxu0 %v2328
    %2399 = vmatprep.subr.mxu0 0.0
    %2400 = vmatpush2.msra.mxu0 %v2327
    %2401 = vmatprep.subr.mxu0 0.0
    %2402 = vmatpush2.msra.mxu0 %v2326
    %2403 = vmatprep.subr.mxu0 0.0
    %2404 = vmatpush2.msra.mxu0 %v2325
    %2405 = vmatprep.mubr.f32.mxu0 %v2305
    %2406 = vmatmul.mubr.f32.gmra.mxu0 %v2304
    %v2407 = vpop.f32.mrf.mxu0
    %v2408 = vadd.f32 0.0, %v2407
    %v2409 = vpop.f32.mrf.mxu0
    %2410 = vmatprep.mubr.f32.mxu0 %v2303
    %2411 = vmatmul.mubr.f32.gmra.mxu0 %v2302
    %v2412 = vpop.f32.mrf.mxu0
    %v2413 = vadd.f32 0.0, %v2412
    %v2414 = vpop.f32.mrf.mxu0
    %2415 = vmatprep.mubr.f32.mxu0 %v2301
    %2416 = vmatmul.mubr.f32.gmra.mxu0 %v2300
    %v2417 = vpop.f32.mrf.mxu0
    %v2418 = vadd.f32 0.0, %v2417
    %v2419 = vpop.f32.mrf.mxu0
    %2420 = vmatprep.mubr.f32.mxu0 %v2299
    %2421 = vmatmul.mubr.f32.gmra.mxu0 %v2298
    %v2422 = vpop.f32.mrf.mxu0
    %v2423 = vadd.f32 0.0, %v2422
    %v2424 = vpop.f32.mrf.mxu0
    %2425 = vmatprep.mubr.f32.mxu0 %v2297
    %2426 = vmatmul.mubr.f32.gmra.mxu0 %v2296
    %v2427 = vpop.f32.mrf.mxu0
    %v2428 = vadd.f32 0.0, %v2427
    %v2429 = vpop.f32.mrf.mxu0
    %2430 = vmatprep.mubr.f32.mxu0 %v2295
    %2431 = vmatmul.mubr.f32.gmra.mxu0 %v2294
    %v2432 = vpop.f32.mrf.mxu0
    %v2433 = vadd.f32 0.0, %v2432
    %v2434 = vpop.f32.mrf.mxu0
    %2435 = vmatprep.mubr.f32.mxu0 %v2293
    %2436 = vmatmul.mubr.f32.gmra.mxu0 %v2292
    %v2437 = vpop.f32.mrf.mxu0
    %v2438 = vadd.f32 0.0, %v2437
    %v2439 = vpop.f32.mrf.mxu0
    %2440 = vmatprep.mubr.f32.mxu0 %v2291
    %2441 = vmatmul.mubr.f32.gmra.mxu0 %v2290
    %v2442 = vpop.f32.mrf.mxu0
    %v2443 = vadd.f32 0.0, %v2442
    %v2444 = vpop.f32.mrf.mxu0
    %2445 = vmatprep.mubr.f32.mxu0 %v2307
    %2446 = vmatmul.mubr.f32.gmra.mxu0 %v2306
    %v2447 = vpop.f32.mrf.mxu0
    %v2448 = vadd.f32 0.0, %v2447
    %v2449 = vpop.f32.mrf.mxu0
    %2450 = vdwg.mxu0
    %v2451 = vadd.f32 %v2263, %v2408
    %v2452 = vadd.f32 %v2264, %v2413
    %v2453 = vadd.f32 %v2265, %v2418
    %v2454 = vadd.f32 %v2266, %v2423
    %v2455 = vadd.f32 %v2267, %v2428
    %v2456 = vadd.f32 %v2268, %v2433
    %v2457 = vadd.f32 %v2269, %v2438
    %v2458 = vadd.f32 %v2270, %v2443
    %v2459 = vadd.f32 %v2271, %v2448
    %v2460 = vrot.slane %v1744, 7
    %v2461 = vrot.slane %v1745, 7
    %v2462 = vrot.slane %v1746, 7
    %v2463 = vrot.slane %v1747, 7
    %v2464 = vrot.slane %v1748, 7
    %v2465 = vrot.slane %v1749, 7
    %v2466 = vrot.slane %v1750, 7
    %v2467 = vrot.slane %v1751, 7
    %v2468 = vrot.slane %v1752, 7
    %v2469 = vrot.slane %v1753, 7
    %v2470 = vrot.slane %v1754, 7
    %v2471 = vrot.slane %v1755, 7
    %v2472 = vrot.slane %v1756, 7
    %v2473 = vrot.slane %v1757, 7
    %v2474 = vrot.slane %v1758, 7
    %v2475 = vrot.slane %v1759, 7
    %v2476 = vrot.slane %v1760, 7
    %v2477 = vrot.slane %v1761, 7
    %v2478 = vsel %vm100, %v2474, %v2476
    %v2479 = vsel %vm100, %v2475, %v2477
    %v2480 = vsel %vm100, %v2472, %v2474
    %v2481 = vsel %vm100, %v2473, %v2475
    %v2482 = vsel %vm100, %v2470, %v2472
    %v2483 = vsel %vm100, %v2471, %v2473
    %v2484 = vsel %vm100, %v2468, %v2470
    %v2485 = vsel %vm100, %v2469, %v2471
    %v2486 = vsel %vm100, %v2466, %v2468
    %v2487 = vsel %vm100, %v2467, %v2469
    %v2488 = vsel %vm100, %v2464, %v2466
    %v2489 = vsel %vm100, %v2465, %v2467
    %v2490 = vsel %vm100, %v2462, %v2464
    %v2491 = vsel %vm100, %v2463, %v2465
    %v2492 = vsel %vm100, %v2460, %v2462
    %v2493 = vsel %vm100, %v2461, %v2463
    %v2494 = vsel %vm100, %v2476, %v2460
    %v2495 = vsel %vm100, %v2477, %v2461
    %s2496 = scalar_lea.vmem [#allocation4], 1024
    %v2497 = vld [vmem:[%s2496] sm:$0xff]
    %v2498 = vld [vmem:[%s2496 + $0x8] sm:$0xff]
    %v2499 = vld [vmem:[%s2496 + $0x10] sm:$0xff]
    %v2500 = vld [vmem:[%s2496 + $0x18] sm:$0xff]
    %v2501 = vld [vmem:[%s2496 + $0x20] sm:$0xff]
    %v2502 = vld [vmem:[%s2496 + $0x28] sm:$0xff]
    %v2503 = vld [vmem:[%s2496 + $0x30] sm:$0xff]
    %v2504 = vld [vmem:[%s2496 + $0x38] sm:$0xff]
    %v2505 = vld [vmem:[%s2496 + $0x40] sm:$0xff]
    %v2506 = vld [vmem:[%s2496 + $0x48] sm:$0xff]
    %v2507 = vld [vmem:[%s2496 + $0x50] sm:$0xff]
    %v2508 = vld [vmem:[%s2496 + $0x58] sm:$0xff]
    %v2509 = vld [vmem:[%s2496 + $0x60] sm:$0xff]
    %v2510 = vld [vmem:[%s2496 + $0x68] sm:$0xff]
    %v2511 = vld [vmem:[%s2496 + $0x70] sm:$0xff]
    %v2512 = vld [vmem:[%s2496 + $0x78] sm:$0xff]
    %v2513 = vld [vmem:[%s2496 + $0x80] sm:$0xff]
    %v2514 = vld [vmem:[%s2496 + $0x88] sm:$0xff]
    %v2515 = vld [vmem:[%s2496 + $0x90] sm:$0xff]
    %v2516 = vld [vmem:[%s2496 + $0x98] sm:$0xff]
    %v2517 = vld [vmem:[%s2496 + $0xa0] sm:$0xff]
    %v2518 = vld [vmem:[%s2496 + $0xa8] sm:$0xff]
    %v2519 = vld [vmem:[%s2496 + $0xb0] sm:$0xff]
    %v2520 = vld [vmem:[%s2496 + $0xb8] sm:$0xff]
    %v2521 = vld [vmem:[%s2496 + $0xc0] sm:$0xff]
    %v2522 = vld [vmem:[%s2496 + $0xc8] sm:$0xff]
    %v2523 = vld [vmem:[%s2496 + $0xd0] sm:$0xff]
    %v2524 = vld [vmem:[%s2496 + $0xd8] sm:$0xff]
    %v2525 = vld [vmem:[%s2496 + $0xe0] sm:$0xff]
    %v2526 = vld [vmem:[%s2496 + $0xe8] sm:$0xff]
    %v2527 = vld [vmem:[%s2496 + $0xf0] sm:$0xff]
    %v2528 = vld [vmem:[%s2496 + $0xf8] sm:$0xff]
    %2529 = vmatprep.subr.mxu0 0.0
    %2530 = vmatpush1.msra.mxu0 %v2512
    %2531 = vmatprep.subr.mxu0 0.0
    %2532 = vmatpush1.msra.mxu0 %v2511
    %2533 = vmatprep.subr.mxu0 0.0
    %2534 = vmatpush1.msra.mxu0 %v2510
    %2535 = vmatprep.subr.mxu0 0.0
    %2536 = vmatpush1.msra.mxu0 %v2509
    %2537 = vmatprep.subr.mxu0 0.0
    %2538 = vmatpush1.msra.mxu0 %v2508
    %2539 = vmatprep.subr.mxu0 0.0
    %2540 = vmatpush1.msra.mxu0 %v2507
    %2541 = vmatprep.subr.mxu0 0.0
    %2542 = vmatpush1.msra.mxu0 %v2506
    %2543 = vmatprep.subr.mxu0 0.0
    %2544 = vmatpush1.msra.mxu0 %v2505
    %2545 = vmatprep.subr.mxu0 0.0
    %2546 = vmatpush1.msra.mxu0 %v2504
    %2547 = vmatprep.subr.mxu0 0.0
    %2548 = vmatpush1.msra.mxu0 %v2503
    %2549 = vmatprep.subr.mxu0 0.0
    %2550 = vmatpush1.msra.mxu0 %v2502
    %2551 = vmatprep.subr.mxu0 0.0
    %2552 = vmatpush1.msra.mxu0 %v2501
    %2553 = vmatprep.subr.mxu0 0.0
    %2554 = vmatpush1.msra.mxu0 %v2500
    %2555 = vmatprep.subr.mxu0 0.0
    %2556 = vmatpush1.msra.mxu0 %v2499
    %2557 = vmatprep.subr.mxu0 0.0
    %2558 = vmatpush1.msra.mxu0 %v2498
    %2559 = vmatprep.subr.mxu0 0.0
    %2560 = vmatpush1.msra.mxu0 %v2497
    %2561 = vmatprep.subr.mxu0 0.0
    %2562 = vmatpush2.msra.mxu0 %v2528
    %2563 = vmatprep.subr.mxu0 0.0
    %2564 = vmatpush2.msra.mxu0 %v2527
    %2565 = vmatprep.subr.mxu0 0.0
    %2566 = vmatpush2.msra.mxu0 %v2526
    %2567 = vmatprep.subr.mxu0 0.0
    %2568 = vmatpush2.msra.mxu0 %v2525
    %2569 = vmatprep.subr.mxu0 0.0
    %2570 = vmatpush2.msra.mxu0 %v2524
    %2571 = vmatprep.subr.mxu0 0.0
    %2572 = vmatpush2.msra.mxu0 %v2523
    %2573 = vmatprep.subr.mxu0 0.0
    %2574 = vmatpush2.msra.mxu0 %v2522
    %2575 = vmatprep.subr.mxu0 0.0
    %2576 = vmatpush2.msra.mxu0 %v2521
    %2577 = vmatprep.subr.mxu0 0.0
    %2578 = vmatpush2.msra.mxu0 %v2520
    %2579 = vmatprep.subr.mxu0 0.0
    %2580 = vmatpush2.msra.mxu0 %v2519
    %2581 = vmatprep.subr.mxu0 0.0
    %2582 = vmatpush2.msra.mxu0 %v2518
    %2583 = vmatprep.subr.mxu0 0.0
    %2584 = vmatpush2.msra.mxu0 %v2517
    %2585 = vmatprep.subr.mxu0 0.0
    %2586 = vmatpush2.msra.mxu0 %v2516
    %2587 = vmatprep.subr.mxu0 0.0
    %2588 = vmatpush2.msra.mxu0 %v2515
    %2589 = vmatprep.subr.mxu0 0.0
    %2590 = vmatpush2.msra.mxu0 %v2514
    %2591 = vmatprep.subr.mxu0 0.0
    %2592 = vmatpush2.msra.mxu0 %v2513
    %2593 = vmatprep.mubr.f32.mxu0 %v2493
    %2594 = vmatmul.mubr.f32.gmra.mxu0 %v2492
    %v2595 = vpop.f32.mrf.mxu0
    %v2596 = vadd.f32 0.0, %v2595
    %v2597 = vpop.f32.mrf.mxu0
    %2598 = vmatprep.mubr.f32.mxu0 %v2491
    %2599 = vmatmul.mubr.f32.gmra.mxu0 %v2490
    %v2600 = vpop.f32.mrf.mxu0
    %v2601 = vadd.f32 0.0, %v2600
    %v2602 = vpop.f32.mrf.mxu0
    %2603 = vmatprep.mubr.f32.mxu0 %v2489
    %2604 = vmatmul.mubr.f32.gmra.mxu0 %v2488
    %v2605 = vpop.f32.mrf.mxu0
    %v2606 = vadd.f32 0.0, %v2605
    %v2607 = vpop.f32.mrf.mxu0
    %2608 = vmatprep.mubr.f32.mxu0 %v2487
    %2609 = vmatmul.mubr.f32.gmra.mxu0 %v2486
    %v2610 = vpop.f32.mrf.mxu0
    %v2611 = vadd.f32 0.0, %v2610
    %v2612 = vpop.f32.mrf.mxu0
    %2613 = vmatprep.mubr.f32.mxu0 %v2485
    %2614 = vmatmul.mubr.f32.gmra.mxu0 %v2484
    %v2615 = vpop.f32.mrf.mxu0
    %v2616 = vadd.f32 0.0, %v2615
    %v2617 = vpop.f32.mrf.mxu0
    %2618 = vmatprep.mubr.f32.mxu0 %v2483
    %2619 = vmatmul.mubr.f32.gmra.mxu0 %v2482
    %v2620 = vpop.f32.mrf.mxu0
    %v2621 = vadd.f32 0.0, %v2620
    %v2622 = vpop.f32.mrf.mxu0
    %2623 = vmatprep.mubr.f32.mxu0 %v2481
    %2624 = vmatmul.mubr.f32.gmra.mxu0 %v2480
    %v2625 = vpop.f32.mrf.mxu0
    %v2626 = vadd.f32 0.0, %v2625
    %v2627 = vpop.f32.mrf.mxu0
    %2628 = vmatprep.mubr.f32.mxu0 %v2479
    %2629 = vmatmul.mubr.f32.gmra.mxu0 %v2478
    %v2630 = vpop.f32.mrf.mxu0
    %v2631 = vadd.f32 0.0, %v2630
    %v2632 = vpop.f32.mrf.mxu0
    %2633 = vmatprep.mubr.f32.mxu0 %v2495
    %2634 = vmatmul.mubr.f32.gmra.mxu0 %v2494
    %v2635 = vpop.f32.mrf.mxu0
    %v2636 = vadd.f32 0.0, %v2635
    %v2637 = vpop.f32.mrf.mxu0
    %2638 = vdwg.mxu0
    %v2639 = vadd.f32 %v2451, %v2596
    %v2640 = vadd.f32 %v2452, %v2601
    %v2641 = vadd.f32 %v2453, %v2606
    %v2642 = vadd.f32 %v2454, %v2611
    %v2643 = vadd.f32 %v2455, %v2616
    %v2644 = vadd.f32 %v2456, %v2621
    %v2645 = vadd.f32 %v2457, %v2626
    %v2646 = vadd.f32 %v2458, %v2631
    %v2647 = vadd.f32 %v2459, %v2636
    %s2648 = scalar_lea.vmem [#allocation4], 1280
    %v2649 = vld [vmem:[%s2648] sm:$0xff]
    %v2650 = vld [vmem:[%s2648 + $0x8] sm:$0xff]
    %v2651 = vld [vmem:[%s2648 + $0x10] sm:$0xff]
    %v2652 = vld [vmem:[%s2648 + $0x18] sm:$0xff]
    %v2653 = vld [vmem:[%s2648 + $0x20] sm:$0xff]
    %v2654 = vld [vmem:[%s2648 + $0x28] sm:$0xff]
    %v2655 = vld [vmem:[%s2648 + $0x30] sm:$0xff]
    %v2656 = vld [vmem:[%s2648 + $0x38] sm:$0xff]
    %v2657 = vld [vmem:[%s2648 + $0x40] sm:$0xff]
    %v2658 = vld [vmem:[%s2648 + $0x48] sm:$0xff]
    %v2659 = vld [vmem:[%s2648 + $0x50] sm:$0xff]
    %v2660 = vld [vmem:[%s2648 + $0x58] sm:$0xff]
    %v2661 = vld [vmem:[%s2648 + $0x60] sm:$0xff]
    %v2662 = vld [vmem:[%s2648 + $0x68] sm:$0xff]
    %v2663 = vld [vmem:[%s2648 + $0x70] sm:$0xff]
    %v2664 = vld [vmem:[%s2648 + $0x78] sm:$0xff]
    %v2665 = vld [vmem:[%s2648 + $0x80] sm:$0xff]
    %v2666 = vld [vmem:[%s2648 + $0x88] sm:$0xff]
    %v2667 = vld [vmem:[%s2648 + $0x90] sm:$0xff]
    %v2668 = vld [vmem:[%s2648 + $0x98] sm:$0xff]
    %v2669 = vld [vmem:[%s2648 + $0xa0] sm:$0xff]
    %v2670 = vld [vmem:[%s2648 + $0xa8] sm:$0xff]
    %v2671 = vld [vmem:[%s2648 + $0xb0] sm:$0xff]
    %v2672 = vld [vmem:[%s2648 + $0xb8] sm:$0xff]
    %v2673 = vld [vmem:[%s2648 + $0xc0] sm:$0xff]
    %v2674 = vld [vmem:[%s2648 + $0xc8] sm:$0xff]
    %v2675 = vld [vmem:[%s2648 + $0xd0] sm:$0xff]
    %v2676 = vld [vmem:[%s2648 + $0xd8] sm:$0xff]
    %v2677 = vld [vmem:[%s2648 + $0xe0] sm:$0xff]
    %v2678 = vld [vmem:[%s2648 + $0xe8] sm:$0xff]
    %v2679 = vld [vmem:[%s2648 + $0xf0] sm:$0xff]
    %v2680 = vld [vmem:[%s2648 + $0xf8] sm:$0xff]
    %2681 = vmatprep.subr.mxu0 0.0
    %2682 = vmatpush1.msra.mxu0 %v2664
    %2683 = vmatprep.subr.mxu0 0.0
    %2684 = vmatpush1.msra.mxu0 %v2663
    %2685 = vmatprep.subr.mxu0 0.0
    %2686 = vmatpush1.msra.mxu0 %v2662
    %2687 = vmatprep.subr.mxu0 0.0
    %2688 = vmatpush1.msra.mxu0 %v2661
    %2689 = vmatprep.subr.mxu0 0.0
    %2690 = vmatpush1.msra.mxu0 %v2660
    %2691 = vmatprep.subr.mxu0 0.0
    %2692 = vmatpush1.msra.mxu0 %v2659
    %2693 = vmatprep.subr.mxu0 0.0
    %2694 = vmatpush1.msra.mxu0 %v2658
    %2695 = vmatprep.subr.mxu0 0.0
    %2696 = vmatpush1.msra.mxu0 %v2657
    %2697 = vmatprep.subr.mxu0 0.0
    %2698 = vmatpush1.msra.mxu0 %v2656
    %2699 = vmatprep.subr.mxu0 0.0
    %2700 = vmatpush1.msra.mxu0 %v2655
    %2701 = vmatprep.subr.mxu0 0.0
    %2702 = vmatpush1.msra.mxu0 %v2654
    %2703 = vmatprep.subr.mxu0 0.0
    %2704 = vmatpush1.msra.mxu0 %v2653
    %2705 = vmatprep.subr.mxu0 0.0
    %2706 = vmatpush1.msra.mxu0 %v2652
    %2707 = vmatprep.subr.mxu0 0.0
    %2708 = vmatpush1.msra.mxu0 %v2651
    %2709 = vmatprep.subr.mxu0 0.0
    %2710 = vmatpush1.msra.mxu0 %v2650
    %2711 = vmatprep.subr.mxu0 0.0
    %2712 = vmatpush1.msra.mxu0 %v2649
    %2713 = vmatprep.subr.mxu0 0.0
    %2714 = vmatpush2.msra.mxu0 %v2680
    %2715 = vmatprep.subr.mxu0 0.0
    %2716 = vmatpush2.msra.mxu0 %v2679
    %2717 = vmatprep.subr.mxu0 0.0
    %2718 = vmatpush2.msra.mxu0 %v2678
    %2719 = vmatprep.subr.mxu0 0.0
    %2720 = vmatpush2.msra.mxu0 %v2677
    %2721 = vmatprep.subr.mxu0 0.0
    %2722 = vmatpush2.msra.mxu0 %v2676
    %2723 = vmatprep.subr.mxu0 0.0
    %2724 = vmatpush2.msra.mxu0 %v2675
    %2725 = vmatprep.subr.mxu0 0.0
    %2726 = vmatpush2.msra.mxu0 %v2674
    %2727 = vmatprep.subr.mxu0 0.0
    %2728 = vmatpush2.msra.mxu0 %v2673
    %2729 = vmatprep.subr.mxu0 0.0
    %2730 = vmatpush2.msra.mxu0 %v2672
    %2731 = vmatprep.subr.mxu0 0.0
    %2732 = vmatpush2.msra.mxu0 %v2671
    %2733 = vmatprep.subr.mxu0 0.0
    %2734 = vmatpush2.msra.mxu0 %v2670
    %2735 = vmatprep.subr.mxu0 0.0
    %2736 = vmatpush2.msra.mxu0 %v2669
    %2737 = vmatprep.subr.mxu0 0.0
    %2738 = vmatpush2.msra.mxu0 %v2668
    %2739 = vmatprep.subr.mxu0 0.0
    %2740 = vmatpush2.msra.mxu0 %v2667
    %2741 = vmatprep.subr.mxu0 0.0
    %2742 = vmatpush2.msra.mxu0 %v2666
    %2743 = vmatprep.subr.mxu0 0.0
    %2744 = vmatpush2.msra.mxu0 %v2665
    %2745 = vmatprep.mubr.f32.mxu0 %v1747
    %2746 = vmatmul.mubr.f32.gmra.mxu0 %v1746
    %v2747 = vpop.f32.mrf.mxu0
    %v2748 = vadd.f32 0.0, %v2747
    %v2749 = vpop.f32.mrf.mxu0
    %2750 = vmatprep.mubr.f32.mxu0 %v1749
    %2751 = vmatmul.mubr.f32.gmra.mxu0 %v1748
    %v2752 = vpop.f32.mrf.mxu0
    %v2753 = vadd.f32 0.0, %v2752
    %v2754 = vpop.f32.mrf.mxu0
    %2755 = vmatprep.mubr.f32.mxu0 %v1751
    %2756 = vmatmul.mubr.f32.gmra.mxu0 %v1750
    %v2757 = vpop.f32.mrf.mxu0
    %v2758 = vadd.f32 0.0, %v2757
    %v2759 = vpop.f32.mrf.mxu0
    %2760 = vmatprep.mubr.f32.mxu0 %v1753
    %2761 = vmatmul.mubr.f32.gmra.mxu0 %v1752
    %v2762 = vpop.f32.mrf.mxu0
    %v2763 = vadd.f32 0.0, %v2762
    %v2764 = vpop.f32.mrf.mxu0
    %2765 = vmatprep.mubr.f32.mxu0 %v1755
    %2766 = vmatmul.mubr.f32.gmra.mxu0 %v1754
    %v2767 = vpop.f32.mrf.mxu0
    %v2768 = vadd.f32 0.0, %v2767
    %v2769 = vpop.f32.mrf.mxu0
    %2770 = vmatprep.mubr.f32.mxu0 %v1757
    %2771 = vmatmul.mubr.f32.gmra.mxu0 %v1756
    %v2772 = vpop.f32.mrf.mxu0
    %v2773 = vadd.f32 0.0, %v2772
    %v2774 = vpop.f32.mrf.mxu0
    %2775 = vmatprep.mubr.f32.mxu0 %v1759
    %2776 = vmatmul.mubr.f32.gmra.mxu0 %v1758
    %v2777 = vpop.f32.mrf.mxu0
    %v2778 = vadd.f32 0.0, %v2777
    %v2779 = vpop.f32.mrf.mxu0
    %2780 = vmatprep.mubr.f32.mxu0 %v1761
    %2781 = vmatmul.mubr.f32.gmra.mxu0 %v1760
    %v2782 = vpop.f32.mrf.mxu0
    %v2783 = vadd.f32 0.0, %v2782
    %v2784 = vpop.f32.mrf.mxu0
    %2785 = vmatprep.mubr.f32.mxu0 %v1745
    %2786 = vmatmul.mubr.f32.gmra.mxu0 %v1744
    %v2787 = vpop.f32.mrf.mxu0
    %v2788 = vadd.f32 0.0, %v2787
    %v2789 = vpop.f32.mrf.mxu0
    %2790 = vdwg.mxu0
    %v2791 = vadd.f32 %v2639, %v2748
    %v2792 = vadd.f32 %v2640, %v2753
    %v2793 = vadd.f32 %v2641, %v2758
    %v2794 = vadd.f32 %v2642, %v2763
    %v2795 = vadd.f32 %v2643, %v2768
    %v2796 = vadd.f32 %v2644, %v2773
    %v2797 = vadd.f32 %v2645, %v2778
    %v2798 = vadd.f32 %v2646, %v2783
    %v2799 = vadd.f32 %v2647, %v2788
    %v2800 = vrot.slane %v1744, 4
    %v2801 = vrot.slane %v1745, 4
    %v2802 = vrot.slane %v1746, 4
    %v2803 = vrot.slane %v1747, 4
    %v2804 = vrot.slane %v1748, 4
    %v2805 = vrot.slane %v1749, 4
    %v2806 = vrot.slane %v1750, 4
    %v2807 = vrot.slane %v1751, 4
    %v2808 = vrot.slane %v1752, 4
    %v2809 = vrot.slane %v1753, 4
    %v2810 = vrot.slane %v1754, 4
    %v2811 = vrot.slane %v1755, 4
    %v2812 = vrot.slane %v1756, 4
    %v2813 = vrot.slane %v1757, 4
    %v2814 = vrot.slane %v1758, 4
    %v2815 = vrot.slane %v1759, 4
    %v2816 = vrot.slane %v1760, 4
    %v2817 = vrot.slane %v1761, 4
    %vm2818 = vcmp.lt.s32.totalorder %v61, 4
    %v2819 = vsel %vm2818, %v2814, %v2816
    %v2820 = vsel %vm2818, %v2815, %v2817
    %v2821 = vsel %vm2818, %v2812, %v2814
    %v2822 = vsel %vm2818, %v2813, %v2815
    %v2823 = vsel %vm2818, %v2810, %v2812
    %v2824 = vsel %vm2818, %v2811, %v2813
    %v2825 = vsel %vm2818, %v2808, %v2810
    %v2826 = vsel %vm2818, %v2809, %v2811
    %v2827 = vsel %vm2818, %v2806, %v2808
    %v2828 = vsel %vm2818, %v2807, %v2809
    %v2829 = vsel %vm2818, %v2804, %v2806
    %v2830 = vsel %vm2818, %v2805, %v2807
    %v2831 = vsel %vm2818, %v2802, %v2804
    %v2832 = vsel %vm2818, %v2803, %v2805
    %v2833 = vsel %vm2818, %v2800, %v2802
    %v2834 = vsel %vm2818, %v2801, %v2803
    %v2835 = vsel %vm2818, %v2816, %v2800
    %v2836 = vsel %vm2818, %v2817, %v2801
    %s2837 = scalar_lea.vmem [#allocation4], 1536
    %v2838 = vld [vmem:[%s2837] sm:$0xff]
    %v2839 = vld [vmem:[%s2837 + $0x8] sm:$0xff]
    %v2840 = vld [vmem:[%s2837 + $0x10] sm:$0xff]
    %v2841 = vld [vmem:[%s2837 + $0x18] sm:$0xff]
    %v2842 = vld [vmem:[%s2837 + $0x20] sm:$0xff]
    %v2843 = vld [vmem:[%s2837 + $0x28] sm:$0xff]
    %v2844 = vld [vmem:[%s2837 + $0x30] sm:$0xff]
    %v2845 = vld [vmem:[%s2837 + $0x38] sm:$0xff]
    %v2846 = vld [vmem:[%s2837 + $0x40] sm:$0xff]
    %v2847 = vld [vmem:[%s2837 + $0x48] sm:$0xff]
    %v2848 = vld [vmem:[%s2837 + $0x50] sm:$0xff]
    %v2849 = vld [vmem:[%s2837 + $0x58] sm:$0xff]
    %v2850 = vld [vmem:[%s2837 + $0x60] sm:$0xff]
    %v2851 = vld [vmem:[%s2837 + $0x68] sm:$0xff]
    %v2852 = vld [vmem:[%s2837 + $0x70] sm:$0xff]
    %v2853 = vld [vmem:[%s2837 + $0x78] sm:$0xff]
    %v2854 = vld [vmem:[%s2837 + $0x80] sm:$0xff]
    %v2855 = vld [vmem:[%s2837 + $0x88] sm:$0xff]
    %v2856 = vld [vmem:[%s2837 + $0x90] sm:$0xff]
    %v2857 = vld [vmem:[%s2837 + $0x98] sm:$0xff]
    %v2858 = vld [vmem:[%s2837 + $0xa0] sm:$0xff]
    %v2859 = vld [vmem:[%s2837 + $0xa8] sm:$0xff]
    %v2860 = vld [vmem:[%s2837 + $0xb0] sm:$0xff]
    %v2861 = vld [vmem:[%s2837 + $0xb8] sm:$0xff]
    %v2862 = vld [vmem:[%s2837 + $0xc0] sm:$0xff]
    %v2863 = vld [vmem:[%s2837 + $0xc8] sm:$0xff]
    %v2864 = vld [vmem:[%s2837 + $0xd0] sm:$0xff]
    %v2865 = vld [vmem:[%s2837 + $0xd8] sm:$0xff]
    %v2866 = vld [vmem:[%s2837 + $0xe0] sm:$0xff]
    %v2867 = vld [vmem:[%s2837 + $0xe8] sm:$0xff]
    %v2868 = vld [vmem:[%s2837 + $0xf0] sm:$0xff]
    %v2869 = vld [vmem:[%s2837 + $0xf8] sm:$0xff]
    %2870 = vmatprep.subr.mxu0 0.0
    %2871 = vmatpush1.msra.mxu0 %v2853
    %2872 = vmatprep.subr.mxu0 0.0
    %2873 = vmatpush1.msra.mxu0 %v2852
    %2874 = vmatprep.subr.mxu0 0.0
    %2875 = vmatpush1.msra.mxu0 %v2851
    %2876 = vmatprep.subr.mxu0 0.0
    %2877 = vmatpush1.msra.mxu0 %v2850
    %2878 = vmatprep.subr.mxu0 0.0
    %2879 = vmatpush1.msra.mxu0 %v2849
    %2880 = vmatprep.subr.mxu0 0.0
    %2881 = vmatpush1.msra.mxu0 %v2848
    %2882 = vmatprep.subr.mxu0 0.0
    %2883 = vmatpush1.msra.mxu0 %v2847
    %2884 = vmatprep.subr.mxu0 0.0
    %2885 = vmatpush1.msra.mxu0 %v2846
    %2886 = vmatprep.subr.mxu0 0.0
    %2887 = vmatpush1.msra.mxu0 %v2845
    %2888 = vmatprep.subr.mxu0 0.0
    %2889 = vmatpush1.msra.mxu0 %v2844
    %2890 = vmatprep.subr.mxu0 0.0
    %2891 = vmatpush1.msra.mxu0 %v2843
    %2892 = vmatprep.subr.mxu0 0.0
    %2893 = vmatpush1.msra.mxu0 %v2842
    %2894 = vmatprep.subr.mxu0 0.0
    %2895 = vmatpush1.msra.mxu0 %v2841
    %2896 = vmatprep.subr.mxu0 0.0
    %2897 = vmatpush1.msra.mxu0 %v2840
    %2898 = vmatprep.subr.mxu0 0.0
    %2899 = vmatpush1.msra.mxu0 %v2839
    %2900 = vmatprep.subr.mxu0 0.0
    %2901 = vmatpush1.msra.mxu0 %v2838
    %2902 = vmatprep.subr.mxu0 0.0
    %2903 = vmatpush2.msra.mxu0 %v2869
    %2904 = vmatprep.subr.mxu0 0.0
    %2905 = vmatpush2.msra.mxu0 %v2868
    %2906 = vmatprep.subr.mxu0 0.0
    %2907 = vmatpush2.msra.mxu0 %v2867
    %2908 = vmatprep.subr.mxu0 0.0
    %2909 = vmatpush2.msra.mxu0 %v2866
    %2910 = vmatprep.subr.mxu0 0.0
    %2911 = vmatpush2.msra.mxu0 %v2865
    %2912 = vmatprep.subr.mxu0 0.0
    %2913 = vmatpush2.msra.mxu0 %v2864
    %2914 = vmatprep.subr.mxu0 0.0
    %2915 = vmatpush2.msra.mxu0 %v2863
    %2916 = vmatprep.subr.mxu0 0.0
    %2917 = vmatpush2.msra.mxu0 %v2862
    %2918 = vmatprep.subr.mxu0 0.0
    %2919 = vmatpush2.msra.mxu0 %v2861
    %2920 = vmatprep.subr.mxu0 0.0
    %2921 = vmatpush2.msra.mxu0 %v2860
    %2922 = vmatprep.subr.mxu0 0.0
    %2923 = vmatpush2.msra.mxu0 %v2859
    %2924 = vmatprep.subr.mxu0 0.0
    %2925 = vmatpush2.msra.mxu0 %v2858
    %2926 = vmatprep.subr.mxu0 0.0
    %2927 = vmatpush2.msra.mxu0 %v2857
    %2928 = vmatprep.subr.mxu0 0.0
    %2929 = vmatpush2.msra.mxu0 %v2856
    %2930 = vmatprep.subr.mxu0 0.0
    %2931 = vmatpush2.msra.mxu0 %v2855
    %2932 = vmatprep.subr.mxu0 0.0
    %2933 = vmatpush2.msra.mxu0 %v2854
    %2934 = vmatprep.mubr.f32.mxu0 %v2832
    %2935 = vmatmul.mubr.f32.gmra.mxu0 %v2831
    %v2936 = vpop.f32.mrf.mxu0
    %v2937 = vadd.f32 0.0, %v2936
    %v2938 = vpop.f32.mrf.mxu0
    %2939 = vmatprep.mubr.f32.mxu0 %v2830
    %2940 = vmatmul.mubr.f32.gmra.mxu0 %v2829
    %v2941 = vpop.f32.mrf.mxu0
    %v2942 = vadd.f32 0.0, %v2941
    %v2943 = vpop.f32.mrf.mxu0
    %2944 = vmatprep.mubr.f32.mxu0 %v2828
    %2945 = vmatmul.mubr.f32.gmra.mxu0 %v2827
    %v2946 = vpop.f32.mrf.mxu0
    %v2947 = vadd.f32 0.0, %v2946
    %v2948 = vpop.f32.mrf.mxu0
    %2949 = vmatprep.mubr.f32.mxu0 %v2826
    %2950 = vmatmul.mubr.f32.gmra.mxu0 %v2825
    %v2951 = vpop.f32.mrf.mxu0
    %v2952 = vadd.f32 0.0, %v2951
    %v2953 = vpop.f32.mrf.mxu0
    %2954 = vmatprep.mubr.f32.mxu0 %v2824
    %2955 = vmatmul.mubr.f32.gmra.mxu0 %v2823
    %v2956 = vpop.f32.mrf.mxu0
    %v2957 = vadd.f32 0.0, %v2956
    %v2958 = vpop.f32.mrf.mxu0
    %2959 = vmatprep.mubr.f32.mxu0 %v2822
    %2960 = vmatmul.mubr.f32.gmra.mxu0 %v2821
    %v2961 = vpop.f32.mrf.mxu0
    %v2962 = vadd.f32 0.0, %v2961
    %v2963 = vpop.f32.mrf.mxu0
    %2964 = vmatprep.mubr.f32.mxu0 %v2820
    %2965 = vmatmul.mubr.f32.gmra.mxu0 %v2819
    %v2966 = vpop.f32.mrf.mxu0
    %v2967 = vadd.f32 0.0, %v2966
    %v2968 = vpop.f32.mrf.mxu0
    %2969 = vmatprep.mubr.f32.mxu0 %v2836
    %2970 = vmatmul.mubr.f32.gmra.mxu0 %v2835
    %v2971 = vpop.f32.mrf.mxu0
    %v2972 = vadd.f32 0.0, %v2971
    %v2973 = vpop.f32.mrf.mxu0
    %2974 = vmatprep.mubr.f32.mxu0 %v2834
    %2975 = vmatmul.mubr.f32.gmra.mxu0 %v2833
    %v2976 = vpop.f32.mrf.mxu0
    %v2977 = vadd.f32 0.0, %v2976
    %v2978 = vpop.f32.mrf.mxu0
    %2979 = vdwg.mxu0
    %v2980 = vadd.f32 %v2791, %v2937
    %v2981 = vadd.f32 %v2792, %v2942
    %v2982 = vadd.f32 %v2793, %v2947
    %v2983 = vadd.f32 %v2794, %v2952
    %v2984 = vadd.f32 %v2795, %v2957
    %v2985 = vadd.f32 %v2796, %v2962
    %v2986 = vadd.f32 %v2797, %v2967
    %v2987 = vadd.f32 %v2798, %v2972
    %v2988 = vadd.f32 %v2799, %v2977
    %v2989 = vrot.slane %v1744, 5
    %v2990 = vrot.slane %v1745, 5
    %v2991 = vrot.slane %v1746, 5
    %v2992 = vrot.slane %v1747, 5
    %v2993 = vrot.slane %v1748, 5
    %v2994 = vrot.slane %v1749, 5
    %v2995 = vrot.slane %v1750, 5
    %v2996 = vrot.slane %v1751, 5
    %v2997 = vrot.slane %v1752, 5
    %v2998 = vrot.slane %v1753, 5
    %v2999 = vrot.slane %v1754, 5
    %v3000 = vrot.slane %v1755, 5
    %v3001 = vrot.slane %v1756, 5
    %v3002 = vrot.slane %v1757, 5
    %v3003 = vrot.slane %v1758, 5
    %v3004 = vrot.slane %v1759, 5
    %v3005 = vrot.slane %v1760, 5
    %v3006 = vrot.slane %v1761, 5
    %vm3007 = vcmp.lt.s32.totalorder %v61, 3
    %v3008 = vsel %vm3007, %v3003, %v3005
    %v3009 = vsel %vm3007, %v3004, %v3006
    %v3010 = vsel %vm3007, %v3001, %v3003
    %v3011 = vsel %vm3007, %v3002, %v3004
    %v3012 = vsel %vm3007, %v2999, %v3001
    %v3013 = vsel %vm3007, %v3000, %v3002
    %v3014 = vsel %vm3007, %v2997, %v2999
    %v3015 = vsel %vm3007, %v2998, %v3000
    %v3016 = vsel %vm3007, %v2995, %v2997
    %v3017 = vsel %vm3007, %v2996, %v2998
    %v3018 = vsel %vm3007, %v2993, %v2995
    %v3019 = vsel %vm3007, %v2994, %v2996
    %v3020 = vsel %vm3007, %v2991, %v2993
    %v3021 = vsel %vm3007, %v2992, %v2994
    %v3022 = vsel %vm3007, %v2989, %v2991
    %v3023 = vsel %vm3007, %v2990, %v2992
    %v3024 = vsel %vm3007, %v3005, %v2989
    %v3025 = vsel %vm3007, %v3006, %v2990
    %s3026 = scalar_lea.vmem [#allocation4], 1792
    %v3027 = vld [vmem:[%s3026] sm:$0xff]
    %v3028 = vld [vmem:[%s3026 + $0x8] sm:$0xff]
    %v3029 = vld [vmem:[%s3026 + $0x10] sm:$0xff]
    %v3030 = vld [vmem:[%s3026 + $0x18] sm:$0xff]
    %v3031 = vld [vmem:[%s3026 + $0x20] sm:$0xff]
    %v3032 = vld [vmem:[%s3026 + $0x28] sm:$0xff]
    %v3033 = vld [vmem:[%s3026 + $0x30] sm:$0xff]
    %v3034 = vld [vmem:[%s3026 + $0x38] sm:$0xff]
    %v3035 = vld [vmem:[%s3026 + $0x40] sm:$0xff]
    %v3036 = vld [vmem:[%s3026 + $0x48] sm:$0xff]
    %v3037 = vld [vmem:[%s3026 + $0x50] sm:$0xff]
    %v3038 = vld [vmem:[%s3026 + $0x58] sm:$0xff]
    %v3039 = vld [vmem:[%s3026 + $0x60] sm:$0xff]
    %v3040 = vld [vmem:[%s3026 + $0x68] sm:$0xff]
    %v3041 = vld [vmem:[%s3026 + $0x70] sm:$0xff]
    %v3042 = vld [vmem:[%s3026 + $0x78] sm:$0xff]
    %v3043 = vld [vmem:[%s3026 + $0x80] sm:$0xff]
    %v3044 = vld [vmem:[%s3026 + $0x88] sm:$0xff]
    %v3045 = vld [vmem:[%s3026 + $0x90] sm:$0xff]
    %v3046 = vld [vmem:[%s3026 + $0x98] sm:$0xff]
    %v3047 = vld [vmem:[%s3026 + $0xa0] sm:$0xff]
    %v3048 = vld [vmem:[%s3026 + $0xa8] sm:$0xff]
    %v3049 = vld [vmem:[%s3026 + $0xb0] sm:$0xff]
    %v3050 = vld [vmem:[%s3026 + $0xb8] sm:$0xff]
    %v3051 = vld [vmem:[%s3026 + $0xc0] sm:$0xff]
    %v3052 = vld [vmem:[%s3026 + $0xc8] sm:$0xff]
    %v3053 = vld [vmem:[%s3026 + $0xd0] sm:$0xff]
    %v3054 = vld [vmem:[%s3026 + $0xd8] sm:$0xff]
    %v3055 = vld [vmem:[%s3026 + $0xe0] sm:$0xff]
    %v3056 = vld [vmem:[%s3026 + $0xe8] sm:$0xff]
    %v3057 = vld [vmem:[%s3026 + $0xf0] sm:$0xff]
    %v3058 = vld [vmem:[%s3026 + $0xf8] sm:$0xff]
    %3059 = vmatprep.subr.mxu0 0.0
    %3060 = vmatpush1.msra.mxu0 %v3042
    %3061 = vmatprep.subr.mxu0 0.0
    %3062 = vmatpush1.msra.mxu0 %v3041
    %3063 = vmatprep.subr.mxu0 0.0
    %3064 = vmatpush1.msra.mxu0 %v3040
    %3065 = vmatprep.subr.mxu0 0.0
    %3066 = vmatpush1.msra.mxu0 %v3039
    %3067 = vmatprep.subr.mxu0 0.0
    %3068 = vmatpush1.msra.mxu0 %v3038
    %3069 = vmatprep.subr.mxu0 0.0
    %3070 = vmatpush1.msra.mxu0 %v3037
    %3071 = vmatprep.subr.mxu0 0.0
    %3072 = vmatpush1.msra.mxu0 %v3036
    %3073 = vmatprep.subr.mxu0 0.0
    %3074 = vmatpush1.msra.mxu0 %v3035
    %3075 = vmatprep.subr.mxu0 0.0
    %3076 = vmatpush1.msra.mxu0 %v3034
    %3077 = vmatprep.subr.mxu0 0.0
    %3078 = vmatpush1.msra.mxu0 %v3033
    %3079 = vmatprep.subr.mxu0 0.0
    %3080 = vmatpush1.msra.mxu0 %v3032
    %3081 = vmatprep.subr.mxu0 0.0
    %3082 = vmatpush1.msra.mxu0 %v3031
    %3083 = vmatprep.subr.mxu0 0.0
    %3084 = vmatpush1.msra.mxu0 %v3030
    %3085 = vmatprep.subr.mxu0 0.0
    %3086 = vmatpush1.msra.mxu0 %v3029
    %3087 = vmatprep.subr.mxu0 0.0
    %3088 = vmatpush1.msra.mxu0 %v3028
    %3089 = vmatprep.subr.mxu0 0.0
    %3090 = vmatpush1.msra.mxu0 %v3027
    %3091 = vmatprep.subr.mxu0 0.0
    %3092 = vmatpush2.msra.mxu0 %v3058
    %3093 = vmatprep.subr.mxu0 0.0
    %3094 = vmatpush2.msra.mxu0 %v3057
    %3095 = vmatprep.subr.mxu0 0.0
    %3096 = vmatpush2.msra.mxu0 %v3056
    %3097 = vmatprep.subr.mxu0 0.0
    %3098 = vmatpush2.msra.mxu0 %v3055
    %3099 = vmatprep.subr.mxu0 0.0
    %3100 = vmatpush2.msra.mxu0 %v3054
    %3101 = vmatprep.subr.mxu0 0.0
    %3102 = vmatpush2.msra.mxu0 %v3053
    %3103 = vmatprep.subr.mxu0 0.0
    %3104 = vmatpush2.msra.mxu0 %v3052
    %3105 = vmatprep.subr.mxu0 0.0
    %3106 = vmatpush2.msra.mxu0 %v3051
    %3107 = vmatprep.subr.mxu0 0.0
    %3108 = vmatpush2.msra.mxu0 %v3050
    %3109 = vmatprep.subr.mxu0 0.0
    %3110 = vmatpush2.msra.mxu0 %v3049
    %3111 = vmatprep.subr.mxu0 0.0
    %3112 = vmatpush2.msra.mxu0 %v3048
    %3113 = vmatprep.subr.mxu0 0.0
    %3114 = vmatpush2.msra.mxu0 %v3047
    %3115 = vmatprep.subr.mxu0 0.0
    %3116 = vmatpush2.msra.mxu0 %v3046
    %3117 = vmatprep.subr.mxu0 0.0
    %3118 = vmatpush2.msra.mxu0 %v3045
    %3119 = vmatprep.subr.mxu0 0.0
    %3120 = vmatpush2.msra.mxu0 %v3044
    %3121 = vmatprep.subr.mxu0 0.0
    %3122 = vmatpush2.msra.mxu0 %v3043
    %3123 = vmatprep.mubr.f32.mxu0 %v3021
    %3124 = vmatmul.mubr.f32.gmra.mxu0 %v3020
    %v3125 = vpop.f32.mrf.mxu0
    %v3126 = vadd.f32 0.0, %v3125
    %v3127 = vpop.f32.mrf.mxu0
    %3128 = vmatprep.mubr.f32.mxu0 %v3019
    %3129 = vmatmul.mubr.f32.gmra.mxu0 %v3018
    %v3130 = vpop.f32.mrf.mxu0
    %v3131 = vadd.f32 0.0, %v3130
    %v3132 = vpop.f32.mrf.mxu0
    %3133 = vmatprep.mubr.f32.mxu0 %v3017
    %3134 = vmatmul.mubr.f32.gmra.mxu0 %v3016
    %v3135 = vpop.f32.mrf.mxu0
    %v3136 = vadd.f32 0.0, %v3135
    %v3137 = vpop.f32.mrf.mxu0
    %3138 = vmatprep.mubr.f32.mxu0 %v3015
    %3139 = vmatmul.mubr.f32.gmra.mxu0 %v3014
    %v3140 = vpop.f32.mrf.mxu0
    %v3141 = vadd.f32 0.0, %v3140
    %v3142 = vpop.f32.mrf.mxu0
    %3143 = vmatprep.mubr.f32.mxu0 %v3013
    %3144 = vmatmul.mubr.f32.gmra.mxu0 %v3012
    %v3145 = vpop.f32.mrf.mxu0
    %v3146 = vadd.f32 0.0, %v3145
    %v3147 = vpop.f32.mrf.mxu0
    %3148 = vmatprep.mubr.f32.mxu0 %v3011
    %3149 = vmatmul.mubr.f32.gmra.mxu0 %v3010
    %v3150 = vpop.f32.mrf.mxu0
    %v3151 = vadd.f32 0.0, %v3150
    %v3152 = vpop.f32.mrf.mxu0
    %3153 = vmatprep.mubr.f32.mxu0 %v3009
    %3154 = vmatmul.mubr.f32.gmra.mxu0 %v3008
    %v3155 = vpop.f32.mrf.mxu0
    %v3156 = vadd.f32 0.0, %v3155
    %v3157 = vpop.f32.mrf.mxu0
    %3158 = vmatprep.mubr.f32.mxu0 %v3025
    %3159 = vmatmul.mubr.f32.gmra.mxu0 %v3024
    %v3160 = vpop.f32.mrf.mxu0
    %v3161 = vadd.f32 0.0, %v3160
    %v3162 = vpop.f32.mrf.mxu0
    %3163 = vmatprep.mubr.f32.mxu0 %v3023
    %3164 = vmatmul.mubr.f32.gmra.mxu0 %v3022
    %v3165 = vpop.f32.mrf.mxu0
    %v3166 = vadd.f32 0.0, %v3165
    %v3167 = vpop.f32.mrf.mxu0
    %3168 = vdwg.mxu0
    %v3169 = vadd.f32 %v2980, %v3126
    %v3170 = vadd.f32 %v2981, %v3131
    %v3171 = vadd.f32 %v2982, %v3136
    %v3172 = vadd.f32 %v2983, %v3141
    %v3173 = vadd.f32 %v2984, %v3146
    %v3174 = vadd.f32 %v2985, %v3151
    %v3175 = vadd.f32 %v2986, %v3156
    %v3176 = vadd.f32 %v2987, %v3161
    %v3177 = vadd.f32 %v2988, %v3166
    %s3178 = scalar_lea.vmem [#allocation4], 2048
    %v3179 = vld [vmem:[%s3178] sm:$0xff]
    %v3180 = vld [vmem:[%s3178 + $0x8] sm:$0xff]
    %v3181 = vld [vmem:[%s3178 + $0x10] sm:$0xff]
    %v3182 = vld [vmem:[%s3178 + $0x18] sm:$0xff]
    %v3183 = vld [vmem:[%s3178 + $0x20] sm:$0xff]
    %v3184 = vld [vmem:[%s3178 + $0x28] sm:$0xff]
    %v3185 = vld [vmem:[%s3178 + $0x30] sm:$0xff]
    %v3186 = vld [vmem:[%s3178 + $0x38] sm:$0xff]
    %v3187 = vld [vmem:[%s3178 + $0x40] sm:$0xff]
    %v3188 = vld [vmem:[%s3178 + $0x48] sm:$0xff]
    %v3189 = vld [vmem:[%s3178 + $0x50] sm:$0xff]
    %v3190 = vld [vmem:[%s3178 + $0x58] sm:$0xff]
    %v3191 = vld [vmem:[%s3178 + $0x60] sm:$0xff]
    %v3192 = vld [vmem:[%s3178 + $0x68] sm:$0xff]
    %v3193 = vld [vmem:[%s3178 + $0x70] sm:$0xff]
    %v3194 = vld [vmem:[%s3178 + $0x78] sm:$0xff]
    %v3195 = vld [vmem:[%s3178 + $0x80] sm:$0xff]
    %v3196 = vld [vmem:[%s3178 + $0x88] sm:$0xff]
    %v3197 = vld [vmem:[%s3178 + $0x90] sm:$0xff]
    %v3198 = vld [vmem:[%s3178 + $0x98] sm:$0xff]
    %v3199 = vld [vmem:[%s3178 + $0xa0] sm:$0xff]
    %v3200 = vld [vmem:[%s3178 + $0xa8] sm:$0xff]
    %v3201 = vld [vmem:[%s3178 + $0xb0] sm:$0xff]
    %v3202 = vld [vmem:[%s3178 + $0xb8] sm:$0xff]
    %v3203 = vld [vmem:[%s3178 + $0xc0] sm:$0xff]
    %v3204 = vld [vmem:[%s3178 + $0xc8] sm:$0xff]
    %v3205 = vld [vmem:[%s3178 + $0xd0] sm:$0xff]
    %v3206 = vld [vmem:[%s3178 + $0xd8] sm:$0xff]
    %v3207 = vld [vmem:[%s3178 + $0xe0] sm:$0xff]
    %v3208 = vld [vmem:[%s3178 + $0xe8] sm:$0xff]
    %v3209 = vld [vmem:[%s3178 + $0xf0] sm:$0xff]
    %v3210 = vld [vmem:[%s3178 + $0xf8] sm:$0xff]
    %3211 = vmatprep.subr.mxu0 0.0
    %3212 = vmatpush1.msra.mxu0 %v3194
    %3213 = vmatprep.subr.mxu0 0.0
    %3214 = vmatpush1.msra.mxu0 %v3193
    %3215 = vmatprep.subr.mxu0 0.0
    %3216 = vmatpush1.msra.mxu0 %v3192
    %3217 = vmatprep.subr.mxu0 0.0
    %3218 = vmatpush1.msra.mxu0 %v3191
    %3219 = vmatprep.subr.mxu0 0.0
    %3220 = vmatpush1.msra.mxu0 %v3190
    %3221 = vmatprep.subr.mxu0 0.0
    %3222 = vmatpush1.msra.mxu0 %v3189
    %3223 = vmatprep.subr.mxu0 0.0
    %3224 = vmatpush1.msra.mxu0 %v3188
    %3225 = vmatprep.subr.mxu0 0.0
    %3226 = vmatpush1.msra.mxu0 %v3187
    %3227 = vmatprep.subr.mxu0 0.0
    %3228 = vmatpush1.msra.mxu0 %v3186
    %3229 = vmatprep.subr.mxu0 0.0
    %3230 = vmatpush1.msra.mxu0 %v3185
    %3231 = vmatprep.subr.mxu0 0.0
    %3232 = vmatpush1.msra.mxu0 %v3184
    %3233 = vmatprep.subr.mxu0 0.0
    %3234 = vmatpush1.msra.mxu0 %v3183
    %3235 = vmatprep.subr.mxu0 0.0
    %3236 = vmatpush1.msra.mxu0 %v3182
    %3237 = vmatprep.subr.mxu0 0.0
    %3238 = vmatpush1.msra.mxu0 %v3181
    %3239 = vmatprep.subr.mxu0 0.0
    %3240 = vmatpush1.msra.mxu0 %v3180
    %3241 = vmatprep.subr.mxu0 0.0
    %3242 = vmatpush1.msra.mxu0 %v3179
    %3243 = vmatprep.subr.mxu0 0.0
    %3244 = vmatpush2.msra.mxu0 %v3210
    %3245 = vmatprep.subr.mxu0 0.0
    %3246 = vmatpush2.msra.mxu0 %v3209
    %3247 = vmatprep.subr.mxu0 0.0
    %3248 = vmatpush2.msra.mxu0 %v3208
    %3249 = vmatprep.subr.mxu0 0.0
    %3250 = vmatpush2.msra.mxu0 %v3207
    %3251 = vmatprep.subr.mxu0 0.0
    %3252 = vmatpush2.msra.mxu0 %v3206
    %3253 = vmatprep.subr.mxu0 0.0
    %3254 = vmatpush2.msra.mxu0 %v3205
    %3255 = vmatprep.subr.mxu0 0.0
    %3256 = vmatpush2.msra.mxu0 %v3204
    %3257 = vmatprep.subr.mxu0 0.0
    %3258 = vmatpush2.msra.mxu0 %v3203
    %3259 = vmatprep.subr.mxu0 0.0
    %3260 = vmatpush2.msra.mxu0 %v3202
    %3261 = vmatprep.subr.mxu0 0.0
    %3262 = vmatpush2.msra.mxu0 %v3201
    %3263 = vmatprep.subr.mxu0 0.0
    %3264 = vmatpush2.msra.mxu0 %v3200
    %3265 = vmatprep.subr.mxu0 0.0
    %3266 = vmatpush2.msra.mxu0 %v3199
    %3267 = vmatprep.subr.mxu0 0.0
    %3268 = vmatpush2.msra.mxu0 %v3198
    %3269 = vmatprep.subr.mxu0 0.0
    %3270 = vmatpush2.msra.mxu0 %v3197
    %3271 = vmatprep.subr.mxu0 0.0
    %3272 = vmatpush2.msra.mxu0 %v3196
    %3273 = vmatprep.subr.mxu0 0.0
    %3274 = vmatpush2.msra.mxu0 %v3195
    %3275 = vmatprep.mubr.f32.mxu0 %v2303
    %3276 = vmatmul.mubr.f32.gmra.mxu0 %v2302
    %v3277 = vpop.f32.mrf.mxu0
    %v3278 = vadd.f32 0.0, %v3277
    %v3279 = vpop.f32.mrf.mxu0
    %3280 = vmatprep.mubr.f32.mxu0 %v2301
    %3281 = vmatmul.mubr.f32.gmra.mxu0 %v2300
    %v3282 = vpop.f32.mrf.mxu0
    %v3283 = vadd.f32 0.0, %v3282
    %v3284 = vpop.f32.mrf.mxu0
    %3285 = vmatprep.mubr.f32.mxu0 %v2299
    %3286 = vmatmul.mubr.f32.gmra.mxu0 %v2298
    %v3287 = vpop.f32.mrf.mxu0
    %v3288 = vadd.f32 0.0, %v3287
    %v3289 = vpop.f32.mrf.mxu0
    %3290 = vmatprep.mubr.f32.mxu0 %v2297
    %3291 = vmatmul.mubr.f32.gmra.mxu0 %v2296
    %v3292 = vpop.f32.mrf.mxu0
    %v3293 = vadd.f32 0.0, %v3292
    %v3294 = vpop.f32.mrf.mxu0
    %3295 = vmatprep.mubr.f32.mxu0 %v2295
    %3296 = vmatmul.mubr.f32.gmra.mxu0 %v2294
    %v3297 = vpop.f32.mrf.mxu0
    %v3298 = vadd.f32 0.0, %v3297
    %v3299 = vpop.f32.mrf.mxu0
    %3300 = vmatprep.mubr.f32.mxu0 %v2293
    %3301 = vmatmul.mubr.f32.gmra.mxu0 %v2292
    %v3302 = vpop.f32.mrf.mxu0
    %v3303 = vadd.f32 0.0, %v3302
    %v3304 = vpop.f32.mrf.mxu0
    %3305 = vmatprep.mubr.f32.mxu0 %v2291
    %3306 = vmatmul.mubr.f32.gmra.mxu0 %v2290
    %v3307 = vpop.f32.mrf.mxu0
    %v3308 = vadd.f32 0.0, %v3307
    %v3309 = vpop.f32.mrf.mxu0
    %3310 = vmatprep.mubr.f32.mxu0 %v2307
    %3311 = vmatmul.mubr.f32.gmra.mxu0 %v2306
    %v3312 = vpop.f32.mrf.mxu0
    %v3313 = vadd.f32 0.0, %v3312
    %v3314 = vpop.f32.mrf.mxu0
    %3315 = vmatprep.mubr.f32.mxu0 %v2305
    %3316 = vmatmul.mubr.f32.gmra.mxu0 %v2304
    %v3317 = vpop.f32.mrf.mxu0
    %v3318 = vadd.f32 0.0, %v3317
    %v3319 = vpop.f32.mrf.mxu0
    %3320 = vdwg.mxu0
    %v3321 = vadd.f32 %v3169, %v3278
    %v3322 = vadd.f32 %v3170, %v3283
    %v3323 = vadd.f32 %v3171, %v3288
    %v3324 = vadd.f32 %v3172, %v3293
    %v3325 = vadd.f32 %v3173, %v3298
    %v3326 = vadd.f32 %v3174, %v3303
    %v3327 = vadd.f32 %v3175, %v3308
    %v3328 = vadd.f32 %v3176, %v3313
    %v3329 = vadd.f32 %v3177, %v3318
    %v3330 = vld [vmem:[#allocation2 + $0x5e0] ss:$0 sm:$0xff]
    %v3331 = vadd.f32 %v3321, %v3330
    %v3332 = vadd.f32 %v3322, %v3330
    %v3333 = vadd.f32 %v3323, %v3330
    %v3334 = vadd.f32 %v3324, %v3330
    %v3335 = vadd.f32 %v3325, %v3330
    %v3336 = vadd.f32 %v3326, %v3330
    %v3337 = vadd.f32 %v3327, %v3330
    %v3338 = vadd.f32 %v3328, %v3330
    %v3339 = vadd.f32 %v3329, %v3330
    %v3340 = vmax.f32 %v3331, 0.0
    %v3341 = vmax.f32 %v3332, 0.0
    %v3342 = vmax.f32 %v3333, 0.0
    %v3343 = vmax.f32 %v3334, 0.0
    %v3344 = vmax.f32 %v3335, 0.0
    %v3345 = vmax.f32 %v3336, 0.0
    %v3346 = vmax.f32 %v3337, 0.0
    %v3347 = vmax.f32 %v3338, 0.0
    %v3348 = vmax.f32 %v3339, 0.0
    %v3349 = vlaneseq
    %v3350 = vand.u32 %v3349, 127
    %v3351 = vmul.u32 %v61, 36
    %vm3352 = vcmp.eq.s32.totalorder %v3350, %v3351
    %v3353 = vsel %vm3352, 1, 0
    %v3354 = vcvt.s32.f32 %v3353
    %vm3355 = vcmask 588800
    %v3357 = vsel %vm3355, %v3354, 0
    %3359 = vmatprep.subr.mxu0 0.0
    %3360 = vmatpush1.msra.mxu0 0.0
    %3361 = vmatprep.subr.mxu0 0.0
    %3362 = vmatpush1.msra.mxu0 0.0
    %3363 = vmatprep.subr.mxu0 0.0
    %3364 = vmatpush1.msra.mxu0 0.0
    %3365 = vmatprep.subr.mxu0 0.0
    %3366 = vmatpush1.msra.mxu0 0.0
    %3367 = vmatprep.subr.mxu0 0.0
    %3368 = vmatpush1.msra.mxu0 0.0
    %3369 = vmatprep.subr.mxu0 0.0
    %3370 = vmatpush1.msra.mxu0 0.0
    %3371 = vmatprep.subr.mxu0 0.0
    %3372 = vmatpush1.msra.mxu0 0.0
    %3373 = vmatprep.subr.mxu0 0.0
    %3374 = vmatpush1.msra.mxu0 %v3348
    %3375 = vmatprep.subr.mxu0 0.0
    %3376 = vmatpush1.msra.mxu0 %v3347
    %3377 = vmatprep.subr.mxu0 0.0
    %3378 = vmatpush1.msra.mxu0 %v3346
    %3379 = vmatprep.subr.mxu0 0.0
    %3380 = vmatpush1.msra.mxu0 %v3345
    %3381 = vmatprep.subr.mxu0 0.0
    %3382 = vmatpush1.msra.mxu0 %v3344
    %3383 = vmatprep.subr.mxu0 0.0
    %3384 = vmatpush1.msra.mxu0 %v3343
    %3385 = vmatprep.subr.mxu0 0.0
    %3386 = vmatpush1.msra.mxu0 %v3342
    %3387 = vmatprep.subr.mxu0 0.0
    %3388 = vmatpush1.msra.mxu0 %v3341
    %3389 = vmatprep.subr.mxu0 0.0
    %3390 = vmatpush1.msra.mxu0 %v3340
    %3391 = vmatprep.subr.mxu0 0.0
    %3392 = vmatpush2.msra.mxu0 0.0
    %3393 = vmatprep.subr.mxu0 0.0
    %3394 = vmatpush2.msra.mxu0 0.0
    %3395 = vmatprep.subr.mxu0 0.0
    %3396 = vmatpush2.msra.mxu0 0.0
    %3397 = vmatprep.subr.mxu0 0.0
    %3398 = vmatpush2.msra.mxu0 0.0
    %3399 = vmatprep.subr.mxu0 0.0
    %3400 = vmatpush2.msra.mxu0 0.0
    %3401 = vmatprep.subr.mxu0 0.0
    %3402 = vmatpush2.msra.mxu0 0.0
    %3403 = vmatprep.subr.mxu0 0.0
    %3404 = vmatpush2.msra.mxu0 0.0
    %3405 = vmatprep.subr.mxu0 0.0
    %3406 = vmatpush2.msra.mxu0 0.0
    %3407 = vmatprep.subr.mxu0 0.0
    %3408 = vmatpush2.msra.mxu0 0.0
    %3409 = vmatprep.subr.mxu0 0.0
    %3410 = vmatpush2.msra.mxu0 0.0
    %3411 = vmatprep.subr.mxu0 0.0
    %3412 = vmatpush2.msra.mxu0 0.0
    %3413 = vmatprep.subr.mxu0 0.0
    %3414 = vmatpush2.msra.mxu0 0.0
    %3415 = vmatprep.subr.mxu0 0.0
    %3416 = vmatpush2.msra.mxu0 0.0
    %3417 = vmatprep.subr.mxu0 0.0
    %3418 = vmatpush2.msra.mxu0 0.0
    %3419 = vmatprep.subr.mxu0 0.0
    %3420 = vmatpush2.msra.mxu0 0.0
    %3421 = vmatprep.subr.mxu0 0.0
    %3422 = vmatpush2.msra.mxu0 0.0
    %3423 = vmatprep.mubr.f32.mxu0 0.0
    %3424 = vmatmul.mubr.f32.gmra.mxu0 %v3357
    %v3425 = vpop.f32.mrf.mxu0
    %v3426 = vadd.f32 0.0, %v3425
    %v3427 = vpop.f32.mrf.mxu0
    %3428 = vdwg.mxu0
    %v3429 = vld [vmem:[#allocation2 + $0x410] sm:$0x3f]
    %v3430 = vld [vmem:[#allocation2 + $0x418] sm:$0x3f]
    %v3431 = vadd.s32 %v3351, 1
    %vm3432 = vcmp.eq.s32.totalorder %v3350, %v3431
    %v3433 = vsel %vm3432, 1, 0
    %v3434 = vcvt.s32.f32 %v3433
    %v3436 = vsel %vm3355, %v3434, 0
    %3438 = vmatprep.subr.mxu0 0.0
    %3439 = vmatpush1.msra.mxu0 0.0
    %3440 = vmatprep.subr.mxu0 0.0
    %3441 = vmatpush1.msra.mxu0 0.0
    %3442 = vmatprep.subr.mxu0 0.0
    %3443 = vmatpush1.msra.mxu0 0.0
    %3444 = vmatprep.subr.mxu0 0.0
    %3445 = vmatpush1.msra.mxu0 0.0
    %3446 = vmatprep.subr.mxu0 0.0
    %3447 = vmatpush1.msra.mxu0 0.0
    %3448 = vmatprep.subr.mxu0 0.0
    %3449 = vmatpush1.msra.mxu0 0.0
    %3450 = vmatprep.subr.mxu0 0.0
    %3451 = vmatpush1.msra.mxu0 0.0
    %3452 = vmatprep.subr.mxu0 0.0
    %3453 = vmatpush1.msra.mxu0 %v3348
    %3454 = vmatprep.subr.mxu0 0.0
    %3455 = vmatpush1.msra.mxu0 %v3347
    %3456 = vmatprep.subr.mxu0 0.0
    %3457 = vmatpush1.msra.mxu0 %v3346
    %3458 = vmatprep.subr.mxu0 0.0
    %3459 = vmatpush1.msra.mxu0 %v3345
    %3460 = vmatprep.subr.mxu0 0.0
    %3461 = vmatpush1.msra.mxu0 %v3344
    %3462 = vmatprep.subr.mxu0 0.0
    %3463 = vmatpush1.msra.mxu0 %v3343
    %3464 = vmatprep.subr.mxu0 0.0
    %3465 = vmatpush1.msra.mxu0 %v3342
    %3466 = vmatprep.subr.mxu0 0.0
    %3467 = vmatpush1.msra.mxu0 %v3341
    %3468 = vmatprep.subr.mxu0 0.0
    %3469 = vmatpush1.msra.mxu0 %v3340
    %3470 = vmatprep.subr.mxu0 0.0
    %3471 = vmatpush2.msra.mxu0 0.0
    %3472 = vmatprep.subr.mxu0 0.0
    %3473 = vmatpush2.msra.mxu0 0.0
    %3474 = vmatprep.subr.mxu0 0.0
    %3475 = vmatpush2.msra.mxu0 0.0
    %3476 = vmatprep.subr.mxu0 0.0
    %3477 = vmatpush2.msra.mxu0 0.0
    %3478 = vmatprep.subr.mxu0 0.0
    %3479 = vmatpush2.msra.mxu0 0.0
    %3480 = vmatprep.subr.mxu0 0.0
    %3481 = vmatpush2.msra.mxu0 0.0
    %3482 = vmatprep.subr.mxu0 0.0
    %3483 = vmatpush2.msra.mxu0 0.0
    %3484 = vmatprep.subr.mxu0 0.0
    %3485 = vmatpush2.msra.mxu0 0.0
    %3486 = vmatprep.subr.mxu0 0.0
    %3487 = vmatpush2.msra.mxu0 0.0
    %3488 = vmatprep.subr.mxu0 0.0
    %3489 = vmatpush2.msra.mxu0 0.0
    %3490 = vmatprep.subr.mxu0 0.0
    %3491 = vmatpush2.msra.mxu0 0.0
    %3492 = vmatprep.subr.mxu0 0.0
    %3493 = vmatpush2.msra.mxu0 0.0
    %3494 = vmatprep.subr.mxu0 0.0
    %3495 = vmatpush2.msra.mxu0 0.0
    %3496 = vmatprep.subr.mxu0 0.0
    %3497 = vmatpush2.msra.mxu0 0.0
    %3498 = vmatprep.subr.mxu0 0.0
    %3499 = vmatpush2.msra.mxu0 0.0
    %3500 = vmatprep.subr.mxu0 0.0
    %3501 = vmatpush2.msra.mxu0 0.0
    %3502 = vmatprep.mubr.f32.mxu0 0.0
    %3503 = vmatmul.mubr.f32.gmra.mxu0 %v3436
    %v3504 = vpop.f32.mrf.mxu0
    %v3505 = vadd.f32 0.0, %v3504
    %v3506 = vpop.f32.mrf.mxu0
    %3507 = vdwg.mxu0
    %v3508 = vld [vmem:[#allocation2 + $0x420] sm:$0x3f]
    %v3509 = vld [vmem:[#allocation2 + $0x428] sm:$0x3f]
    %v3511 = vsel %vm238, %v3505, 0
    %vm3513 = vcmask 1045504
    %v3515 = vsel %vm3513, %v3508, 0
    %v3518 = vsel %vm3513, %v3509, 0
    %3520 = vmatprep.subr.mxu0 0.0
    %3521 = vmatpush1.msra.mxu0 0.0
    %3522 = vmatprep.subr.mxu0 0.0
    %3523 = vmatpush1.msra.mxu0 0.0
    %3524 = vmatprep.subr.mxu0 0.0
    %3525 = vmatpush1.msra.mxu0 0.0
    %3526 = vmatprep.subr.mxu0 0.0
    %3527 = vmatpush1.msra.mxu0 0.0
    %3528 = vmatprep.subr.mxu0 0.0
    %3529 = vmatpush1.msra.mxu0 0.0
    %3530 = vmatprep.subr.mxu0 0.0
    %3531 = vmatpush1.msra.mxu0 0.0
    %3532 = vmatprep.subr.mxu0 0.0
    %3533 = vmatpush1.msra.mxu0 0.0
    %3534 = vmatprep.subr.mxu0 0.0
    %3535 = vmatpush1.msra.mxu0 0.0
    %3536 = vmatprep.subr.mxu0 0.0
    %3537 = vmatpush1.msra.mxu0 0.0
    %3538 = vmatprep.subr.mxu0 0.0
    %3539 = vmatpush1.msra.mxu0 0.0
    %3540 = vmatprep.subr.mxu0 0.0
    %3541 = vmatpush1.msra.mxu0 0.0
    %3542 = vmatprep.subr.mxu0 0.0
    %3543 = vmatpush1.msra.mxu0 0.0
    %3544 = vmatprep.subr.mxu0 0.0
    %3545 = vmatpush1.msra.mxu0 0.0
    %3546 = vmatprep.subr.mxu0 0.0
    %3547 = vmatpush1.msra.mxu0 0.0
    %3548 = vmatprep.subr.mxu0 0.0
    %3549 = vmatpush1.msra.mxu0 0.0
    %3550 = vmatprep.subr.mxu0 %v3518
    %3551 = vmatpush1.msra.mxu0 %v3515
    %3552 = vmatprep.subr.mxu0 0.0
    %3553 = vmatpush2.msra.mxu0 0.0
    %3554 = vmatprep.subr.mxu0 0.0
    %3555 = vmatpush2.msra.mxu0 0.0
    %3556 = vmatprep.subr.mxu0 0.0
    %3557 = vmatpush2.msra.mxu0 0.0
    %3558 = vmatprep.subr.mxu0 0.0
    %3559 = vmatpush2.msra.mxu0 0.0
    %3560 = vmatprep.subr.mxu0 0.0
    %3561 = vmatpush2.msra.mxu0 0.0
    %3562 = vmatprep.subr.mxu0 0.0
    %3563 = vmatpush2.msra.mxu0 0.0
    %3564 = vmatprep.subr.mxu0 0.0
    %3565 = vmatpush2.msra.mxu0 0.0
    %3566 = vmatprep.subr.mxu0 0.0
    %3567 = vmatpush2.msra.mxu0 0.0
    %3568 = vmatprep.subr.mxu0 0.0
    %3569 = vmatpush2.msra.mxu0 0.0
    %3570 = vmatprep.subr.mxu0 0.0
    %3571 = vmatpush2.msra.mxu0 0.0
    %3572 = vmatprep.subr.mxu0 0.0
    %3573 = vmatpush2.msra.mxu0 0.0
    %3574 = vmatprep.subr.mxu0 0.0
    %3575 = vmatpush2.msra.mxu0 0.0
    %3576 = vmatprep.subr.mxu0 0.0
    %3577 = vmatpush2.msra.mxu0 0.0
    %3578 = vmatprep.subr.mxu0 0.0
    %3579 = vmatpush2.msra.mxu0 0.0
    %3580 = vmatprep.subr.mxu0 0.0
    %3581 = vmatpush2.msra.mxu0 0.0
    %3582 = vmatprep.subr.mxu0 0.0
    %3583 = vmatpush2.msra.mxu0 0.0
    %3584 = vmatprep.mubr.f32.mxu0 0.0
    %3585 = vmatmul.mubr.f32.gmra.mxu0 %v3511
    %v3586 = vpop.f32.mrf.mxu0
    %v3587 = vadd.f32 0.0, %v3586
    %v3588 = vpop.f32.mrf.mxu0
    %v3589 = vadd.f32 0.0, %v3588
    %3590 = vdwg.mxu0
    %v3592 = vsel %vm238, %v3426, 0
    %v3595 = vsel %vm3513, %v3429, 0
    %v3598 = vsel %vm3513, %v3430, 0
    %3600 = vmatprep.subr.mxu0 0.0
    %3601 = vmatpush1.msra.mxu0 0.0
    %3602 = vmatprep.subr.mxu0 0.0
    %3603 = vmatpush1.msra.mxu0 0.0
    %3604 = vmatprep.subr.mxu0 0.0
    %3605 = vmatpush1.msra.mxu0 0.0
    %3606 = vmatprep.subr.mxu0 0.0
    %3607 = vmatpush1.msra.mxu0 0.0
    %3608 = vmatprep.subr.mxu0 0.0
    %3609 = vmatpush1.msra.mxu0 0.0
    %3610 = vmatprep.subr.mxu0 0.0
    %3611 = vmatpush1.msra.mxu0 0.0
    %3612 = vmatprep.subr.mxu0 0.0
    %3613 = vmatpush1.msra.mxu0 0.0
    %3614 = vmatprep.subr.mxu0 0.0
    %3615 = vmatpush1.msra.mxu0 0.0
    %3616 = vmatprep.subr.mxu0 0.0
    %3617 = vmatpush1.msra.mxu0 0.0
    %3618 = vmatprep.subr.mxu0 0.0
    %3619 = vmatpush1.msra.mxu0 0.0
    %3620 = vmatprep.subr.mxu0 0.0
    %3621 = vmatpush1.msra.mxu0 0.0
    %3622 = vmatprep.subr.mxu0 0.0
    %3623 = vmatpush1.msra.mxu0 0.0
    %3624 = vmatprep.subr.mxu0 0.0
    %3625 = vmatpush1.msra.mxu0 0.0
    %3626 = vmatprep.subr.mxu0 0.0
    %3627 = vmatpush1.msra.mxu0 0.0
    %3628 = vmatprep.subr.mxu0 0.0
    %3629 = vmatpush1.msra.mxu0 0.0
    %3630 = vmatprep.subr.mxu0 %v3598
    %3631 = vmatpush1.msra.mxu0 %v3595
    %3632 = vmatprep.subr.mxu0 0.0
    %3633 = vmatpush2.msra.mxu0 0.0
    %3634 = vmatprep.subr.mxu0 0.0
    %3635 = vmatpush2.msra.mxu0 0.0
    %3636 = vmatprep.subr.mxu0 0.0
    %3637 = vmatpush2.msra.mxu0 0.0
    %3638 = vmatprep.subr.mxu0 0.0
    %3639 = vmatpush2.msra.mxu0 0.0
    %3640 = vmatprep.subr.mxu0 0.0
    %3641 = vmatpush2.msra.mxu0 0.0
    %3642 = vmatprep.subr.mxu0 0.0
    %3643 = vmatpush2.msra.mxu0 0.0
    %3644 = vmatprep.subr.mxu0 0.0
    %3645 = vmatpush2.msra.mxu0 0.0
    %3646 = vmatprep.subr.mxu0 0.0
    %3647 = vmatpush2.msra.mxu0 0.0
    %3648 = vmatprep.subr.mxu0 0.0
    %3649 = vmatpush2.msra.mxu0 0.0
    %3650 = vmatprep.subr.mxu0 0.0
    %3651 = vmatpush2.msra.mxu0 0.0
    %3652 = vmatprep.subr.mxu0 0.0
    %3653 = vmatpush2.msra.mxu0 0.0
    %3654 = vmatprep.subr.mxu0 0.0
    %3655 = vmatpush2.msra.mxu0 0.0
    %3656 = vmatprep.subr.mxu0 0.0
    %3657 = vmatpush2.msra.mxu0 0.0
    %3658 = vmatprep.subr.mxu0 0.0
    %3659 = vmatpush2.msra.mxu0 0.0
    %3660 = vmatprep.subr.mxu0 0.0
    %3661 = vmatpush2.msra.mxu0 0.0
    %3662 = vmatprep.subr.mxu0 0.0
    %3663 = vmatpush2.msra.mxu0 0.0
    %3664 = vmatprep.mubr.f32.mxu0 0.0
    %3665 = vmatmul.mubr.f32.gmra.mxu0 %v3592
    %v3666 = vpop.f32.mrf.mxu0
    %v3667 = vadd.f32 %v3587, %v3666
    %v3668 = vpop.f32.mrf.mxu0
    %v3669 = vadd.f32 %v3589, %v3668
    %3670 = vdwg.mxu0
    %v3671 = vadd.s32 %v3351, 6
    %vm3672 = vcmp.eq.s32.totalorder %v3350, %v3671
    %v3673 = vsel %vm3672, 1, 0
    %v3674 = vcvt.s32.f32 %v3673
    %v3676 = vsel %vm3355, %v3674, 0
    %3678 = vmatprep.subr.mxu0 0.0
    %3679 = vmatpush1.msra.mxu0 0.0
    %3680 = vmatprep.subr.mxu0 0.0
    %3681 = vmatpush1.msra.mxu0 0.0
    %3682 = vmatprep.subr.mxu0 0.0
    %3683 = vmatpush1.msra.mxu0 0.0
    %3684 = vmatprep.subr.mxu0 0.0
    %3685 = vmatpush1.msra.mxu0 0.0
    %3686 = vmatprep.subr.mxu0 0.0
    %3687 = vmatpush1.msra.mxu0 0.0
    %3688 = vmatprep.subr.mxu0 0.0
    %3689 = vmatpush1.msra.mxu0 0.0
    %3690 = vmatprep.subr.mxu0 0.0
    %3691 = vmatpush1.msra.mxu0 0.0
    %3692 = vmatprep.subr.mxu0 0.0
    %3693 = vmatpush1.msra.mxu0 %v3348
    %3694 = vmatprep.subr.mxu0 0.0
    %3695 = vmatpush1.msra.mxu0 %v3347
    %3696 = vmatprep.subr.mxu0 0.0
    %3697 = vmatpush1.msra.mxu0 %v3346
    %3698 = vmatprep.subr.mxu0 0.0
    %3699 = vmatpush1.msra.mxu0 %v3345
    %3700 = vmatprep.subr.mxu0 0.0
    %3701 = vmatpush1.msra.mxu0 %v3344
    %3702 = vmatprep.subr.mxu0 0.0
    %3703 = vmatpush1.msra.mxu0 %v3343
    %3704 = vmatprep.subr.mxu0 0.0
    %3705 = vmatpush1.msra.mxu0 %v3342
    %3706 = vmatprep.subr.mxu0 0.0
    %3707 = vmatpush1.msra.mxu0 %v3341
    %3708 = vmatprep.subr.mxu0 0.0
    %3709 = vmatpush1.msra.mxu0 %v3340
    %3710 = vmatprep.subr.mxu0 0.0
    %3711 = vmatpush2.msra.mxu0 0.0
    %3712 = vmatprep.subr.mxu0 0.0
    %3713 = vmatpush2.msra.mxu0 0.0
    %3714 = vmatprep.subr.mxu0 0.0
    %3715 = vmatpush2.msra.mxu0 0.0
    %3716 = vmatprep.subr.mxu0 0.0
    %3717 = vmatpush2.msra.mxu0 0.0
    %3718 = vmatprep.subr.mxu0 0.0
    %3719 = vmatpush2.msra.mxu0 0.0
    %3720 = vmatprep.subr.mxu0 0.0
    %3721 = vmatpush2.msra.mxu0 0.0
    %3722 = vmatprep.subr.mxu0 0.0
    %3723 = vmatpush2.msra.mxu0 0.0
    %3724 = vmatprep.subr.mxu0 0.0
    %3725 = vmatpush2.msra.mxu0 0.0
    %3726 = vmatprep.subr.mxu0 0.0
    %3727 = vmatpush2.msra.mxu0 0.0
    %3728 = vmatprep.subr.mxu0 0.0
    %3729 = vmatpush2.msra.mxu0 0.0
    %3730 = vmatprep.subr.mxu0 0.0
    %3731 = vmatpush2.msra.mxu0 0.0
    %3732 = vmatprep.subr.mxu0 0.0
    %3733 = vmatpush2.msra.mxu0 0.0
    %3734 = vmatprep.subr.mxu0 0.0
    %3735 = vmatpush2.msra.mxu0 0.0
    %3736 = vmatprep.subr.mxu0 0.0
    %3737 = vmatpush2.msra.mxu0 0.0
    %3738 = vmatprep.subr.mxu0 0.0
    %3739 = vmatpush2.msra.mxu0 0.0
    %3740 = vmatprep.subr.mxu0 0.0
    %3741 = vmatpush2.msra.mxu0 0.0
    %3742 = vmatprep.mubr.f32.mxu0 0.0
    %3743 = vmatmul.mubr.f32.gmra.mxu0 %v3676
    %v3744 = vpop.f32.mrf.mxu0
    %v3745 = vadd.f32 0.0, %v3744
    %v3746 = vpop.f32.mrf.mxu0
    %3747 = vdwg.mxu0
    %v3748 = vld [vmem:[#allocation2 + $0x430] sm:$0x3f]
    %v3749 = vld [vmem:[#allocation2 + $0x438] sm:$0x3f]
    %v3751 = vsel %vm238, %v3745, 0
    %v3754 = vsel %vm3513, %v3748, 0
    %v3757 = vsel %vm3513, %v3749, 0
    %3759 = vmatprep.subr.mxu0 0.0
    %3760 = vmatpush1.msra.mxu0 0.0
    %3761 = vmatprep.subr.mxu0 0.0
    %3762 = vmatpush1.msra.mxu0 0.0
    %3763 = vmatprep.subr.mxu0 0.0
    %3764 = vmatpush1.msra.mxu0 0.0
    %3765 = vmatprep.subr.mxu0 0.0
    %3766 = vmatpush1.msra.mxu0 0.0
    %3767 = vmatprep.subr.mxu0 0.0
    %3768 = vmatpush1.msra.mxu0 0.0
    %3769 = vmatprep.subr.mxu0 0.0
    %3770 = vmatpush1.msra.mxu0 0.0
    %3771 = vmatprep.subr.mxu0 0.0
    %3772 = vmatpush1.msra.mxu0 0.0
    %3773 = vmatprep.subr.mxu0 0.0
    %3774 = vmatpush1.msra.mxu0 0.0
    %3775 = vmatprep.subr.mxu0 0.0
    %3776 = vmatpush1.msra.mxu0 0.0
    %3777 = vmatprep.subr.mxu0 0.0
    %3778 = vmatpush1.msra.mxu0 0.0
    %3779 = vmatprep.subr.mxu0 0.0
    %3780 = vmatpush1.msra.mxu0 0.0
    %3781 = vmatprep.subr.mxu0 0.0
    %3782 = vmatpush1.msra.mxu0 0.0
    %3783 = vmatprep.subr.mxu0 0.0
    %3784 = vmatpush1.msra.mxu0 0.0
    %3785 = vmatprep.subr.mxu0 0.0
    %3786 = vmatpush1.msra.mxu0 0.0
    %3787 = vmatprep.subr.mxu0 0.0
    %3788 = vmatpush1.msra.mxu0 0.0
    %3789 = vmatprep.subr.mxu0 %v3757
    %3790 = vmatpush1.msra.mxu0 %v3754
    %3791 = vmatprep.subr.mxu0 0.0
    %3792 = vmatpush2.msra.mxu0 0.0
    %3793 = vmatprep.subr.mxu0 0.0
    %3794 = vmatpush2.msra.mxu0 0.0
    %3795 = vmatprep.subr.mxu0 0.0
    %3796 = vmatpush2.msra.mxu0 0.0
    %3797 = vmatprep.subr.mxu0 0.0
    %3798 = vmatpush2.msra.mxu0 0.0
    %3799 = vmatprep.subr.mxu0 0.0
    %3800 = vmatpush2.msra.mxu0 0.0
    %3801 = vmatprep.subr.mxu0 0.0
    %3802 = vmatpush2.msra.mxu0 0.0
    %3803 = vmatprep.subr.mxu0 0.0
    %3804 = vmatpush2.msra.mxu0 0.0
    %3805 = vmatprep.subr.mxu0 0.0
    %3806 = vmatpush2.msra.mxu0 0.0
    %3807 = vmatprep.subr.mxu0 0.0
    %3808 = vmatpush2.msra.mxu0 0.0
    %3809 = vmatprep.subr.mxu0 0.0
    %3810 = vmatpush2.msra.mxu0 0.0
    %3811 = vmatprep.subr.mxu0 0.0
    %3812 = vmatpush2.msra.mxu0 0.0
    %3813 = vmatprep.subr.mxu0 0.0
    %3814 = vmatpush2.msra.mxu0 0.0
    %3815 = vmatprep.subr.mxu0 0.0
    %3816 = vmatpush2.msra.mxu0 0.0
    %3817 = vmatprep.subr.mxu0 0.0
    %3818 = vmatpush2.msra.mxu0 0.0
    %3819 = vmatprep.subr.mxu0 0.0
    %3820 = vmatpush2.msra.mxu0 0.0
    %3821 = vmatprep.subr.mxu0 0.0
    %3822 = vmatpush2.msra.mxu0 0.0
    %3823 = vmatprep.mubr.f32.mxu0 0.0
    %3824 = vmatmul.mubr.f32.gmra.mxu0 %v3751
    %v3825 = vpop.f32.mrf.mxu0
    %v3826 = vadd.f32 0.0, %v3825
    %v3827 = vpop.f32.mrf.mxu0
    %v3828 = vadd.f32 0.0, %v3827
    %3829 = vdwg.mxu0
    %v3830 = vadd.f32 %v3667, %v3826
    %v3831 = vadd.f32 %v3669, %v3828
    %v3832 = vadd.s32 %v3351, 7
    %vm3833 = vcmp.eq.s32.totalorder %v3350, %v3832
    %v3834 = vsel %vm3833, 1, 0
    %v3835 = vcvt.s32.f32 %v3834
    %v3837 = vsel %vm3355, %v3835, 0
    %3839 = vmatprep.subr.mxu0 0.0
    %3840 = vmatpush1.msra.mxu0 0.0
    %3841 = vmatprep.subr.mxu0 0.0
    %3842 = vmatpush1.msra.mxu0 0.0
    %3843 = vmatprep.subr.mxu0 0.0
    %3844 = vmatpush1.msra.mxu0 0.0
    %3845 = vmatprep.subr.mxu0 0.0
    %3846 = vmatpush1.msra.mxu0 0.0
    %3847 = vmatprep.subr.mxu0 0.0
    %3848 = vmatpush1.msra.mxu0 0.0
    %3849 = vmatprep.subr.mxu0 0.0
    %3850 = vmatpush1.msra.mxu0 0.0
    %3851 = vmatprep.subr.mxu0 0.0
    %3852 = vmatpush1.msra.mxu0 0.0
    %3853 = vmatprep.subr.mxu0 0.0
    %3854 = vmatpush1.msra.mxu0 %v3348
    %3855 = vmatprep.subr.mxu0 0.0
    %3856 = vmatpush1.msra.mxu0 %v3347
    %3857 = vmatprep.subr.mxu0 0.0
    %3858 = vmatpush1.msra.mxu0 %v3346
    %3859 = vmatprep.subr.mxu0 0.0
    %3860 = vmatpush1.msra.mxu0 %v3345
    %3861 = vmatprep.subr.mxu0 0.0
    %3862 = vmatpush1.msra.mxu0 %v3344
    %3863 = vmatprep.subr.mxu0 0.0
    %3864 = vmatpush1.msra.mxu0 %v3343
    %3865 = vmatprep.subr.mxu0 0.0
    %3866 = vmatpush1.msra.mxu0 %v3342
    %3867 = vmatprep.subr.mxu0 0.0
    %3868 = vmatpush1.msra.mxu0 %v3341
    %3869 = vmatprep.subr.mxu0 0.0
    %3870 = vmatpush1.msra.mxu0 %v3340
    %3871 = vmatprep.subr.mxu0 0.0
    %3872 = vmatpush2.msra.mxu0 0.0
    %3873 = vmatprep.subr.mxu0 0.0
    %3874 = vmatpush2.msra.mxu0 0.0
    %3875 = vmatprep.subr.mxu0 0.0
    %3876 = vmatpush2.msra.mxu0 0.0
    %3877 = vmatprep.subr.mxu0 0.0
    %3878 = vmatpush2.msra.mxu0 0.0
    %3879 = vmatprep.subr.mxu0 0.0
    %3880 = vmatpush2.msra.mxu0 0.0
    %3881 = vmatprep.subr.mxu0 0.0
    %3882 = vmatpush2.msra.mxu0 0.0
    %3883 = vmatprep.subr.mxu0 0.0
    %3884 = vmatpush2.msra.mxu0 0.0
    %3885 = vmatprep.subr.mxu0 0.0
    %3886 = vmatpush2.msra.mxu0 0.0
    %3887 = vmatprep.subr.mxu0 0.0
    %3888 = vmatpush2.msra.mxu0 0.0
    %3889 = vmatprep.subr.mxu0 0.0
    %3890 = vmatpush2.msra.mxu0 0.0
    %3891 = vmatprep.subr.mxu0 0.0
    %3892 = vmatpush2.msra.mxu0 0.0
    %3893 = vmatprep.subr.mxu0 0.0
    %3894 = vmatpush2.msra.mxu0 0.0
    %3895 = vmatprep.subr.mxu0 0.0
    %3896 = vmatpush2.msra.mxu0 0.0
    %3897 = vmatprep.subr.mxu0 0.0
    %3898 = vmatpush2.msra.mxu0 0.0
    %3899 = vmatprep.subr.mxu0 0.0
    %3900 = vmatpush2.msra.mxu0 0.0
    %3901 = vmatprep.subr.mxu0 0.0
    %3902 = vmatpush2.msra.mxu0 0.0
    %3903 = vmatprep.mubr.f32.mxu0 0.0
    %3904 = vmatmul.mubr.f32.gmra.mxu0 %v3837
    %v3905 = vpop.f32.mrf.mxu0
    %v3906 = vadd.f32 0.0, %v3905
    %v3907 = vpop.f32.mrf.mxu0
    %3908 = vdwg.mxu0
    %v3909 = vld [vmem:[#allocation2 + $0x440] sm:$0x3f]
    %v3910 = vld [vmem:[#allocation2 + $0x448] sm:$0x3f]
    %v3912 = vsel %vm238, %v3906, 0
    %v3915 = vsel %vm3513, %v3909, 0
    %v3918 = vsel %vm3513, %v3910, 0
    %3920 = vmatprep.subr.mxu0 0.0
    %3921 = vmatpush1.msra.mxu0 0.0
    %3922 = vmatprep.subr.mxu0 0.0
    %3923 = vmatpush1.msra.mxu0 0.0
    %3924 = vmatprep.subr.mxu0 0.0
    %3925 = vmatpush1.msra.mxu0 0.0
    %3926 = vmatprep.subr.mxu0 0.0
    %3927 = vmatpush1.msra.mxu0 0.0
    %3928 = vmatprep.subr.mxu0 0.0
    %3929 = vmatpush1.msra.mxu0 0.0
    %3930 = vmatprep.subr.mxu0 0.0
    %3931 = vmatpush1.msra.mxu0 0.0
    %3932 = vmatprep.subr.mxu0 0.0
    %3933 = vmatpush1.msra.mxu0 0.0
    %3934 = vmatprep.subr.mxu0 0.0
    %3935 = vmatpush1.msra.mxu0 0.0
    %3936 = vmatprep.subr.mxu0 0.0
    %3937 = vmatpush1.msra.mxu0 0.0
    %3938 = vmatprep.subr.mxu0 0.0
    %3939 = vmatpush1.msra.mxu0 0.0
    %3940 = vmatprep.subr.mxu0 0.0
    %3941 = vmatpush1.msra.mxu0 0.0
    %3942 = vmatprep.subr.mxu0 0.0
    %3943 = vmatpush1.msra.mxu0 0.0
    %3944 = vmatprep.subr.mxu0 0.0
    %3945 = vmatpush1.msra.mxu0 0.0
    %3946 = vmatprep.subr.mxu0 0.0
    %3947 = vmatpush1.msra.mxu0 0.0
    %3948 = vmatprep.subr.mxu0 0.0
    %3949 = vmatpush1.msra.mxu0 0.0
    %3950 = vmatprep.subr.mxu0 %v3918
    %3951 = vmatpush1.msra.mxu0 %v3915
    %3952 = vmatprep.subr.mxu0 0.0
    %3953 = vmatpush2.msra.mxu0 0.0
    %3954 = vmatprep.subr.mxu0 0.0
    %3955 = vmatpush2.msra.mxu0 0.0
    %3956 = vmatprep.subr.mxu0 0.0
    %3957 = vmatpush2.msra.mxu0 0.0
    %3958 = vmatprep.subr.mxu0 0.0
    %3959 = vmatpush2.msra.mxu0 0.0
    %3960 = vmatprep.subr.mxu0 0.0
    %3961 = vmatpush2.msra.mxu0 0.0
    %3962 = vmatprep.subr.mxu0 0.0
    %3963 = vmatpush2.msra.mxu0 0.0
    %3964 = vmatprep.subr.mxu0 0.0
    %3965 = vmatpush2.msra.mxu0 0.0
    %3966 = vmatprep.subr.mxu0 0.0
    %3967 = vmatpush2.msra.mxu0 0.0
    %3968 = vmatprep.subr.mxu0 0.0
    %3969 = vmatpush2.msra.mxu0 0.0
    %3970 = vmatprep.subr.mxu0 0.0
    %3971 = vmatpush2.msra.mxu0 0.0
    %3972 = vmatprep.subr.mxu0 0.0
    %3973 = vmatpush2.msra.mxu0 0.0
    %3974 = vmatprep.subr.mxu0 0.0
    %3975 = vmatpush2.msra.mxu0 0.0
    %3976 = vmatprep.subr.mxu0 0.0
    %3977 = vmatpush2.msra.mxu0 0.0
    %3978 = vmatprep.subr.mxu0 0.0
    %3979 = vmatpush2.msra.mxu0 0.0
    %3980 = vmatprep.subr.mxu0 0.0
    %3981 = vmatpush2.msra.mxu0 0.0
    %3982 = vmatprep.subr.mxu0 0.0
    %3983 = vmatpush2.msra.mxu0 0.0
    %3984 = vmatprep.mubr.f32.mxu0 0.0
    %3985 = vmatmul.mubr.f32.gmra.mxu0 %v3912
    %v3986 = vpop.f32.mrf.mxu0
    %v3987 = vadd.f32 0.0, %v3986
    %v3988 = vpop.f32.mrf.mxu0
    %v3989 = vadd.f32 0.0, %v3988
    %3990 = vdwg.mxu0
    %v3991 = vadd.f32 %v3830, %v3987
    %v3992 = vadd.f32 %v3831, %v3989
    %s3993 = scalar_lea.vmem [#allocation2], 1505
    %v3994 = vld [vmem:[%s3993] ss:$8 sm:$0x3]
    %v3996 = vlaneseq
    %v3997 = vshrl.u32 %v3996, 7
    %v3998 = vsub.s32 0, %v3997
    %v3999 = vrot.slane %v3994, %v3998
    %v4000 = vlaneseq
    %v4001 = vshrl.u32 %v4000, 7
    %v4002 = vsub.s32 1, %v4001
    %v4003 = vrot.slane %v3994, %v4002
    %v4006 = vadd.f32 %v3991, %v3999
    %v4007 = vadd.f32 %v3992, %v4003
    %v4008 = vmax.f32 %v4006, 0.0
    %v4009 = vmax.f32 %v4007, 0.0
    %v4010 = vld [vmem:[#allocation2 + $0x450] sm:$0xff]
    %v4011 = vld [vmem:[#allocation2 + $0x460] sm:$0xff]
    %v4012 = vld [vmem:[#allocation2 + $0x470] sm:$0xff]
    %v4013 = vld [vmem:[#allocation2 + $0x480] sm:$0xff]
    %v4014 = vld [vmem:[#allocation2 + $0x490] sm:$0xff]
    %v4015 = vld [vmem:[#allocation2 + $0x4a0] sm:$0xff]
    %v4016 = vld [vmem:[#allocation2 + $0x4b0] sm:$0xff]
    %v4017 = vld [vmem:[#allocation2 + $0x4c0] sm:$0xff]
    %v4018 = vld [vmem:[#allocation2 + $0x4d0] sm:$0xff]
    %v4019 = vld [vmem:[#allocation2 + $0x4e0] sm:$0xff]
    %v4020 = vld [vmem:[#allocation2 + $0x4f0] sm:$0xff]
    %v4021 = vld [vmem:[#allocation2 + $0x500] sm:$0xff]
    %v4022 = vld [vmem:[#allocation2 + $0x510] sm:$0xff]
    %v4023 = vld [vmem:[#allocation2 + $0x520] sm:$0xff]
    %v4024 = vld [vmem:[#allocation2 + $0x530] sm:$0xff]
    %v4025 = vld [vmem:[#allocation2 + $0x540] sm:$0xff]
    %v4026 = vld [vmem:[#allocation2 + $0x550] sm:$0xff]
    %v4027 = vld [vmem:[#allocation2 + $0x560] sm:$0xff]
    %v4028 = vld [vmem:[#allocation2 + $0x570] sm:$0xff]
    %v4029 = vld [vmem:[#allocation2 + $0x580] sm:$0xff]
    %v4030 = vld [vmem:[#allocation2 + $0x590] sm:$0xff]
    %v4031 = vld [vmem:[#allocation2 + $0x5a0] sm:$0xff]
    %v4032 = vld [vmem:[#allocation2 + $0x5b0] sm:$0xff]
    %v4033 = vld [vmem:[#allocation2 + $0x5c0] sm:$0xff]
    %v4034 = vld [vmem:[#allocation2 + $0x5e2] ss:$0 sm:$0xff]
    %vm4035 = vcmask 523264
    %v4037 = vsel %vm4035, %v4009, 0
    %4039 = vmatprep.subr.mxu0 0.0
    %4040 = vmatpush1.msra.mxu0 %v4025
    %4041 = vmatprep.subr.mxu0 0.0
    %4042 = vmatpush1.msra.mxu0 %v4024
    %4043 = vmatprep.subr.mxu0 0.0
    %4044 = vmatpush1.msra.mxu0 %v4023
    %4045 = vmatprep.subr.mxu0 0.0
    %4046 = vmatpush1.msra.mxu0 %v4022
    %4047 = vmatprep.subr.mxu0 0.0
    %4048 = vmatpush1.msra.mxu0 %v4021
    %4049 = vmatprep.subr.mxu0 0.0
    %4050 = vmatpush1.msra.mxu0 %v4020
    %4051 = vmatprep.subr.mxu0 0.0
    %4052 = vmatpush1.msra.mxu0 %v4019
    %4053 = vmatprep.subr.mxu0 0.0
    %4054 = vmatpush1.msra.mxu0 %v4018
    %4055 = vmatprep.subr.mxu0 0.0
    %4056 = vmatpush1.msra.mxu0 %v4017
    %4057 = vmatprep.subr.mxu0 0.0
    %4058 = vmatpush1.msra.mxu0 %v4016
    %4059 = vmatprep.subr.mxu0 0.0
    %4060 = vmatpush1.msra.mxu0 %v4015
    %4061 = vmatprep.subr.mxu0 0.0
    %4062 = vmatpush1.msra.mxu0 %v4014
    %4063 = vmatprep.subr.mxu0 0.0
    %4064 = vmatpush1.msra.mxu0 %v4013
    %4065 = vmatprep.subr.mxu0 0.0
    %4066 = vmatpush1.msra.mxu0 %v4012
    %4067 = vmatprep.subr.mxu0 0.0
    %4068 = vmatpush1.msra.mxu0 %v4011
    %4069 = vmatprep.subr.mxu0 0.0
    %4070 = vmatpush1.msra.mxu0 %v4010
    %4071 = vmatprep.subr.mxu0 0.0
    %4072 = vmatpush2.msra.mxu0 0.0
    %4073 = vmatprep.subr.mxu0 0.0
    %4074 = vmatpush2.msra.mxu0 0.0
    %4075 = vmatprep.subr.mxu0 0.0
    %4076 = vmatpush2.msra.mxu0 0.0
    %4077 = vmatprep.subr.mxu0 0.0
    %4078 = vmatpush2.msra.mxu0 0.0
    %4079 = vmatprep.subr.mxu0 0.0
    %4080 = vmatpush2.msra.mxu0 0.0
    %4081 = vmatprep.subr.mxu0 0.0
    %4082 = vmatpush2.msra.mxu0 0.0
    %4083 = vmatprep.subr.mxu0 0.0
    %4084 = vmatpush2.msra.mxu0 0.0
    %4085 = vmatprep.subr.mxu0 0.0
    %4086 = vmatpush2.msra.mxu0 0.0
    %4087 = vmatprep.subr.mxu0 0.0
    %4088 = vmatpush2.msra.mxu0 %v4033
    %4089 = vmatprep.subr.mxu0 0.0
    %4090 = vmatpush2.msra.mxu0 %v4032
    %4091 = vmatprep.subr.mxu0 0.0
    %4092 = vmatpush2.msra.mxu0 %v4031
    %4093 = vmatprep.subr.mxu0 0.0
    %4094 = vmatpush2.msra.mxu0 %v4030
    %4095 = vmatprep.subr.mxu0 0.0
    %4096 = vmatpush2.msra.mxu0 %v4029
    %4097 = vmatprep.subr.mxu0 0.0
    %4098 = vmatpush2.msra.mxu0 %v4028
    %4099 = vmatprep.subr.mxu0 0.0
    %4100 = vmatpush2.msra.mxu0 %v4027
    %4101 = vmatprep.subr.mxu0 0.0
    %4102 = vmatpush2.msra.mxu0 %v4026
    %4103 = vmatprep.mubr.f32.mxu0 %v4037
    %4104 = vmatmul.mubr.f32.gmra.mxu0 %v4008
    %v4105 = vpop.f32.mrf.mxu0
    %v4106 = vadd.f32 %v4034, %v4105
    %v4107 = vpop.f32.mrf.mxu0
    %4108 = vdwg.mxu0
    %vm4109 = vcmask 156672
    %4110 = vst.msk [vmem:[%s3] sm:$0x3] %vm4109, %v4106
    // Predicated region
    $region22: #{encoder_f_forward.1} parent=1 // pred_check
      _
    $region23: #{encoder_f_forward.1} parent=1 // pred_check_branch
      %4112 = sbr.rel (0) target = $region25
    $region24: #{encoder_f_forward.1} parent=1 // pred_region
      _
    $region25: #{encoder_f_forward.1} parent=1 // pred_fallthru
      _
    // Predicated region
    $region26: #{encoder_f_forward.1} parent=1 // pred_check
      _
    $region27: #{encoder_f_forward.1} parent=1 // pred_check_branch
      %4114 = sbr.rel (0) target = $region29
    $region28: #{encoder_f_forward.1} parent=1 // pred_region
      _
    $region29: #{encoder_f_forward.1} parent=1 // pred_fallthru
      _
    %4115 = vsyncpa [#allocation3], 1
    %4116 = vsyncpa [#allocation5], 1

</llo_original>
